<compile_context>
chip_gen: v5e
topology: v5e:2x2
jax: 0.10.0
libtpu: 0.0.40
codegen_flags: <defaults>
</compile_context>

<pallas_src>
import functools

import numpy as np

import jax
import jax.numpy as jnp
from jax import lax
from jax.experimental import pallas as pl
from jax.experimental.pallas import tpu as pltpu


def _jam_kernel(x_ref, w1t_ref, b1_ref, w2t_ref, b2_ref,
                taps_ref, bsp_ref, mask_ref,
                w11c_ref, w11s_ref, b11_ref,
                out_ref, *, W, mxu_dtype):
    TB, C, P = x_ref.shape
    inv_p = 1.0 / P
    inv_c = 1.0 / C

    xb = x_ref[...].astype(jnp.float32)                  # (TB, C, P)

    # ---- channel attention: avg+max pool -> shared affine MLP (merged) -> sigmoid ----
    # mlp(avg) + mlp(max) == ((avg+max) @ W1^T + 2*b1) @ W2^T + 2*b2  (no nonlinearity
    # between the two 1x1 convs); b1_ref / b2_ref already hold the doubled biases.
    pooled = jnp.sum(xb, axis=2) * inv_p + jnp.max(xb, axis=2)          # (TB, C)
    h = jnp.dot(pooled, w1t_ref[...], preferred_element_type=jnp.float32) + b1_ref[...]
    z = jnp.dot(h, w2t_ref[...], preferred_element_type=jnp.float32) + b2_ref[...]
    mask_c = jax.nn.sigmoid(z)                                          # (TB, C)

    # ---- spatial attention: channel avg/max pool -> 7x7 conv as 49 shifted adds ----
    sp_avg = jnp.sum(xb, axis=1) * inv_c                 # (TB, P)
    sp_max = jnp.max(xb, axis=1)                         # (TB, P)

    conv = jnp.zeros((TB, P), dtype=jnp.float32)
    for dy in range(-3, 4):
        for dx in range(-3, 4):
            t = 7 * (dy + 3) + (dx + 3)                  # row-major (ky, kx) tap index
            # Combine the two pooled maps with their tap weights BEFORE rolling
            # (roll is linear) -> one XLU roll per tap instead of two.
            combo = taps_ref[t] * sp_avg + taps_ref[49 + t] * sp_max
            shift = (-(dy * W + dx)) % P                 # shifted[p] = combo[p + dy*W + dx]
            rolled = pltpu.roll(combo, shift=shift, axis=1) if shift else combo
            if dy == 0 and dx == 0:                      # centre tap: mask is all ones
                conv = conv + rolled
            else:                                        # host-precomputed boundary mask row
                conv = conv + rolled * mask_ref[pl.ds(t, 1), :]
    mask_s = jax.nn.sigmoid(conv + bsp_ref[0])           # (TB, P)

    # ---- conv1x1(cat([F_channel*x, F_spatial*x])) + x ----
    # Masks commute with the channel contraction, so scale x^2 (not the weights):
    # the (C,C) 1x1-conv weights stay un-batched and weight-stationary on the MXU.
    x2 = xb * xb                                         # (TB, C, P), f32
    xc = x2 * mask_c[:, :, None]                         # F_channel * x
    xs = x2 * mask_s[:, None, :]                         # F_spatial * x
    w_ch = w11c_ref[...].astype(mxu_dtype)               # (C, C)
    w_sp = w11s_ref[...].astype(mxu_dtype)               # (C, C)
    bias = b11_ref[...]                                  # (C, 1)
    for b in range(TB):                                  # static unroll; 2-D dots
        y = (jnp.dot(w_ch, xc[b].astype(mxu_dtype), preferred_element_type=jnp.float32)
             + jnp.dot(w_sp, xs[b].astype(mxu_dtype), preferred_element_type=jnp.float32))
        out_ref[b] = (y + bias + xb[b]).astype(out_ref.dtype)


def _conv_boundary_masks(H, W):
    """(49, H*W) float32 validity masks for the zero-padded 7x7 conv taps."""
    P = H * W
    r = np.arange(P) // W
    c = np.arange(P) % W
    m = np.zeros((49, P), np.float32)
    for dy in range(-3, 4):
        for dx in range(-3, 4):
            t = 7 * (dy + 3) + (dx + 3)
            m[t] = ((r + dy >= 0) & (r + dy < H) & (c + dx >= 0) & (c + dx < W))
    return m


def _vmem_bytes(tb, C, P, in_item, out_item):
    cp = ((C + 7) // 8) * 8                  # sublane padding of the (C, P) slabs
    blk = tb * cp * P
    io = 2 * blk * (in_item + out_item)      # double-buffered in/out blocks
    tmp = 4 * blk * 4                        # xb, x2, xc, xs f32 temporaries
    tmp += 49 * P * 4 + 8 * 1024             # mask table + small resident weights
    return io + tmp


def _pick_block_b(B, C, P, in_item, out_item, budget):
    """Largest divisor of B that fits the VMEM budget, keeping >=2 grid steps."""
    best = 1
    for tb in range(1, B + 1):
        if B % tb:
            continue
        if B > 1 and B // tb < 2:
            continue                          # keep both v7x TensorCores busy
        if _vmem_bytes(tb, C, P, in_item, out_item) <= budget:
            best = tb
    return best


def jam_forward(x, params, *, block_b=None):
    B, C, H, W = x.shape
    P = H * W

    w1 = params["w1"].astype(jnp.float32)                # (M, C)
    w2 = params["w2"].astype(jnp.float32)                # (C, M)
    M = w1.shape[0]
    w1t = w1.T                                           # (C, M)  (MLP as right-multiplication)
    w2t = w2.T                                           # (M, C)
    b1x2 = (2.0 * params["b1"]).reshape(1, M).astype(jnp.float32)   # doubled (merged MLP)
    b2x2 = (2.0 * params["b2"]).reshape(1, C).astype(jnp.float32)
    taps = params["w_sp"].reshape(2 * 49).astype(jnp.float32)       # [avg taps | max taps]
    bsp = params["b_sp"].reshape(1).astype(jnp.float32)
    w11 = params["w_1x1"].astype(jnp.float32)            # (C, 2C): [channel half | spatial half]
    w11_ch = w11[:, :C]
    w11_sp = w11[:, C:]
    b11 = params["b_1x1"].reshape(C, 1).astype(jnp.float32)
    mask_tbl = jnp.asarray(_conv_boundary_masks(H, W))   # (49, P)

    # Keep x in its native dtype (no wrapper up-cast); cast to f32 inside the kernel.
    x_flat = x.reshape(B, C, P)
    mxu_dtype = jnp.bfloat16 if x.dtype == jnp.bfloat16 else jnp.float32

    try:
        vmem_cap = int(pltpu.get_tpu_info().vmem_capacity_bytes)
    except Exception:
        vmem_cap = 64 << 20                              # conservative (v7x-sized) fallback
    in_item = x.dtype.itemsize
    out_item = in_item
    if block_b is None:
        block_b = _pick_block_b(B, C, P, in_item, out_item, vmem_cap // 4)
    assert B % block_b == 0, "batch must be divisible by block_b"
    TB = block_b
    needed = _vmem_bytes(TB, C, P, in_item, out_item)
    vmem_limit = int(min(vmem_cap - vmem_cap // 4, max(2 * needed, 32 << 20)))

    kernel = functools.partial(_jam_kernel, W=W, mxu_dtype=mxu_dtype)

    def vmem_full(shape):
        return pl.BlockSpec(shape, lambda b: (0,) * len(shape))

    smem = pl.BlockSpec(memory_space=pltpu.MemorySpace.SMEM)

    out_flat = pl.pallas_call(
        kernel,
        out_shape=jax.ShapeDtypeStruct((B, C, P), x.dtype),
        grid=(B // TB,),
        in_specs=[
            pl.BlockSpec((TB, C, P), lambda b: (b, 0, 0)),   # x block
            vmem_full((C, M)), vmem_full((1, M)),            # w1t, 2*b1
            vmem_full((M, C)), vmem_full((1, C)),            # w2t, 2*b2
            smem, smem,                                      # conv taps, conv bias (SMEM)
            vmem_full((49, P)),                              # boundary-mask table
            vmem_full((C, C)), vmem_full((C, C)),            # w11_ch, w11_sp
            vmem_full((C, 1)),                               # b11
        ],
        out_specs=pl.BlockSpec((TB, C, P), lambda b: (b, 0, 0)),
        compiler_params=pltpu.CompilerParams(
            dimension_semantics=("parallel",),
            vmem_limit_bytes=vmem_limit),
    )(x_flat, w1t, b1x2, w2t, b2x2, taps, bsp, mask_tbl, w11_ch, w11_sp, b11)
    return out_flat.reshape(B, C, H, W)


def jam_reference(x, params):
    """Pure-JAX reference of the same forward semantics (HIGHEST precision)."""
    w1, b1 = params["w1"], params["b1"]
    w2, b2 = params["w2"], params["b2"]
    w_sp, b_sp = params["w_sp"], params["b_sp"]
    w11, b11 = params["w_1x1"], params["b_1x1"]
    hi = lax.Precision.HIGHEST

    avg = x.mean(axis=(2, 3))
    mx = x.max(axis=(2, 3))

    def mlp(v):
        h = jnp.dot(v, w1.T, precision=hi) + b1
        return jnp.dot(h, w2.T, precision=hi) + b2

    mask_c = jax.nn.sigmoid(mlp(avg) + mlp(mx))                         # (B, C)

    pooled = jnp.concatenate([x.mean(axis=1, keepdims=True),
                              x.max(axis=1, keepdims=True)], axis=1)    # (B, 2, H, W)
    conv = lax.conv_general_dilated(pooled, w_sp, (1, 1), ((3, 3), (3, 3)),
                                    dimension_numbers=("NCHW", "OIHW", "NCHW"),
                                    precision=hi)
    mask_s = jax.nn.sigmoid(conv + b_sp.reshape(1, 1, 1, 1))            # (B, 1, H, W)

    x2 = x * x
    y_ch = x2 * mask_c[:, :, None, None]
    y_sp = x2 * mask_s
    cat = jnp.concatenate([y_ch, y_sp], axis=1)                         # (B, 2C, H, W)
    return (jnp.einsum("oc,bchw->bohw", w11, cat, precision=hi)
            + b11[None, :, None, None] + x)


if __name__ == "__main__":
    channel_rescale_value = 0.5

    def make_params(key, C, M):
        ks = jax.random.split(key, 8)
        randn = lambda k, shape, scale=0.2: (scale * jax.random.normal(k, shape)).astype(jnp.float32)
        return {
            "w1": randn(ks[0], (M, C)), "b1": randn(ks[1], (M,)),
            "w2": randn(ks[2], (C, M)), "b2": randn(ks[3], (C,)),
            "w_sp": randn(ks[4], (1, 2, 7, 7)), "b_sp": randn(ks[5], (1,)),
            "w_1x1": randn(ks[6], (C, 2 * C)), "b_1x1": randn(ks[7], (C,)),
        }

    key = jax.random.PRNGKey(0)
    max_err = 0.0
    # First shape: small canonical case (TB=1, 2 grid steps).  Second: exercises
    # the batch-blocked path (TB=4, 2 grid steps).
    for (B, C, H, W) in ((2, 4, 16, 16), (8, 4, 16, 16)):
        M = int(C * channel_rescale_value)
        key, kp, kx = jax.random.split(key, 3)
        params = make_params(kp, C, M)
        x = jax.random.normal(kx, (B, C, H, W), dtype=jnp.float32)
        out = jax.block_until_ready(jam_forward(x, params))
        ref = jam_reference(x, params)
        max_err = max(max_err, float(jnp.max(jnp.abs(out - ref))))
    if not (max_err < 5e-3):
        raise AssertionError(f"Pallas kernel mismatch vs reference, max abs err = {max_err}")
    print("KERNEL_OK")
</pallas_src>

<mosaic_0001>
module attributes {stable_mosaic.version = 11 : i64} {
  func.func @_jam_kernel(%arg0: i32, %arg1: memref<1x4x256xf32, #tpu.memory_space<vmem>>, %arg2: memref<4x2xf32, #tpu.memory_space<vmem>>, %arg3: memref<1x2xf32, #tpu.memory_space<vmem>>, %arg4: memref<2x4xf32, #tpu.memory_space<vmem>>, %arg5: memref<1x4xf32, #tpu.memory_space<vmem>>, %arg6: memref<98xf32, #tpu.memory_space<smem>>, %arg7: memref<1xf32, #tpu.memory_space<smem>>, %arg8: memref<49x256xf32, #tpu.memory_space<vmem>>, %arg9: memref<4x4xf32, #tpu.memory_space<vmem>>, %arg10: memref<4x4xf32, #tpu.memory_space<vmem>>, %arg11: memref<4x1xf32, #tpu.memory_space<vmem>>, %arg12: memref<1x4x256xf32, #tpu.memory_space<vmem>>) attributes {dimension_semantics = [#tpu.dimension_semantics<parallel>], iteration_bounds = array<i64: 2>, scalar_prefetch = 0 : i64, scratch_operands = 0 : i64, tpu.core_type = #tpu.core_type<tc>, window_params = [{transform_indices = @transform_0, window_bounds = array<i64: 1, 4, 256>}, {pipeline_mode = #tpu.pipeline_mode<synchronous>, transform_indices = @transform_1, window_bounds = array<i64: 4, 2>}, {pipeline_mode = #tpu.pipeline_mode<synchronous>, transform_indices = @transform_2, window_bounds = array<i64: 1, 2>}, {pipeline_mode = #tpu.pipeline_mode<synchronous>, transform_indices = @transform_3, window_bounds = array<i64: 2, 4>}, {pipeline_mode = #tpu.pipeline_mode<synchronous>, transform_indices = @transform_4, window_bounds = array<i64: 1, 4>}, {transform_indices = @transform_5, window_bounds = array<i64: 98>}, {transform_indices = @transform_6, window_bounds = array<i64: 1>}, {pipeline_mode = #tpu.pipeline_mode<synchronous>, transform_indices = @transform_7, window_bounds = array<i64: 49, 256>}, {pipeline_mode = #tpu.pipeline_mode<synchronous>, transform_indices = @transform_8, window_bounds = array<i64: 4, 4>}, {pipeline_mode = #tpu.pipeline_mode<synchronous>, transform_indices = @transform_9, window_bounds = array<i64: 4, 4>}, {pipeline_mode = #tpu.pipeline_mode<synchronous>, transform_indices = @transform_10, window_bounds = array<i64: 4, 1>}, {transform_indices = @transform_11, window_bounds = array<i64: 1, 4, 256>}]} {
    %c0 = arith.constant 0 : index
    %c0_0 = arith.constant 0 : index
    %c0_1 = arith.constant 0 : index
    %0 = vector.load %arg1[%c0, %c0_0, %c0_1] : memref<1x4x256xf32, #tpu.memory_space<vmem>>, vector<1x4x256xf32>
    %cst = arith.constant dense<0.000000e+00> : vector<1x4xf32>
    %1 = vector.multi_reduction <add>, %0, %cst [2] : vector<1x4x256xf32> to vector<1x4xf32>
    %cst_2 = arith.constant 3.906250e-03 : f32
    %2 = vector.broadcast %cst_2 : f32 to vector<1x4xf32>
    %3 = arith.mulf %1, %2 : vector<1x4xf32>
    %cst_3 = arith.constant dense<0xFF800000> : vector<1x4xf32>
    %4 = vector.multi_reduction <maximumf>, %0, %cst_3 [2] : vector<1x4x256xf32> to vector<1x4xf32>
    %5 = arith.addf %3, %4 : vector<1x4xf32>
    %c0_4 = arith.constant 0 : index
    %c0_5 = arith.constant 0 : index
    %6 = vector.load %arg2[%c0_4, %c0_5] : memref<4x2xf32, #tpu.memory_space<vmem>>, vector<4x2xf32>
    %cst_6 = arith.constant dense<0.000000e+00> : vector<1x2xf32>
    %7 = tpu.matmul %5, %6, %cst_6 {dimension_numbers = #tpu.dot_dimension_numbers<[1], [0], [0], [1], [0, 0, 1, 1], [], []>} : vector<1x4xf32>, vector<4x2xf32>, vector<1x2xf32> -> vector<1x2xf32>
    %c0_7 = arith.constant 0 : index
    %c0_8 = arith.constant 0 : index
    %8 = vector.load %arg3[%c0_7, %c0_8] : memref<1x2xf32, #tpu.memory_space<vmem>>, vector<1x2xf32>
    %9 = arith.addf %7, %8 : vector<1x2xf32>
    %c0_9 = arith.constant 0 : index
    %c0_10 = arith.constant 0 : index
    %10 = vector.load %arg4[%c0_9, %c0_10] : memref<2x4xf32, #tpu.memory_space<vmem>>, vector<2x4xf32>
    %cst_11 = arith.constant dense<0.000000e+00> : vector<1x4xf32>
    %11 = tpu.matmul %9, %10, %cst_11 {dimension_numbers = #tpu.dot_dimension_numbers<[1], [0], [0], [1], [0, 0, 1, 1], [], []>} : vector<1x2xf32>, vector<2x4xf32>, vector<1x4xf32> -> vector<1x4xf32>
    %c0_12 = arith.constant 0 : index
    %c0_13 = arith.constant 0 : index
    %12 = vector.load %arg5[%c0_12, %c0_13] : memref<1x4xf32, #tpu.memory_space<vmem>>, vector<1x4xf32>
    %13 = arith.addf %11, %12 : vector<1x4xf32>
    %14 = arith.negf %13 : vector<1x4xf32>
    %15 = math.exp %14 : vector<1x4xf32>
    %cst_14 = arith.constant 1.000000e+00 : f32
    %16 = vector.broadcast %cst_14 : f32 to vector<1x4xf32>
    %17 = arith.addf %16, %15 : vector<1x4xf32>
    %18 = arith.divf %16, %17 : vector<1x4xf32>
    %cst_15 = arith.constant dense<0.000000e+00> : vector<1x256xf32>
    %19 = vector.multi_reduction <add>, %0, %cst_15 [1] : vector<1x4x256xf32> to vector<1x256xf32>
    %cst_16 = arith.constant 2.500000e-01 : f32
    %20 = vector.broadcast %cst_16 : f32 to vector<1x256xf32>
    %21 = arith.mulf %19, %20 : vector<1x256xf32>
    %cst_17 = arith.constant dense<0xFF800000> : vector<1x256xf32>
    %22 = vector.multi_reduction <maximumf>, %0, %cst_17 [1] : vector<1x4x256xf32> to vector<1x256xf32>
    %cst_18 = arith.constant 0.000000e+00 : f32
    %23 = vector.broadcast %cst_18 : f32 to vector<1x256xf32>
    %c0_19 = arith.constant 0 : index
    %24 = memref.load %arg6[%c0_19] : memref<98xf32, #tpu.memory_space<smem>>
    %25 = vector.broadcast %24 : f32 to vector<1x256xf32>
    %26 = arith.mulf %25, %21 : vector<1x256xf32>
    %c49 = arith.constant 49 : index
    %27 = memref.load %arg6[%c49] : memref<98xf32, #tpu.memory_space<smem>>
    %28 = vector.broadcast %27 : f32 to vector<1x256xf32>
    %29 = arith.mulf %28, %22 : vector<1x256xf32>
    %30 = arith.addf %26, %29 : vector<1x256xf32>
    %c51_i32 = arith.constant 51 : i32
    %31 = tpu.dynamic_rotate %30 by %c51_i32 dim 1 : vector<1x256xf32>, i32 -> vector<1x256xf32>
    %c0_20 = arith.constant 0 : index
    %c0_21 = arith.constant 0 : index
    %32 = vector.load %arg8[%c0_20, %c0_21] : memref<49x256xf32, #tpu.memory_space<vmem>>, vector<1x256xf32>
    %33 = arith.mulf %31, %32 : vector<1x256xf32>
    %34 = arith.addf %23, %33 : vector<1x256xf32>
    %c1 = arith.constant 1 : index
    %35 = memref.load %arg6[%c1] : memref<98xf32, #tpu.memory_space<smem>>
    %36 = vector.broadcast %35 : f32 to vector<1x256xf32>
    %37 = arith.mulf %36, %21 : vector<1x256xf32>
    %c50 = arith.constant 50 : index
    %38 = memref.load %arg6[%c50] : memref<98xf32, #tpu.memory_space<smem>>
    %39 = vector.broadcast %38 : f32 to vector<1x256xf32>
    %40 = arith.mulf %39, %22 : vector<1x256xf32>
    %41 = arith.addf %37, %40 : vector<1x256xf32>
    %c50_i32 = arith.constant 50 : i32
    %42 = tpu.dynamic_rotate %41 by %c50_i32 dim 1 : vector<1x256xf32>, i32 -> vector<1x256xf32>
    %c1_22 = arith.constant 1 : index
    %c0_23 = arith.constant 0 : index
    %43 = vector.load %arg8[%c1_22, %c0_23] : memref<49x256xf32, #tpu.memory_space<vmem>>, vector<1x256xf32>
    %44 = arith.mulf %42, %43 : vector<1x256xf32>
    %45 = arith.addf %34, %44 : vector<1x256xf32>
    %c2 = arith.constant 2 : index
    %46 = memref.load %arg6[%c2] : memref<98xf32, #tpu.memory_space<smem>>
    %47 = vector.broadcast %46 : f32 to vector<1x256xf32>
    %48 = arith.mulf %47, %21 : vector<1x256xf32>
    %c51 = arith.constant 51 : index
    %49 = memref.load %arg6[%c51] : memref<98xf32, #tpu.memory_space<smem>>
    %50 = vector.broadcast %49 : f32 to vector<1x256xf32>
    %51 = arith.mulf %50, %22 : vector<1x256xf32>
    %52 = arith.addf %48, %51 : vector<1x256xf32>
    %c49_i32 = arith.constant 49 : i32
    %53 = tpu.dynamic_rotate %52 by %c49_i32 dim 1 : vector<1x256xf32>, i32 -> vector<1x256xf32>
    %c2_24 = arith.constant 2 : index
    %c0_25 = arith.constant 0 : index
    %54 = vector.load %arg8[%c2_24, %c0_25] : memref<49x256xf32, #tpu.memory_space<vmem>>, vector<1x256xf32>
    %55 = arith.mulf %53, %54 : vector<1x256xf32>
    %56 = arith.addf %45, %55 : vector<1x256xf32>
    %c3 = arith.constant 3 : index
    %57 = memref.load %arg6[%c3] : memref<98xf32, #tpu.memory_space<smem>>
    %58 = vector.broadcast %57 : f32 to vector<1x256xf32>
    %59 = arith.mulf %58, %21 : vector<1x256xf32>
    %c52 = arith.constant 52 : index
    %60 = memref.load %arg6[%c52] : memref<98xf32, #tpu.memory_space<smem>>
    %61 = vector.broadcast %60 : f32 to vector<1x256xf32>
    %62 = arith.mulf %61, %22 : vector<1x256xf32>
    %63 = arith.addf %59, %62 : vector<1x256xf32>
    %c48_i32 = arith.constant 48 : i32
    %64 = tpu.dynamic_rotate %63 by %c48_i32 dim 1 : vector<1x256xf32>, i32 -> vector<1x256xf32>
    %c3_26 = arith.constant 3 : index
    %c0_27 = arith.constant 0 : index
    %65 = vector.load %arg8[%c3_26, %c0_27] : memref<49x256xf32, #tpu.memory_space<vmem>>, vector<1x256xf32>
    %66 = arith.mulf %64, %65 : vector<1x256xf32>
    %67 = arith.addf %56, %66 : vector<1x256xf32>
    %c4 = arith.constant 4 : index
    %68 = memref.load %arg6[%c4] : memref<98xf32, #tpu.memory_space<smem>>
    %69 = vector.broadcast %68 : f32 to vector<1x256xf32>
    %70 = arith.mulf %69, %21 : vector<1x256xf32>
    %c53 = arith.constant 53 : index
    %71 = memref.load %arg6[%c53] : memref<98xf32, #tpu.memory_space<smem>>
    %72 = vector.broadcast %71 : f32 to vector<1x256xf32>
    %73 = arith.mulf %72, %22 : vector<1x256xf32>
    %74 = arith.addf %70, %73 : vector<1x256xf32>
    %c47_i32 = arith.constant 47 : i32
    %75 = tpu.dynamic_rotate %74 by %c47_i32 dim 1 : vector<1x256xf32>, i32 -> vector<1x256xf32>
    %c4_28 = arith.constant 4 : index
    %c0_29 = arith.constant 0 : index
    %76 = vector.load %arg8[%c4_28, %c0_29] : memref<49x256xf32, #tpu.memory_space<vmem>>, vector<1x256xf32>
    %77 = arith.mulf %75, %76 : vector<1x256xf32>
    %78 = arith.addf %67, %77 : vector<1x256xf32>
    %c5 = arith.constant 5 : index
    %79 = memref.load %arg6[%c5] : memref<98xf32, #tpu.memory_space<smem>>
    %80 = vector.broadcast %79 : f32 to vector<1x256xf32>
    %81 = arith.mulf %80, %21 : vector<1x256xf32>
    %c54 = arith.constant 54 : index
    %82 = memref.load %arg6[%c54] : memref<98xf32, #tpu.memory_space<smem>>
    %83 = vector.broadcast %82 : f32 to vector<1x256xf32>
    %84 = arith.mulf %83, %22 : vector<1x256xf32>
    %85 = arith.addf %81, %84 : vector<1x256xf32>
    %c46_i32 = arith.constant 46 : i32
    %86 = tpu.dynamic_rotate %85 by %c46_i32 dim 1 : vector<1x256xf32>, i32 -> vector<1x256xf32>
    %c5_30 = arith.constant 5 : index
    %c0_31 = arith.constant 0 : index
    %87 = vector.load %arg8[%c5_30, %c0_31] : memref<49x256xf32, #tpu.memory_space<vmem>>, vector<1x256xf32>
    %88 = arith.mulf %86, %87 : vector<1x256xf32>
    %89 = arith.addf %78, %88 : vector<1x256xf32>
    %c6 = arith.constant 6 : index
    %90 = memref.load %arg6[%c6] : memref<98xf32, #tpu.memory_space<smem>>
    %91 = vector.broadcast %90 : f32 to vector<1x256xf32>
    %92 = arith.mulf %91, %21 : vector<1x256xf32>
    %c55 = arith.constant 55 : index
    %93 = memref.load %arg6[%c55] : memref<98xf32, #tpu.memory_space<smem>>
    %94 = vector.broadcast %93 : f32 to vector<1x256xf32>
    %95 = arith.mulf %94, %22 : vector<1x256xf32>
    %96 = arith.addf %92, %95 : vector<1x256xf32>
    %c45_i32 = arith.constant 45 : i32
    %97 = tpu.dynamic_rotate %96 by %c45_i32 dim 1 : vector<1x256xf32>, i32 -> vector<1x256xf32>
    %c6_32 = arith.constant 6 : index
    %c0_33 = arith.constant 0 : index
    %98 = vector.load %arg8[%c6_32, %c0_33] : memref<49x256xf32, #tpu.memory_space<vmem>>, vector<1x256xf32>
    %99 = arith.mulf %97, %98 : vector<1x256xf32>
    %100 = arith.addf %89, %99 : vector<1x256xf32>
    %c7 = arith.constant 7 : index
    %101 = memref.load %arg6[%c7] : memref<98xf32, #tpu.memory_space<smem>>
    %102 = vector.broadcast %101 : f32 to vector<1x256xf32>
    %103 = arith.mulf %102, %21 : vector<1x256xf32>
    %c56 = arith.constant 56 : index
    %104 = memref.load %arg6[%c56] : memref<98xf32, #tpu.memory_space<smem>>
    %105 = vector.broadcast %104 : f32 to vector<1x256xf32>
    %106 = arith.mulf %105, %22 : vector<1x256xf32>
    %107 = arith.addf %103, %106 : vector<1x256xf32>
    %c35_i32 = arith.constant 35 : i32
    %108 = tpu.dynamic_rotate %107 by %c35_i32 dim 1 : vector<1x256xf32>, i32 -> vector<1x256xf32>
    %c7_34 = arith.constant 7 : index
    %c0_35 = arith.constant 0 : index
    %109 = vector.load %arg8[%c7_34, %c0_35] : memref<49x256xf32, #tpu.memory_space<vmem>>, vector<1x256xf32>
    %110 = arith.mulf %108, %109 : vector<1x256xf32>
    %111 = arith.addf %100, %110 : vector<1x256xf32>
    %c8 = arith.constant 8 : index
    %112 = memref.load %arg6[%c8] : memref<98xf32, #tpu.memory_space<smem>>
    %113 = vector.broadcast %112 : f32 to vector<1x256xf32>
    %114 = arith.mulf %113, %21 : vector<1x256xf32>
    %c57 = arith.constant 57 : index
    %115 = memref.load %arg6[%c57] : memref<98xf32, #tpu.memory_space<smem>>
    %116 = vector.broadcast %115 : f32 to vector<1x256xf32>
    %117 = arith.mulf %116, %22 : vector<1x256xf32>
    %118 = arith.addf %114, %117 : vector<1x256xf32>
    %c34_i32 = arith.constant 34 : i32
    %119 = tpu.dynamic_rotate %118 by %c34_i32 dim 1 : vector<1x256xf32>, i32 -> vector<1x256xf32>
    %c8_36 = arith.constant 8 : index
    %c0_37 = arith.constant 0 : index
    %120 = vector.load %arg8[%c8_36, %c0_37] : memref<49x256xf32, #tpu.memory_space<vmem>>, vector<1x256xf32>
    %121 = arith.mulf %119, %120 : vector<1x256xf32>
    %122 = arith.addf %111, %121 : vector<1x256xf32>
    %c9 = arith.constant 9 : index
    %123 = memref.load %arg6[%c9] : memref<98xf32, #tpu.memory_space<smem>>
    %124 = vector.broadcast %123 : f32 to vector<1x256xf32>
    %125 = arith.mulf %124, %21 : vector<1x256xf32>
    %c58 = arith.constant 58 : index
    %126 = memref.load %arg6[%c58] : memref<98xf32, #tpu.memory_space<smem>>
    %127 = vector.broadcast %126 : f32 to vector<1x256xf32>
    %128 = arith.mulf %127, %22 : vector<1x256xf32>
    %129 = arith.addf %125, %128 : vector<1x256xf32>
    %c33_i32 = arith.constant 33 : i32
    %130 = tpu.dynamic_rotate %129 by %c33_i32 dim 1 : vector<1x256xf32>, i32 -> vector<1x256xf32>
    %c9_38 = arith.constant 9 : index
    %c0_39 = arith.constant 0 : index
    %131 = vector.load %arg8[%c9_38, %c0_39] : memref<49x256xf32, #tpu.memory_space<vmem>>, vector<1x256xf32>
    %132 = arith.mulf %130, %131 : vector<1x256xf32>
    %133 = arith.addf %122, %132 : vector<1x256xf32>
    %c10 = arith.constant 10 : index
    %134 = memref.load %arg6[%c10] : memref<98xf32, #tpu.memory_space<smem>>
    %135 = vector.broadcast %134 : f32 to vector<1x256xf32>
    %136 = arith.mulf %135, %21 : vector<1x256xf32>
    %c59 = arith.constant 59 : index
    %137 = memref.load %arg6[%c59] : memref<98xf32, #tpu.memory_space<smem>>
    %138 = vector.broadcast %137 : f32 to vector<1x256xf32>
    %139 = arith.mulf %138, %22 : vector<1x256xf32>
    %140 = arith.addf %136, %139 : vector<1x256xf32>
    %c32_i32 = arith.constant 32 : i32
    %141 = tpu.dynamic_rotate %140 by %c32_i32 dim 1 : vector<1x256xf32>, i32 -> vector<1x256xf32>
    %c10_40 = arith.constant 10 : index
    %c0_41 = arith.constant 0 : index
    %142 = vector.load %arg8[%c10_40, %c0_41] : memref<49x256xf32, #tpu.memory_space<vmem>>, vector<1x256xf32>
    %143 = arith.mulf %141, %142 : vector<1x256xf32>
    %144 = arith.addf %133, %143 : vector<1x256xf32>
    %c11 = arith.constant 11 : index
    %145 = memref.load %arg6[%c11] : memref<98xf32, #tpu.memory_space<smem>>
    %146 = vector.broadcast %145 : f32 to vector<1x256xf32>
    %147 = arith.mulf %146, %21 : vector<1x256xf32>
    %c60 = arith.constant 60 : index
    %148 = memref.load %arg6[%c60] : memref<98xf32, #tpu.memory_space<smem>>
    %149 = vector.broadcast %148 : f32 to vector<1x256xf32>
    %150 = arith.mulf %149, %22 : vector<1x256xf32>
    %151 = arith.addf %147, %150 : vector<1x256xf32>
    %c31_i32 = arith.constant 31 : i32
    %152 = tpu.dynamic_rotate %151 by %c31_i32 dim 1 : vector<1x256xf32>, i32 -> vector<1x256xf32>
    %c11_42 = arith.constant 11 : index
    %c0_43 = arith.constant 0 : index
    %153 = vector.load %arg8[%c11_42, %c0_43] : memref<49x256xf32, #tpu.memory_space<vmem>>, vector<1x256xf32>
    %154 = arith.mulf %152, %153 : vector<1x256xf32>
    %155 = arith.addf %144, %154 : vector<1x256xf32>
    %c12 = arith.constant 12 : index
    %156 = memref.load %arg6[%c12] : memref<98xf32, #tpu.memory_space<smem>>
    %157 = vector.broadcast %156 : f32 to vector<1x256xf32>
    %158 = arith.mulf %157, %21 : vector<1x256xf32>
    %c61 = arith.constant 61 : index
    %159 = memref.load %arg6[%c61] : memref<98xf32, #tpu.memory_space<smem>>
    %160 = vector.broadcast %159 : f32 to vector<1x256xf32>
    %161 = arith.mulf %160, %22 : vector<1x256xf32>
    %162 = arith.addf %158, %161 : vector<1x256xf32>
    %c30_i32 = arith.constant 30 : i32
    %163 = tpu.dynamic_rotate %162 by %c30_i32 dim 1 : vector<1x256xf32>, i32 -> vector<1x256xf32>
    %c12_44 = arith.constant 12 : index
    %c0_45 = arith.constant 0 : index
    %164 = vector.load %arg8[%c12_44, %c0_45] : memref<49x256xf32, #tpu.memory_space<vmem>>, vector<1x256xf32>
    %165 = arith.mulf %163, %164 : vector<1x256xf32>
    %166 = arith.addf %155, %165 : vector<1x256xf32>
    %c13 = arith.constant 13 : index
    %167 = memref.load %arg6[%c13] : memref<98xf32, #tpu.memory_space<smem>>
    %168 = vector.broadcast %167 : f32 to vector<1x256xf32>
    %169 = arith.mulf %168, %21 : vector<1x256xf32>
    %c62 = arith.constant 62 : index
    %170 = memref.load %arg6[%c62] : memref<98xf32, #tpu.memory_space<smem>>
    %171 = vector.broadcast %170 : f32 to vector<1x256xf32>
    %172 = arith.mulf %171, %22 : vector<1x256xf32>
    %173 = arith.addf %169, %172 : vector<1x256xf32>
    %c29_i32 = arith.constant 29 : i32
    %174 = tpu.dynamic_rotate %173 by %c29_i32 dim 1 : vector<1x256xf32>, i32 -> vector<1x256xf32>
    %c13_46 = arith.constant 13 : index
    %c0_47 = arith.constant 0 : index
    %175 = vector.load %arg8[%c13_46, %c0_47] : memref<49x256xf32, #tpu.memory_space<vmem>>, vector<1x256xf32>
    %176 = arith.mulf %174, %175 : vector<1x256xf32>
    %177 = arith.addf %166, %176 : vector<1x256xf32>
    %c14 = arith.constant 14 : index
    %178 = memref.load %arg6[%c14] : memref<98xf32, #tpu.memory_space<smem>>
    %179 = vector.broadcast %178 : f32 to vector<1x256xf32>
    %180 = arith.mulf %179, %21 : vector<1x256xf32>
    %c63 = arith.constant 63 : index
    %181 = memref.load %arg6[%c63] : memref<98xf32, #tpu.memory_space<smem>>
    %182 = vector.broadcast %181 : f32 to vector<1x256xf32>
    %183 = arith.mulf %182, %22 : vector<1x256xf32>
    %184 = arith.addf %180, %183 : vector<1x256xf32>
    %c19_i32 = arith.constant 19 : i32
    %185 = tpu.dynamic_rotate %184 by %c19_i32 dim 1 : vector<1x256xf32>, i32 -> vector<1x256xf32>
    %c14_48 = arith.constant 14 : index
    %c0_49 = arith.constant 0 : index
    %186 = vector.load %arg8[%c14_48, %c0_49] : memref<49x256xf32, #tpu.memory_space<vmem>>, vector<1x256xf32>
    %187 = arith.mulf %185, %186 : vector<1x256xf32>
    %188 = arith.addf %177, %187 : vector<1x256xf32>
    %c15 = arith.constant 15 : index
    %189 = memref.load %arg6[%c15] : memref<98xf32, #tpu.memory_space<smem>>
    %190 = vector.broadcast %189 : f32 to vector<1x256xf32>
    %191 = arith.mulf %190, %21 : vector<1x256xf32>
    %c64 = arith.constant 64 : index
    %192 = memref.load %arg6[%c64] : memref<98xf32, #tpu.memory_space<smem>>
    %193 = vector.broadcast %192 : f32 to vector<1x256xf32>
    %194 = arith.mulf %193, %22 : vector<1x256xf32>
    %195 = arith.addf %191, %194 : vector<1x256xf32>
    %c18_i32 = arith.constant 18 : i32
    %196 = tpu.dynamic_rotate %195 by %c18_i32 dim 1 : vector<1x256xf32>, i32 -> vector<1x256xf32>
    %c15_50 = arith.constant 15 : index
    %c0_51 = arith.constant 0 : index
    %197 = vector.load %arg8[%c15_50, %c0_51] : memref<49x256xf32, #tpu.memory_space<vmem>>, vector<1x256xf32>
    %198 = arith.mulf %196, %197 : vector<1x256xf32>
    %199 = arith.addf %188, %198 : vector<1x256xf32>
    %c16 = arith.constant 16 : index
    %200 = memref.load %arg6[%c16] : memref<98xf32, #tpu.memory_space<smem>>
    %201 = vector.broadcast %200 : f32 to vector<1x256xf32>
    %202 = arith.mulf %201, %21 : vector<1x256xf32>
    %c65 = arith.constant 65 : index
    %203 = memref.load %arg6[%c65] : memref<98xf32, #tpu.memory_space<smem>>
    %204 = vector.broadcast %203 : f32 to vector<1x256xf32>
    %205 = arith.mulf %204, %22 : vector<1x256xf32>
    %206 = arith.addf %202, %205 : vector<1x256xf32>
    %c17_i32 = arith.constant 17 : i32
    %207 = tpu.dynamic_rotate %206 by %c17_i32 dim 1 : vector<1x256xf32>, i32 -> vector<1x256xf32>
    %c16_52 = arith.constant 16 : index
    %c0_53 = arith.constant 0 : index
    %208 = vector.load %arg8[%c16_52, %c0_53] : memref<49x256xf32, #tpu.memory_space<vmem>>, vector<1x256xf32>
    %209 = arith.mulf %207, %208 : vector<1x256xf32>
    %210 = arith.addf %199, %209 : vector<1x256xf32>
    %c17 = arith.constant 17 : index
    %211 = memref.load %arg6[%c17] : memref<98xf32, #tpu.memory_space<smem>>
    %212 = vector.broadcast %211 : f32 to vector<1x256xf32>
    %213 = arith.mulf %212, %21 : vector<1x256xf32>
    %c66 = arith.constant 66 : index
    %214 = memref.load %arg6[%c66] : memref<98xf32, #tpu.memory_space<smem>>
    %215 = vector.broadcast %214 : f32 to vector<1x256xf32>
    %216 = arith.mulf %215, %22 : vector<1x256xf32>
    %217 = arith.addf %213, %216 : vector<1x256xf32>
    %c16_i32 = arith.constant 16 : i32
    %218 = tpu.dynamic_rotate %217 by %c16_i32 dim 1 : vector<1x256xf32>, i32 -> vector<1x256xf32>
    %c17_54 = arith.constant 17 : index
    %c0_55 = arith.constant 0 : index
    %219 = vector.load %arg8[%c17_54, %c0_55] : memref<49x256xf32, #tpu.memory_space<vmem>>, vector<1x256xf32>
    %220 = arith.mulf %218, %219 : vector<1x256xf32>
    %221 = arith.addf %210, %220 : vector<1x256xf32>
    %c18 = arith.constant 18 : index
    %222 = memref.load %arg6[%c18] : memref<98xf32, #tpu.memory_space<smem>>
    %223 = vector.broadcast %222 : f32 to vector<1x256xf32>
    %224 = arith.mulf %223, %21 : vector<1x256xf32>
    %c67 = arith.constant 67 : index
    %225 = memref.load %arg6[%c67] : memref<98xf32, #tpu.memory_space<smem>>
    %226 = vector.broadcast %225 : f32 to vector<1x256xf32>
    %227 = arith.mulf %226, %22 : vector<1x256xf32>
    %228 = arith.addf %224, %227 : vector<1x256xf32>
    %c15_i32 = arith.constant 15 : i32
    %229 = tpu.dynamic_rotate %228 by %c15_i32 dim 1 : vector<1x256xf32>, i32 -> vector<1x256xf32>
    %c18_56 = arith.constant 18 : index
    %c0_57 = arith.constant 0 : index
    %230 = vector.load %arg8[%c18_56, %c0_57] : memref<49x256xf32, #tpu.memory_space<vmem>>, vector<1x256xf32>
    %231 = arith.mulf %229, %230 : vector<1x256xf32>
    %232 = arith.addf %221, %231 : vector<1x256xf32>
    %c19 = arith.constant 19 : index
    %233 = memref.load %arg6[%c19] : memref<98xf32, #tpu.memory_space<smem>>
    %234 = vector.broadcast %233 : f32 to vector<1x256xf32>
    %235 = arith.mulf %234, %21 : vector<1x256xf32>
    %c68 = arith.constant 68 : index
    %236 = memref.load %arg6[%c68] : memref<98xf32, #tpu.memory_space<smem>>
    %237 = vector.broadcast %236 : f32 to vector<1x256xf32>
    %238 = arith.mulf %237, %22 : vector<1x256xf32>
    %239 = arith.addf %235, %238 : vector<1x256xf32>
    %c14_i32 = arith.constant 14 : i32
    %240 = tpu.dynamic_rotate %239 by %c14_i32 dim 1 : vector<1x256xf32>, i32 -> vector<1x256xf32>
    %c19_58 = arith.constant 19 : index
    %c0_59 = arith.constant 0 : index
    %241 = vector.load %arg8[%c19_58, %c0_59] : memref<49x256xf32, #tpu.memory_space<vmem>>, vector<1x256xf32>
    %242 = arith.mulf %240, %241 : vector<1x256xf32>
    %243 = arith.addf %232, %242 : vector<1x256xf32>
    %c20 = arith.constant 20 : index
    %244 = memref.load %arg6[%c20] : memref<98xf32, #tpu.memory_space<smem>>
    %245 = vector.broadcast %244 : f32 to vector<1x256xf32>
    %246 = arith.mulf %245, %21 : vector<1x256xf32>
    %c69 = arith.constant 69 : index
    %247 = memref.load %arg6[%c69] : memref<98xf32, #tpu.memory_space<smem>>
    %248 = vector.broadcast %247 : f32 to vector<1x256xf32>
    %249 = arith.mulf %248, %22 : vector<1x256xf32>
    %250 = arith.addf %246, %249 : vector<1x256xf32>
    %c13_i32 = arith.constant 13 : i32
    %251 = tpu.dynamic_rotate %250 by %c13_i32 dim 1 : vector<1x256xf32>, i32 -> vector<1x256xf32>
    %c20_60 = arith.constant 20 : index
    %c0_61 = arith.constant 0 : index
    %252 = vector.load %arg8[%c20_60, %c0_61] : memref<49x256xf32, #tpu.memory_space<vmem>>, vector<1x256xf32>
    %253 = arith.mulf %251, %252 : vector<1x256xf32>
    %254 = arith.addf %243, %253 : vector<1x256xf32>
    %c21 = arith.constant 21 : index
    %255 = memref.load %arg6[%c21] : memref<98xf32, #tpu.memory_space<smem>>
    %256 = vector.broadcast %255 : f32 to vector<1x256xf32>
    %257 = arith.mulf %256, %21 : vector<1x256xf32>
    %c70 = arith.constant 70 : index
    %258 = memref.load %arg6[%c70] : memref<98xf32, #tpu.memory_space<smem>>
    %259 = vector.broadcast %258 : f32 to vector<1x256xf32>
    %260 = arith.mulf %259, %22 : vector<1x256xf32>
    %261 = arith.addf %257, %260 : vector<1x256xf32>
    %c3_i32 = arith.constant 3 : i32
    %262 = tpu.dynamic_rotate %261 by %c3_i32 dim 1 : vector<1x256xf32>, i32 -> vector<1x256xf32>
    %c21_62 = arith.constant 21 : index
    %c0_63 = arith.constant 0 : index
    %263 = vector.load %arg8[%c21_62, %c0_63] : memref<49x256xf32, #tpu.memory_space<vmem>>, vector<1x256xf32>
    %264 = arith.mulf %262, %263 : vector<1x256xf32>
    %265 = arith.addf %254, %264 : vector<1x256xf32>
    %c22 = arith.constant 22 : index
    %266 = memref.load %arg6[%c22] : memref<98xf32, #tpu.memory_space<smem>>
    %267 = vector.broadcast %266 : f32 to vector<1x256xf32>
    %268 = arith.mulf %267, %21 : vector<1x256xf32>
    %c71 = arith.constant 71 : index
    %269 = memref.load %arg6[%c71] : memref<98xf32, #tpu.memory_space<smem>>
    %270 = vector.broadcast %269 : f32 to vector<1x256xf32>
    %271 = arith.mulf %270, %22 : vector<1x256xf32>
    %272 = arith.addf %268, %271 : vector<1x256xf32>
    %c2_i32 = arith.constant 2 : i32
    %273 = tpu.dynamic_rotate %272 by %c2_i32 dim 1 : vector<1x256xf32>, i32 -> vector<1x256xf32>
    %c22_64 = arith.constant 22 : index
    %c0_65 = arith.constant 0 : index
    %274 = vector.load %arg8[%c22_64, %c0_65] : memref<49x256xf32, #tpu.memory_space<vmem>>, vector<1x256xf32>
    %275 = arith.mulf %273, %274 : vector<1x256xf32>
    %276 = arith.addf %265, %275 : vector<1x256xf32>
    %c23 = arith.constant 23 : index
    %277 = memref.load %arg6[%c23] : memref<98xf32, #tpu.memory_space<smem>>
    %278 = vector.broadcast %277 : f32 to vector<1x256xf32>
    %279 = arith.mulf %278, %21 : vector<1x256xf32>
    %c72 = arith.constant 72 : index
    %280 = memref.load %arg6[%c72] : memref<98xf32, #tpu.memory_space<smem>>
    %281 = vector.broadcast %280 : f32 to vector<1x256xf32>
    %282 = arith.mulf %281, %22 : vector<1x256xf32>
    %283 = arith.addf %279, %282 : vector<1x256xf32>
    %c1_i32 = arith.constant 1 : i32
    %284 = tpu.dynamic_rotate %283 by %c1_i32 dim 1 : vector<1x256xf32>, i32 -> vector<1x256xf32>
    %c23_66 = arith.constant 23 : index
    %c0_67 = arith.constant 0 : index
    %285 = vector.load %arg8[%c23_66, %c0_67] : memref<49x256xf32, #tpu.memory_space<vmem>>, vector<1x256xf32>
    %286 = arith.mulf %284, %285 : vector<1x256xf32>
    %287 = arith.addf %276, %286 : vector<1x256xf32>
    %c24 = arith.constant 24 : index
    %288 = memref.load %arg6[%c24] : memref<98xf32, #tpu.memory_space<smem>>
    %289 = vector.broadcast %288 : f32 to vector<1x256xf32>
    %290 = arith.mulf %289, %21 : vector<1x256xf32>
    %c73 = arith.constant 73 : index
    %291 = memref.load %arg6[%c73] : memref<98xf32, #tpu.memory_space<smem>>
    %292 = vector.broadcast %291 : f32 to vector<1x256xf32>
    %293 = arith.mulf %292, %22 : vector<1x256xf32>
    %294 = arith.addf %290, %293 : vector<1x256xf32>
    %295 = arith.addf %287, %294 : vector<1x256xf32>
    %c25 = arith.constant 25 : index
    %296 = memref.load %arg6[%c25] : memref<98xf32, #tpu.memory_space<smem>>
    %297 = vector.broadcast %296 : f32 to vector<1x256xf32>
    %298 = arith.mulf %297, %21 : vector<1x256xf32>
    %c74 = arith.constant 74 : index
    %299 = memref.load %arg6[%c74] : memref<98xf32, #tpu.memory_space<smem>>
    %300 = vector.broadcast %299 : f32 to vector<1x256xf32>
    %301 = arith.mulf %300, %22 : vector<1x256xf32>
    %302 = arith.addf %298, %301 : vector<1x256xf32>
    %c255_i32 = arith.constant 255 : i32
    %303 = tpu.dynamic_rotate %302 by %c255_i32 dim 1 : vector<1x256xf32>, i32 -> vector<1x256xf32>
    %c25_68 = arith.constant 25 : index
    %c0_69 = arith.constant 0 : index
    %304 = vector.load %arg8[%c25_68, %c0_69] : memref<49x256xf32, #tpu.memory_space<vmem>>, vector<1x256xf32>
    %305 = arith.mulf %303, %304 : vector<1x256xf32>
    %306 = arith.addf %295, %305 : vector<1x256xf32>
    %c26 = arith.constant 26 : index
    %307 = memref.load %arg6[%c26] : memref<98xf32, #tpu.memory_space<smem>>
    %308 = vector.broadcast %307 : f32 to vector<1x256xf32>
    %309 = arith.mulf %308, %21 : vector<1x256xf32>
    %c75 = arith.constant 75 : index
    %310 = memref.load %arg6[%c75] : memref<98xf32, #tpu.memory_space<smem>>
    %311 = vector.broadcast %310 : f32 to vector<1x256xf32>
    %312 = arith.mulf %311, %22 : vector<1x256xf32>
    %313 = arith.addf %309, %312 : vector<1x256xf32>
    %c254_i32 = arith.constant 254 : i32
    %314 = tpu.dynamic_rotate %313 by %c254_i32 dim 1 : vector<1x256xf32>, i32 -> vector<1x256xf32>
    %c26_70 = arith.constant 26 : index
    %c0_71 = arith.constant 0 : index
    %315 = vector.load %arg8[%c26_70, %c0_71] : memref<49x256xf32, #tpu.memory_space<vmem>>, vector<1x256xf32>
    %316 = arith.mulf %314, %315 : vector<1x256xf32>
    %317 = arith.addf %306, %316 : vector<1x256xf32>
    %c27 = arith.constant 27 : index
    %318 = memref.load %arg6[%c27] : memref<98xf32, #tpu.memory_space<smem>>
    %319 = vector.broadcast %318 : f32 to vector<1x256xf32>
    %320 = arith.mulf %319, %21 : vector<1x256xf32>
    %c76 = arith.constant 76 : index
    %321 = memref.load %arg6[%c76] : memref<98xf32, #tpu.memory_space<smem>>
    %322 = vector.broadcast %321 : f32 to vector<1x256xf32>
    %323 = arith.mulf %322, %22 : vector<1x256xf32>
    %324 = arith.addf %320, %323 : vector<1x256xf32>
    %c253_i32 = arith.constant 253 : i32
    %325 = tpu.dynamic_rotate %324 by %c253_i32 dim 1 : vector<1x256xf32>, i32 -> vector<1x256xf32>
    %c27_72 = arith.constant 27 : index
    %c0_73 = arith.constant 0 : index
    %326 = vector.load %arg8[%c27_72, %c0_73] : memref<49x256xf32, #tpu.memory_space<vmem>>, vector<1x256xf32>
    %327 = arith.mulf %325, %326 : vector<1x256xf32>
    %328 = arith.addf %317, %327 : vector<1x256xf32>
    %c28 = arith.constant 28 : index
    %329 = memref.load %arg6[%c28] : memref<98xf32, #tpu.memory_space<smem>>
    %330 = vector.broadcast %329 : f32 to vector<1x256xf32>
    %331 = arith.mulf %330, %21 : vector<1x256xf32>
    %c77 = arith.constant 77 : index
    %332 = memref.load %arg6[%c77] : memref<98xf32, #tpu.memory_space<smem>>
    %333 = vector.broadcast %332 : f32 to vector<1x256xf32>
    %334 = arith.mulf %333, %22 : vector<1x256xf32>
    %335 = arith.addf %331, %334 : vector<1x256xf32>
    %c243_i32 = arith.constant 243 : i32
    %336 = tpu.dynamic_rotate %335 by %c243_i32 dim 1 : vector<1x256xf32>, i32 -> vector<1x256xf32>
    %c28_74 = arith.constant 28 : index
    %c0_75 = arith.constant 0 : index
    %337 = vector.load %arg8[%c28_74, %c0_75] : memref<49x256xf32, #tpu.memory_space<vmem>>, vector<1x256xf32>
    %338 = arith.mulf %336, %337 : vector<1x256xf32>
    %339 = arith.addf %328, %338 : vector<1x256xf32>
    %c29 = arith.constant 29 : index
    %340 = memref.load %arg6[%c29] : memref<98xf32, #tpu.memory_space<smem>>
    %341 = vector.broadcast %340 : f32 to vector<1x256xf32>
    %342 = arith.mulf %341, %21 : vector<1x256xf32>
    %c78 = arith.constant 78 : index
    %343 = memref.load %arg6[%c78] : memref<98xf32, #tpu.memory_space<smem>>
    %344 = vector.broadcast %343 : f32 to vector<1x256xf32>
    %345 = arith.mulf %344, %22 : vector<1x256xf32>
    %346 = arith.addf %342, %345 : vector<1x256xf32>
    %c242_i32 = arith.constant 242 : i32
    %347 = tpu.dynamic_rotate %346 by %c242_i32 dim 1 : vector<1x256xf32>, i32 -> vector<1x256xf32>
    %c29_76 = arith.constant 29 : index
    %c0_77 = arith.constant 0 : index
    %348 = vector.load %arg8[%c29_76, %c0_77] : memref<49x256xf32, #tpu.memory_space<vmem>>, vector<1x256xf32>
    %349 = arith.mulf %347, %348 : vector<1x256xf32>
    %350 = arith.addf %339, %349 : vector<1x256xf32>
    %c30 = arith.constant 30 : index
    %351 = memref.load %arg6[%c30] : memref<98xf32, #tpu.memory_space<smem>>
    %352 = vector.broadcast %351 : f32 to vector<1x256xf32>
    %353 = arith.mulf %352, %21 : vector<1x256xf32>
    %c79 = arith.constant 79 : index
    %354 = memref.load %arg6[%c79] : memref<98xf32, #tpu.memory_space<smem>>
    %355 = vector.broadcast %354 : f32 to vector<1x256xf32>
    %356 = arith.mulf %355, %22 : vector<1x256xf32>
    %357 = arith.addf %353, %356 : vector<1x256xf32>
    %c241_i32 = arith.constant 241 : i32
    %358 = tpu.dynamic_rotate %357 by %c241_i32 dim 1 : vector<1x256xf32>, i32 -> vector<1x256xf32>
    %c30_78 = arith.constant 30 : index
    %c0_79 = arith.constant 0 : index
    %359 = vector.load %arg8[%c30_78, %c0_79] : memref<49x256xf32, #tpu.memory_space<vmem>>, vector<1x256xf32>
    %360 = arith.mulf %358, %359 : vector<1x256xf32>
    %361 = arith.addf %350, %360 : vector<1x256xf32>
    %c31 = arith.constant 31 : index
    %362 = memref.load %arg6[%c31] : memref<98xf32, #tpu.memory_space<smem>>
    %363 = vector.broadcast %362 : f32 to vector<1x256xf32>
    %364 = arith.mulf %363, %21 : vector<1x256xf32>
    %c80 = arith.constant 80 : index
    %365 = memref.load %arg6[%c80] : memref<98xf32, #tpu.memory_space<smem>>
    %366 = vector.broadcast %365 : f32 to vector<1x256xf32>
    %367 = arith.mulf %366, %22 : vector<1x256xf32>
    %368 = arith.addf %364, %367 : vector<1x256xf32>
    %c240_i32 = arith.constant 240 : i32
    %369 = tpu.dynamic_rotate %368 by %c240_i32 dim 1 : vector<1x256xf32>, i32 -> vector<1x256xf32>
    %c31_80 = arith.constant 31 : index
    %c0_81 = arith.constant 0 : index
    %370 = vector.load %arg8[%c31_80, %c0_81] : memref<49x256xf32, #tpu.memory_space<vmem>>, vector<1x256xf32>
    %371 = arith.mulf %369, %370 : vector<1x256xf32>
    %372 = arith.addf %361, %371 : vector<1x256xf32>
    %c32 = arith.constant 32 : index
    %373 = memref.load %arg6[%c32] : memref<98xf32, #tpu.memory_space<smem>>
    %374 = vector.broadcast %373 : f32 to vector<1x256xf32>
    %375 = arith.mulf %374, %21 : vector<1x256xf32>
    %c81 = arith.constant 81 : index
    %376 = memref.load %arg6[%c81] : memref<98xf32, #tpu.memory_space<smem>>
    %377 = vector.broadcast %376 : f32 to vector<1x256xf32>
    %378 = arith.mulf %377, %22 : vector<1x256xf32>
    %379 = arith.addf %375, %378 : vector<1x256xf32>
    %c239_i32 = arith.constant 239 : i32
    %380 = tpu.dynamic_rotate %379 by %c239_i32 dim 1 : vector<1x256xf32>, i32 -> vector<1x256xf32>
    %c32_82 = arith.constant 32 : index
    %c0_83 = arith.constant 0 : index
    %381 = vector.load %arg8[%c32_82, %c0_83] : memref<49x256xf32, #tpu.memory_space<vmem>>, vector<1x256xf32>
    %382 = arith.mulf %380, %381 : vector<1x256xf32>
    %383 = arith.addf %372, %382 : vector<1x256xf32>
    %c33 = arith.constant 33 : index
    %384 = memref.load %arg6[%c33] : memref<98xf32, #tpu.memory_space<smem>>
    %385 = vector.broadcast %384 : f32 to vector<1x256xf32>
    %386 = arith.mulf %385, %21 : vector<1x256xf32>
    %c82 = arith.constant 82 : index
    %387 = memref.load %arg6[%c82] : memref<98xf32, #tpu.memory_space<smem>>
    %388 = vector.broadcast %387 : f32 to vector<1x256xf32>
    %389 = arith.mulf %388, %22 : vector<1x256xf32>
    %390 = arith.addf %386, %389 : vector<1x256xf32>
    %c238_i32 = arith.constant 238 : i32
    %391 = tpu.dynamic_rotate %390 by %c238_i32 dim 1 : vector<1x256xf32>, i32 -> vector<1x256xf32>
    %c33_84 = arith.constant 33 : index
    %c0_85 = arith.constant 0 : index
    %392 = vector.load %arg8[%c33_84, %c0_85] : memref<49x256xf32, #tpu.memory_space<vmem>>, vector<1x256xf32>
    %393 = arith.mulf %391, %392 : vector<1x256xf32>
    %394 = arith.addf %383, %393 : vector<1x256xf32>
    %c34 = arith.constant 34 : index
    %395 = memref.load %arg6[%c34] : memref<98xf32, #tpu.memory_space<smem>>
    %396 = vector.broadcast %395 : f32 to vector<1x256xf32>
    %397 = arith.mulf %396, %21 : vector<1x256xf32>
    %c83 = arith.constant 83 : index
    %398 = memref.load %arg6[%c83] : memref<98xf32, #tpu.memory_space<smem>>
    %399 = vector.broadcast %398 : f32 to vector<1x256xf32>
    %400 = arith.mulf %399, %22 : vector<1x256xf32>
    %401 = arith.addf %397, %400 : vector<1x256xf32>
    %c237_i32 = arith.constant 237 : i32
    %402 = tpu.dynamic_rotate %401 by %c237_i32 dim 1 : vector<1x256xf32>, i32 -> vector<1x256xf32>
    %c34_86 = arith.constant 34 : index
    %c0_87 = arith.constant 0 : index
    %403 = vector.load %arg8[%c34_86, %c0_87] : memref<49x256xf32, #tpu.memory_space<vmem>>, vector<1x256xf32>
    %404 = arith.mulf %402, %403 : vector<1x256xf32>
    %405 = arith.addf %394, %404 : vector<1x256xf32>
    %c35 = arith.constant 35 : index
    %406 = memref.load %arg6[%c35] : memref<98xf32, #tpu.memory_space<smem>>
    %407 = vector.broadcast %406 : f32 to vector<1x256xf32>
    %408 = arith.mulf %407, %21 : vector<1x256xf32>
    %c84 = arith.constant 84 : index
    %409 = memref.load %arg6[%c84] : memref<98xf32, #tpu.memory_space<smem>>
    %410 = vector.broadcast %409 : f32 to vector<1x256xf32>
    %411 = arith.mulf %410, %22 : vector<1x256xf32>
    %412 = arith.addf %408, %411 : vector<1x256xf32>
    %c227_i32 = arith.constant 227 : i32
    %413 = tpu.dynamic_rotate %412 by %c227_i32 dim 1 : vector<1x256xf32>, i32 -> vector<1x256xf32>
    %c35_88 = arith.constant 35 : index
    %c0_89 = arith.constant 0 : index
    %414 = vector.load %arg8[%c35_88, %c0_89] : memref<49x256xf32, #tpu.memory_space<vmem>>, vector<1x256xf32>
    %415 = arith.mulf %413, %414 : vector<1x256xf32>
    %416 = arith.addf %405, %415 : vector<1x256xf32>
    %c36 = arith.constant 36 : index
    %417 = memref.load %arg6[%c36] : memref<98xf32, #tpu.memory_space<smem>>
    %418 = vector.broadcast %417 : f32 to vector<1x256xf32>
    %419 = arith.mulf %418, %21 : vector<1x256xf32>
    %c85 = arith.constant 85 : index
    %420 = memref.load %arg6[%c85] : memref<98xf32, #tpu.memory_space<smem>>
    %421 = vector.broadcast %420 : f32 to vector<1x256xf32>
    %422 = arith.mulf %421, %22 : vector<1x256xf32>
    %423 = arith.addf %419, %422 : vector<1x256xf32>
    %c226_i32 = arith.constant 226 : i32
    %424 = tpu.dynamic_rotate %423 by %c226_i32 dim 1 : vector<1x256xf32>, i32 -> vector<1x256xf32>
    %c36_90 = arith.constant 36 : index
    %c0_91 = arith.constant 0 : index
    %425 = vector.load %arg8[%c36_90, %c0_91] : memref<49x256xf32, #tpu.memory_space<vmem>>, vector<1x256xf32>
    %426 = arith.mulf %424, %425 : vector<1x256xf32>
    %427 = arith.addf %416, %426 : vector<1x256xf32>
    %c37 = arith.constant 37 : index
    %428 = memref.load %arg6[%c37] : memref<98xf32, #tpu.memory_space<smem>>
    %429 = vector.broadcast %428 : f32 to vector<1x256xf32>
    %430 = arith.mulf %429, %21 : vector<1x256xf32>
    %c86 = arith.constant 86 : index
    %431 = memref.load %arg6[%c86] : memref<98xf32, #tpu.memory_space<smem>>
    %432 = vector.broadcast %431 : f32 to vector<1x256xf32>
    %433 = arith.mulf %432, %22 : vector<1x256xf32>
    %434 = arith.addf %430, %433 : vector<1x256xf32>
    %c225_i32 = arith.constant 225 : i32
    %435 = tpu.dynamic_rotate %434 by %c225_i32 dim 1 : vector<1x256xf32>, i32 -> vector<1x256xf32>
    %c37_92 = arith.constant 37 : index
    %c0_93 = arith.constant 0 : index
    %436 = vector.load %arg8[%c37_92, %c0_93] : memref<49x256xf32, #tpu.memory_space<vmem>>, vector<1x256xf32>
    %437 = arith.mulf %435, %436 : vector<1x256xf32>
    %438 = arith.addf %427, %437 : vector<1x256xf32>
    %c38 = arith.constant 38 : index
    %439 = memref.load %arg6[%c38] : memref<98xf32, #tpu.memory_space<smem>>
    %440 = vector.broadcast %439 : f32 to vector<1x256xf32>
    %441 = arith.mulf %440, %21 : vector<1x256xf32>
    %c87 = arith.constant 87 : index
    %442 = memref.load %arg6[%c87] : memref<98xf32, #tpu.memory_space<smem>>
    %443 = vector.broadcast %442 : f32 to vector<1x256xf32>
    %444 = arith.mulf %443, %22 : vector<1x256xf32>
    %445 = arith.addf %441, %444 : vector<1x256xf32>
    %c224_i32 = arith.constant 224 : i32
    %446 = tpu.dynamic_rotate %445 by %c224_i32 dim 1 : vector<1x256xf32>, i32 -> vector<1x256xf32>
    %c38_94 = arith.constant 38 : index
    %c0_95 = arith.constant 0 : index
    %447 = vector.load %arg8[%c38_94, %c0_95] : memref<49x256xf32, #tpu.memory_space<vmem>>, vector<1x256xf32>
    %448 = arith.mulf %446, %447 : vector<1x256xf32>
    %449 = arith.addf %438, %448 : vector<1x256xf32>
    %c39 = arith.constant 39 : index
    %450 = memref.load %arg6[%c39] : memref<98xf32, #tpu.memory_space<smem>>
    %451 = vector.broadcast %450 : f32 to vector<1x256xf32>
    %452 = arith.mulf %451, %21 : vector<1x256xf32>
    %c88 = arith.constant 88 : index
    %453 = memref.load %arg6[%c88] : memref<98xf32, #tpu.memory_space<smem>>
    %454 = vector.broadcast %453 : f32 to vector<1x256xf32>
    %455 = arith.mulf %454, %22 : vector<1x256xf32>
    %456 = arith.addf %452, %455 : vector<1x256xf32>
    %c223_i32 = arith.constant 223 : i32
    %457 = tpu.dynamic_rotate %456 by %c223_i32 dim 1 : vector<1x256xf32>, i32 -> vector<1x256xf32>
    %c39_96 = arith.constant 39 : index
    %c0_97 = arith.constant 0 : index
    %458 = vector.load %arg8[%c39_96, %c0_97] : memref<49x256xf32, #tpu.memory_space<vmem>>, vector<1x256xf32>
    %459 = arith.mulf %457, %458 : vector<1x256xf32>
    %460 = arith.addf %449, %459 : vector<1x256xf32>
    %c40 = arith.constant 40 : index
    %461 = memref.load %arg6[%c40] : memref<98xf32, #tpu.memory_space<smem>>
    %462 = vector.broadcast %461 : f32 to vector<1x256xf32>
    %463 = arith.mulf %462, %21 : vector<1x256xf32>
    %c89 = arith.constant 89 : index
    %464 = memref.load %arg6[%c89] : memref<98xf32, #tpu.memory_space<smem>>
    %465 = vector.broadcast %464 : f32 to vector<1x256xf32>
    %466 = arith.mulf %465, %22 : vector<1x256xf32>
    %467 = arith.addf %463, %466 : vector<1x256xf32>
    %c222_i32 = arith.constant 222 : i32
    %468 = tpu.dynamic_rotate %467 by %c222_i32 dim 1 : vector<1x256xf32>, i32 -> vector<1x256xf32>
    %c40_98 = arith.constant 40 : index
    %c0_99 = arith.constant 0 : index
    %469 = vector.load %arg8[%c40_98, %c0_99] : memref<49x256xf32, #tpu.memory_space<vmem>>, vector<1x256xf32>
    %470 = arith.mulf %468, %469 : vector<1x256xf32>
    %471 = arith.addf %460, %470 : vector<1x256xf32>
    %c41 = arith.constant 41 : index
    %472 = memref.load %arg6[%c41] : memref<98xf32, #tpu.memory_space<smem>>
    %473 = vector.broadcast %472 : f32 to vector<1x256xf32>
    %474 = arith.mulf %473, %21 : vector<1x256xf32>
    %c90 = arith.constant 90 : index
    %475 = memref.load %arg6[%c90] : memref<98xf32, #tpu.memory_space<smem>>
    %476 = vector.broadcast %475 : f32 to vector<1x256xf32>
    %477 = arith.mulf %476, %22 : vector<1x256xf32>
    %478 = arith.addf %474, %477 : vector<1x256xf32>
    %c221_i32 = arith.constant 221 : i32
    %479 = tpu.dynamic_rotate %478 by %c221_i32 dim 1 : vector<1x256xf32>, i32 -> vector<1x256xf32>
    %c41_100 = arith.constant 41 : index
    %c0_101 = arith.constant 0 : index
    %480 = vector.load %arg8[%c41_100, %c0_101] : memref<49x256xf32, #tpu.memory_space<vmem>>, vector<1x256xf32>
    %481 = arith.mulf %479, %480 : vector<1x256xf32>
    %482 = arith.addf %471, %481 : vector<1x256xf32>
    %c42 = arith.constant 42 : index
    %483 = memref.load %arg6[%c42] : memref<98xf32, #tpu.memory_space<smem>>
    %484 = vector.broadcast %483 : f32 to vector<1x256xf32>
    %485 = arith.mulf %484, %21 : vector<1x256xf32>
    %c91 = arith.constant 91 : index
    %486 = memref.load %arg6[%c91] : memref<98xf32, #tpu.memory_space<smem>>
    %487 = vector.broadcast %486 : f32 to vector<1x256xf32>
    %488 = arith.mulf %487, %22 : vector<1x256xf32>
    %489 = arith.addf %485, %488 : vector<1x256xf32>
    %c211_i32 = arith.constant 211 : i32
    %490 = tpu.dynamic_rotate %489 by %c211_i32 dim 1 : vector<1x256xf32>, i32 -> vector<1x256xf32>
    %c42_102 = arith.constant 42 : index
    %c0_103 = arith.constant 0 : index
    %491 = vector.load %arg8[%c42_102, %c0_103] : memref<49x256xf32, #tpu.memory_space<vmem>>, vector<1x256xf32>
    %492 = arith.mulf %490, %491 : vector<1x256xf32>
    %493 = arith.addf %482, %492 : vector<1x256xf32>
    %c43 = arith.constant 43 : index
    %494 = memref.load %arg6[%c43] : memref<98xf32, #tpu.memory_space<smem>>
    %495 = vector.broadcast %494 : f32 to vector<1x256xf32>
    %496 = arith.mulf %495, %21 : vector<1x256xf32>
    %c92 = arith.constant 92 : index
    %497 = memref.load %arg6[%c92] : memref<98xf32, #tpu.memory_space<smem>>
    %498 = vector.broadcast %497 : f32 to vector<1x256xf32>
    %499 = arith.mulf %498, %22 : vector<1x256xf32>
    %500 = arith.addf %496, %499 : vector<1x256xf32>
    %c210_i32 = arith.constant 210 : i32
    %501 = tpu.dynamic_rotate %500 by %c210_i32 dim 1 : vector<1x256xf32>, i32 -> vector<1x256xf32>
    %c43_104 = arith.constant 43 : index
    %c0_105 = arith.constant 0 : index
    %502 = vector.load %arg8[%c43_104, %c0_105] : memref<49x256xf32, #tpu.memory_space<vmem>>, vector<1x256xf32>
    %503 = arith.mulf %501, %502 : vector<1x256xf32>
    %504 = arith.addf %493, %503 : vector<1x256xf32>
    %c44 = arith.constant 44 : index
    %505 = memref.load %arg6[%c44] : memref<98xf32, #tpu.memory_space<smem>>
    %506 = vector.broadcast %505 : f32 to vector<1x256xf32>
    %507 = arith.mulf %506, %21 : vector<1x256xf32>
    %c93 = arith.constant 93 : index
    %508 = memref.load %arg6[%c93] : memref<98xf32, #tpu.memory_space<smem>>
    %509 = vector.broadcast %508 : f32 to vector<1x256xf32>
    %510 = arith.mulf %509, %22 : vector<1x256xf32>
    %511 = arith.addf %507, %510 : vector<1x256xf32>
    %c209_i32 = arith.constant 209 : i32
    %512 = tpu.dynamic_rotate %511 by %c209_i32 dim 1 : vector<1x256xf32>, i32 -> vector<1x256xf32>
    %c44_106 = arith.constant 44 : index
    %c0_107 = arith.constant 0 : index
    %513 = vector.load %arg8[%c44_106, %c0_107] : memref<49x256xf32, #tpu.memory_space<vmem>>, vector<1x256xf32>
    %514 = arith.mulf %512, %513 : vector<1x256xf32>
    %515 = arith.addf %504, %514 : vector<1x256xf32>
    %c45 = arith.constant 45 : index
    %516 = memref.load %arg6[%c45] : memref<98xf32, #tpu.memory_space<smem>>
    %517 = vector.broadcast %516 : f32 to vector<1x256xf32>
    %518 = arith.mulf %517, %21 : vector<1x256xf32>
    %c94 = arith.constant 94 : index
    %519 = memref.load %arg6[%c94] : memref<98xf32, #tpu.memory_space<smem>>
    %520 = vector.broadcast %519 : f32 to vector<1x256xf32>
    %521 = arith.mulf %520, %22 : vector<1x256xf32>
    %522 = arith.addf %518, %521 : vector<1x256xf32>
    %c208_i32 = arith.constant 208 : i32
    %523 = tpu.dynamic_rotate %522 by %c208_i32 dim 1 : vector<1x256xf32>, i32 -> vector<1x256xf32>
    %c45_108 = arith.constant 45 : index
    %c0_109 = arith.constant 0 : index
    %524 = vector.load %arg8[%c45_108, %c0_109] : memref<49x256xf32, #tpu.memory_space<vmem>>, vector<1x256xf32>
    %525 = arith.mulf %523, %524 : vector<1x256xf32>
    %526 = arith.addf %515, %525 : vector<1x256xf32>
    %c46 = arith.constant 46 : index
    %527 = memref.load %arg6[%c46] : memref<98xf32, #tpu.memory_space<smem>>
    %528 = vector.broadcast %527 : f32 to vector<1x256xf32>
    %529 = arith.mulf %528, %21 : vector<1x256xf32>
    %c95 = arith.constant 95 : index
    %530 = memref.load %arg6[%c95] : memref<98xf32, #tpu.memory_space<smem>>
    %531 = vector.broadcast %530 : f32 to vector<1x256xf32>
    %532 = arith.mulf %531, %22 : vector<1x256xf32>
    %533 = arith.addf %529, %532 : vector<1x256xf32>
    %c207_i32 = arith.constant 207 : i32
    %534 = tpu.dynamic_rotate %533 by %c207_i32 dim 1 : vector<1x256xf32>, i32 -> vector<1x256xf32>
    %c46_110 = arith.constant 46 : index
    %c0_111 = arith.constant 0 : index
    %535 = vector.load %arg8[%c46_110, %c0_111] : memref<49x256xf32, #tpu.memory_space<vmem>>, vector<1x256xf32>
    %536 = arith.mulf %534, %535 : vector<1x256xf32>
    %537 = arith.addf %526, %536 : vector<1x256xf32>
    %c47 = arith.constant 47 : index
    %538 = memref.load %arg6[%c47] : memref<98xf32, #tpu.memory_space<smem>>
    %539 = vector.broadcast %538 : f32 to vector<1x256xf32>
    %540 = arith.mulf %539, %21 : vector<1x256xf32>
    %c96 = arith.constant 96 : index
    %541 = memref.load %arg6[%c96] : memref<98xf32, #tpu.memory_space<smem>>
    %542 = vector.broadcast %541 : f32 to vector<1x256xf32>
    %543 = arith.mulf %542, %22 : vector<1x256xf32>
    %544 = arith.addf %540, %543 : vector<1x256xf32>
    %c206_i32 = arith.constant 206 : i32
    %545 = tpu.dynamic_rotate %544 by %c206_i32 dim 1 : vector<1x256xf32>, i32 -> vector<1x256xf32>
    %c47_112 = arith.constant 47 : index
    %c0_113 = arith.constant 0 : index
    %546 = vector.load %arg8[%c47_112, %c0_113] : memref<49x256xf32, #tpu.memory_space<vmem>>, vector<1x256xf32>
    %547 = arith.mulf %545, %546 : vector<1x256xf32>
    %548 = arith.addf %537, %547 : vector<1x256xf32>
    %c48 = arith.constant 48 : index
    %549 = memref.load %arg6[%c48] : memref<98xf32, #tpu.memory_space<smem>>
    %550 = vector.broadcast %549 : f32 to vector<1x256xf32>
    %551 = arith.mulf %550, %21 : vector<1x256xf32>
    %c97 = arith.constant 97 : index
    %552 = memref.load %arg6[%c97] : memref<98xf32, #tpu.memory_space<smem>>
    %553 = vector.broadcast %552 : f32 to vector<1x256xf32>
    %554 = arith.mulf %553, %22 : vector<1x256xf32>
    %555 = arith.addf %551, %554 : vector<1x256xf32>
    %c205_i32 = arith.constant 205 : i32
    %556 = tpu.dynamic_rotate %555 by %c205_i32 dim 1 : vector<1x256xf32>, i32 -> vector<1x256xf32>
    %c48_114 = arith.constant 48 : index
    %c0_115 = arith.constant 0 : index
    %557 = vector.load %arg8[%c48_114, %c0_115] : memref<49x256xf32, #tpu.memory_space<vmem>>, vector<1x256xf32>
    %558 = arith.mulf %556, %557 : vector<1x256xf32>
    %559 = arith.addf %548, %558 : vector<1x256xf32>
    %c0_116 = arith.constant 0 : index
    %560 = memref.load %arg7[%c0_116] : memref<1xf32, #tpu.memory_space<smem>>
    %561 = vector.broadcast %560 : f32 to vector<1x256xf32>
    %562 = arith.addf %559, %561 : vector<1x256xf32>
    %563 = arith.negf %562 : vector<1x256xf32>
    %564 = math.exp %563 : vector<1x256xf32>
    %cst_117 = arith.constant 1.000000e+00 : f32
    %565 = vector.broadcast %cst_117 : f32 to vector<1x256xf32>
    %566 = arith.addf %565, %564 : vector<1x256xf32>
    %567 = arith.divf %565, %566 : vector<1x256xf32>
    %568 = arith.mulf %0, %0 : vector<1x4x256xf32>
    %569 = vector.shape_cast %18 : vector<1x4xf32> to vector<1x4x1xf32>
    %570 = vector.broadcast %569 : vector<1x4x1xf32> to vector<1x4x256xf32>
    %571 = arith.mulf %568, %570 : vector<1x4x256xf32>
    %572 = vector.shape_cast %567 : vector<1x256xf32> to vector<1x1x256xf32>
    %573 = vector.broadcast %572 : vector<1x1x256xf32> to vector<1x4x256xf32>
    %574 = arith.mulf %568, %573 : vector<1x4x256xf32>
    %c0_118 = arith.constant 0 : index
    %c0_119 = arith.constant 0 : index
    %575 = vector.load %arg9[%c0_118, %c0_119] : memref<4x4xf32, #tpu.memory_space<vmem>>, vector<4x4xf32>
    %c0_120 = arith.constant 0 : index
    %c0_121 = arith.constant 0 : index
    %576 = vector.load %arg10[%c0_120, %c0_121] : memref<4x4xf32, #tpu.memory_space<vmem>>, vector<4x4xf32>
    %c0_122 = arith.constant 0 : index
    %c0_123 = arith.constant 0 : index
    %577 = vector.load %arg11[%c0_122, %c0_123] : memref<4x1xf32, #tpu.memory_space<vmem>>, vector<4x1xf32>
    %578 = vector.shape_cast %571 : vector<1x4x256xf32> to vector<4x256xf32>
    %cst_124 = arith.constant dense<0.000000e+00> : vector<4x256xf32>
    %579 = tpu.matmul %575, %578, %cst_124 {dimension_numbers = #tpu.dot_dimension_numbers<[1], [0], [0], [1], [0, 0, 1, 1], [], []>} : vector<4x4xf32>, vector<4x256xf32>, vector<4x256xf32> -> vector<4x256xf32>
    %580 = vector.shape_cast %574 : vector<1x4x256xf32> to vector<4x256xf32>
    %cst_125 = arith.constant dense<0.000000e+00> : vector<4x256xf32>
    %581 = tpu.matmul %576, %580, %cst_125 {dimension_numbers = #tpu.dot_dimension_numbers<[1], [0], [0], [1], [0, 0, 1, 1], [], []>} : vector<4x4xf32>, vector<4x256xf32>, vector<4x256xf32> -> vector<4x256xf32>
    %582 = arith.addf %579, %581 : vector<4x256xf32>
    %583 = vector.broadcast %577 : vector<4x1xf32> to vector<4x256xf32>
    %584 = arith.addf %582, %583 : vector<4x256xf32>
    %585 = vector.shape_cast %0 : vector<1x4x256xf32> to vector<4x256xf32>
    %586 = arith.addf %584, %585 : vector<4x256xf32>
    %c0_126 = arith.constant 0 : index
    %c0_127 = arith.constant 0 : index
    %c0_128 = arith.constant 0 : index
    %587 = vector.load %arg12[%c0_126, %c0_127, %c0_128] : memref<1x4x256xf32, #tpu.memory_space<vmem>>, vector<1x4x256xf32>
    %588 = vector.shape_cast %587 : vector<1x4x256xf32> to vector<4x256xf32>
    %589 = vector.shape_cast %586 : vector<4x256xf32> to vector<1x4x256xf32>
    tpu.vector_store %arg12[%c0_126, %c0_127, %c0_128], %589 {strides = array<i32>} : memref<1x4x256xf32, #tpu.memory_space<vmem>>, vector<1x4x256xf32>,
    return
  }
  func.func @transform_0(%arg0: i32) -> (i32, i32, i32) {
    %c0_i32 = arith.constant 0 : i32
    %c0_i32_0 = arith.constant 0 : i32
    %c0_i32_1 = arith.constant 0 : i32
    return %arg0, %c0_i32, %c0_i32_0 : i32, i32, i32
  }
  func.func @transform_1(%arg0: i32) -> (i32, i32) {
    %c0_i32 = arith.constant 0 : i32
    %c0_i32_0 = arith.constant 0 : i32
    %c0_i32_1 = arith.constant 0 : i32
    return %c0_i32, %c0_i32_0 : i32, i32
  }
  func.func @transform_2(%arg0: i32) -> (i32, i32) {
    %c0_i32 = arith.constant 0 : i32
    %c0_i32_0 = arith.constant 0 : i32
    %c0_i32_1 = arith.constant 0 : i32
    return %c0_i32, %c0_i32_0 : i32, i32
  }
  func.func @transform_3(%arg0: i32) -> (i32, i32) {
    %c0_i32 = arith.constant 0 : i32
    %c0_i32_0 = arith.constant 0 : i32
    %c0_i32_1 = arith.constant 0 : i32
    return %c0_i32, %c0_i32_0 : i32, i32
  }
  func.func @transform_4(%arg0: i32) -> (i32, i32) {
    %c0_i32 = arith.constant 0 : i32
    %c0_i32_0 = arith.constant 0 : i32
    %c0_i32_1 = arith.constant 0 : i32
    return %c0_i32, %c0_i32_0 : i32, i32
  }
  func.func @transform_5(%arg0: i32) -> i32 {
    %c0_i32 = arith.constant 0 : i32
    %c0_i32_0 = arith.constant 0 : i32
    return %c0_i32 : i32
  }
  func.func @transform_6(%arg0: i32) -> i32 {
    %c0_i32 = arith.constant 0 : i32
    %c0_i32_0 = arith.constant 0 : i32
    return %c0_i32 : i32
  }
  func.func @transform_7(%arg0: i32) -> (i32, i32) {
    %c0_i32 = arith.constant 0 : i32
    %c0_i32_0 = arith.constant 0 : i32
    %c0_i32_1 = arith.constant 0 : i32
    return %c0_i32, %c0_i32_0 : i32, i32
  }
  func.func @transform_8(%arg0: i32) -> (i32, i32) {
    %c0_i32 = arith.constant 0 : i32
    %c0_i32_0 = arith.constant 0 : i32
    %c0_i32_1 = arith.constant 0 : i32
    return %c0_i32, %c0_i32_0 : i32, i32
  }
  func.func @transform_9(%arg0: i32) -> (i32, i32) {
    %c0_i32 = arith.constant 0 : i32
    %c0_i32_0 = arith.constant 0 : i32
    %c0_i32_1 = arith.constant 0 : i32
    return %c0_i32, %c0_i32_0 : i32, i32
  }
  func.func @transform_10(%arg0: i32) -> (i32, i32) {
    %c0_i32 = arith.constant 0 : i32
    %c0_i32_0 = arith.constant 0 : i32
    %c0_i32_1 = arith.constant 0 : i32
    return %c0_i32, %c0_i32_0 : i32, i32
  }
  func.func @transform_11(%arg0: i32) -> (i32, i32, i32) {
    %c0_i32 = arith.constant 0 : i32
    %c0_i32_0 = arith.constant 0 : i32
    %c0_i32_1 = arith.constant 0 : i32
    return %arg0, %c0_i32, %c0_i32_0 : i32, i32, i32
  }
}

</mosaic_0001>

<llo_original>
// kernel: tpu_custom_call.1
$region0: #{tpu_custom_call.1}
  #allocation0 [shape = 'u32[]', space=smem, size = 0x4, offset = 0x4, fixed_abs, tag = 'smem constant byte address 0x4 - core index']
  #allocation1 [shape = 'u32[72,128]{1,0:T(1,128)}', space=vmem, size = 0x9000, scoped, tag = 'internal scratch']
  #allocation2 [shape = 'f32[1]{0:T(128)S(6)}', space=smem, size = 0x200, scoped, tag = 'scoped memory for tpu_custom_call.1']
  %s0 = inlined_call_operand.hbm [shape: f32[2,4,256], index: 0, kind: input, shape index: {}]
  %s1 = inlined_call_operand.vmem [shape: f32[4,2], index: 1, kind: input, shape index: {}]
  %s2 = inlined_call_operand.vmem [shape: f32[1,2], index: 2, kind: input, shape index: {}]
  %s3 = inlined_call_operand.vmem [shape: f32[2,4], index: 3, kind: input, shape index: {}]
  %s4 = inlined_call_operand.vmem [shape: f32[1,4], index: 4, kind: input, shape index: {}]
  %s5 = inlined_call_operand.vmem [shape: f32[98], index: 5, kind: input, shape index: {}]
  %s6 = inlined_call_operand.<no memory space> [shape: f32[1], index: 6, kind: input, shape index: {}]
  %s7 = inlined_call_operand.hbm [shape: f32[49,256], index: 7, kind: input, shape index: {}]
  %s8 = inlined_call_operand.vmem [shape: f32[4,4], index: 8, kind: input, shape index: {}]
  %s9 = inlined_call_operand.vmem [shape: f32[4,4], index: 9, kind: input, shape index: {}]
  %s10 = inlined_call_operand.vmem [shape: f32[4,1], index: 10, kind: input, shape index: {}]
  %s11 = inlined_call_operand.hbm [shape: f32[2,4,256], index: 11, kind: output, shape index: {}]
  %s12 = sld [smem:[#allocation0]]
  $region89: #{tpu_custom_call.1} parent=0
    _
  %s14 = ssub.s32 1, %s12
  %s15 = scalar_select 0, %s14, %s12
  %16 = sst [smem:[#allocation2]] %s6
  $region1: #{tpu_custom_call.1} parent=0
    #allocation3 [shape = 'u8[8192]{0}', space=vmem, size = 0x2000, scoped, tag = 'input window, operand 0']
    #allocation4 [shape = 's32[2]{0}', space=sflag, size = 0x8, scoped, tag = 'scoped memory for tpu_custom_call.1']
    #allocation5 [shape = 's32[2]{0}', space=sflag, size = 0x8, scoped, tag = 'scoped memory for tpu_custom_call.1']
    #allocation6 [shape = 's32[2]{0}', space=sflag, size = 0x8, scoped, tag = 'scoped memory for tpu_custom_call.1']
    #allocation7 [shape = 'u8[512]{0}', space=smem, size = 0x200, scoped, tag = 'input window, operand 5, single buffered']
    #allocation8 [shape = 'u8[57344]{0}', space=vmem, size = 0xe000, scoped, tag = 'input window, operand 7, single buffered']
    #allocation9 [shape = 's32[1]{0}', space=sflag, size = 0x4, scoped, tag = 'scoped memory for tpu_custom_call.1']
    #allocation10 [shape = 'u8[8192]{0}', space=vmem, size = 0x2000, scoped, tag = 'output window, operand 0']
    %17 = vsyncpa [#allocation4], 0
    %s18 = scalar_lea.sflag [#allocation4], 1
    %19 = vsyncpa %s18, 0
    %20 = vsyncpa [#allocation6], 0
    %21 = vsyncpa [#allocation9], 0
    %22 = vsyncpa [#allocation5], 0
    %s23 = scalar_lea.sflag [#allocation5], 1
    %24 = vsyncpa %s23, 0
    loop: start=0, step=1, limit=4
    $region2: #{tpu_custom_call.1} parent=1 // loop_pre_header
      _
    $region3: #{tpu_custom_call.1} parent=1 // loop_header
      %s26 = sphi 0, %s30
      %p27 = scmp.ge.s32.totalorder %s26, 4
      %s36 = sphi 0, %s38
      %s39 = sphi 0, %s36
      %s40 = sphi 0, %s39
      %s56 = sphi 0, %s40
      %s60 = sphi 0, %s60
      %s62 = sphi 0, %s60
      %s63 = sphi 0, %s62
      %s77 = sphi 0, %s63
      %s81 = sphi 0, %s81
      %s83 = sphi 0, %s81
      %s84 = sphi 0, %s83
      %s98 = sphi 0, %s84
      %s102 = sphi 0, %s102
      %s104 = sphi 0, %s102
      %s105 = sphi 0, %s104
      %s119 = sphi 0, %s105
      %s123 = sphi 0, %s123
      %s125 = sphi 0, %s123
      %s126 = sphi 0, %s125
      %s140 = sphi 0, %s126
      %s144 = sphi 0, %s144
      %s146 = sphi 0, %s144
      %s147 = sphi 0, %s146
      %s161 = sphi 0, %s147
      %s165 = sphi 0, %s165
      %s167 = sphi 0, %s165
      %s168 = sphi 0, %s167
      %s182 = sphi 0, %s168
      %s186 = sphi 0, %s186
      %s188 = sphi 0, %s186
      %s189 = sphi 0, %s188
      %s203 = sphi 0, %s189
      %s207 = sphi 0, %s207
      %s209 = sphi 0, %s207
      %s210 = sphi 0, %s209
      %s224 = sphi 0, %s210
      %s228 = sphi 0, %s228
      %s230 = sphi 0, %s228
      %s231 = sphi 0, %s230
      %s245 = sphi 0, %s231
      %s249 = sphi 0, %s249
      %s251 = sphi 0, %s249
      %s252 = sphi 0, %s251
      %s266 = sphi 0, %s252
      %s272 = sphi 0, %s274
      %s275 = sphi 0, %s272
      %s276 = sphi 0, %s275
      %s292 = sphi 0, %s276
    $region4: #{tpu_custom_call.1} parent=1 // loop_header_branch
      %29 = sbr.rel (%p27) target = $region8
    $region5: #{tpu_custom_call.1} parent=1 // loop_body
      %s31 = ssub.s32 %s26, 1
      %s32 = ssub.s32 %s26, 2
      %s33 = sadd.s32 %s26, 1
      %s34 = ssub.s32 %s26, %s33
      %p35 = scmp.eq.s32.totalorder %s34, 0
      %s37 = sadd.s32 %s36, 1
      %s38 = scalar_select %p35, %s36, %s37
      %p41 = pneg %p35
      %p42 = scmp.eq.s32.totalorder %s26, 1
      %p43 = por %p41, %p42
      %p44 = scmp.ne.s32.totalorder %s36, %s39
      %p45 = scmp.eq.s32.totalorder %s26, 0
      %p46 = por %p44, %p45
      %p47 = scmp.ne.s32.totalorder %s36, %s39
      %p48 = scmp.eq.s32.totalorder %s31, 1
      %p49 = por %p47, %p48
      %p50 = scmp.ne.s32.totalorder %s39, %s40
      %p51 = scmp.eq.s32.totalorder %s31, 0
      %p52 = por %p50, %p51
      %p53 = scmp.ne.s32.totalorder %s39, %s40
      %p54 = scmp.eq.s32.totalorder %s32, 1
      %p55 = por %p53, %p54
      %p57 = scmp.ne.s32.totalorder %s40, %s56
      %p58 = scmp.eq.s32.totalorder %s32, 0
      %p59 = por %p57, %p58
      %s61 = sadd.s32 %s60, 1
      %p64 = scmp.eq.s32.totalorder %s26, 1
      %p65 = scmp.ne.s32.totalorder %s60, %s62
      %p66 = scmp.eq.s32.totalorder %s26, 0
      %p67 = por %p65, %p66
      %p68 = scmp.ne.s32.totalorder %s60, %s62
      %p69 = scmp.eq.s32.totalorder %s31, 1
      %p70 = por %p68, %p69
      %p71 = scmp.ne.s32.totalorder %s62, %s63
      %p72 = scmp.eq.s32.totalorder %s31, 0
      %p73 = por %p71, %p72
      %p74 = scmp.ne.s32.totalorder %s62, %s63
      %p75 = scmp.eq.s32.totalorder %s32, 1
      %p76 = por %p74, %p75
      %p78 = scmp.ne.s32.totalorder %s63, %s77
      %p79 = scmp.eq.s32.totalorder %s32, 0
      %p80 = por %p78, %p79
      %s82 = sadd.s32 %s81, 1
      %p85 = scmp.eq.s32.totalorder %s26, 1
      %p86 = scmp.ne.s32.totalorder %s81, %s83
      %p87 = scmp.eq.s32.totalorder %s26, 0
      %p88 = por %p86, %p87
      %p89 = scmp.ne.s32.totalorder %s81, %s83
      %p90 = scmp.eq.s32.totalorder %s31, 1
      %p91 = por %p89, %p90
      %p92 = scmp.ne.s32.totalorder %s83, %s84
      %p93 = scmp.eq.s32.totalorder %s31, 0
      %p94 = por %p92, %p93
      %p95 = scmp.ne.s32.totalorder %s83, %s84
      %p96 = scmp.eq.s32.totalorder %s32, 1
      %p97 = por %p95, %p96
      %p99 = scmp.ne.s32.totalorder %s84, %s98
      %p100 = scmp.eq.s32.totalorder %s32, 0
      %p101 = por %p99, %p100
      %s103 = sadd.s32 %s102, 1
      %p106 = scmp.eq.s32.totalorder %s26, 1
      %p107 = scmp.ne.s32.totalorder %s102, %s104
      %p108 = scmp.eq.s32.totalorder %s26, 0
      %p109 = por %p107, %p108
      %p110 = scmp.ne.s32.totalorder %s102, %s104
      %p111 = scmp.eq.s32.totalorder %s31, 1
      %p112 = por %p110, %p111
      %p113 = scmp.ne.s32.totalorder %s104, %s105
      %p114 = scmp.eq.s32.totalorder %s31, 0
      %p115 = por %p113, %p114
      %p116 = scmp.ne.s32.totalorder %s104, %s105
      %p117 = scmp.eq.s32.totalorder %s32, 1
      %p118 = por %p116, %p117
      %p120 = scmp.ne.s32.totalorder %s105, %s119
      %p121 = scmp.eq.s32.totalorder %s32, 0
      %p122 = por %p120, %p121
      %s124 = sadd.s32 %s123, 1
      %p127 = scmp.eq.s32.totalorder %s26, 1
      %p128 = scmp.ne.s32.totalorder %s123, %s125
      %p129 = scmp.eq.s32.totalorder %s26, 0
      %p130 = por %p128, %p129
      %p131 = scmp.ne.s32.totalorder %s123, %s125
      %p132 = scmp.eq.s32.totalorder %s31, 1
      %p133 = por %p131, %p132
      %p134 = scmp.ne.s32.totalorder %s125, %s126
      %p135 = scmp.eq.s32.totalorder %s31, 0
      %p136 = por %p134, %p135
      %p137 = scmp.ne.s32.totalorder %s125, %s126
      %p138 = scmp.eq.s32.totalorder %s32, 1
      %p139 = por %p137, %p138
      %p141 = scmp.ne.s32.totalorder %s126, %s140
      %p142 = scmp.eq.s32.totalorder %s32, 0
      %p143 = por %p141, %p142
      %s145 = sadd.s32 %s144, 1
      %p148 = scmp.eq.s32.totalorder %s26, 1
      %p149 = scmp.ne.s32.totalorder %s144, %s146
      %p150 = scmp.eq.s32.totalorder %s26, 0
      %p151 = por %p149, %p150
      %p152 = scmp.ne.s32.totalorder %s144, %s146
      %p153 = scmp.eq.s32.totalorder %s31, 1
      %p154 = por %p152, %p153
      %p155 = scmp.ne.s32.totalorder %s146, %s147
      %p156 = scmp.eq.s32.totalorder %s31, 0
      %p157 = por %p155, %p156
      %p158 = scmp.ne.s32.totalorder %s146, %s147
      %p159 = scmp.eq.s32.totalorder %s32, 1
      %p160 = por %p158, %p159
      %p162 = scmp.ne.s32.totalorder %s147, %s161
      %p163 = scmp.eq.s32.totalorder %s32, 0
      %p164 = por %p162, %p163
      %s166 = sadd.s32 %s165, 1
      %p169 = scmp.eq.s32.totalorder %s26, 1
      %p170 = scmp.ne.s32.totalorder %s165, %s167
      %p171 = scmp.eq.s32.totalorder %s26, 0
      %p172 = por %p170, %p171
      %p173 = scmp.ne.s32.totalorder %s165, %s167
      %p174 = scmp.eq.s32.totalorder %s31, 1
      %p175 = por %p173, %p174
      %p176 = scmp.ne.s32.totalorder %s167, %s168
      %p177 = scmp.eq.s32.totalorder %s31, 0
      %p178 = por %p176, %p177
      %p179 = scmp.ne.s32.totalorder %s167, %s168
      %p180 = scmp.eq.s32.totalorder %s32, 1
      %p181 = por %p179, %p180
      %p183 = scmp.ne.s32.totalorder %s168, %s182
      %p184 = scmp.eq.s32.totalorder %s32, 0
      %p185 = por %p183, %p184
      %s187 = sadd.s32 %s186, 1
      %p190 = scmp.eq.s32.totalorder %s26, 1
      %p191 = scmp.ne.s32.totalorder %s186, %s188
      %p192 = scmp.eq.s32.totalorder %s26, 0
      %p193 = por %p191, %p192
      %p194 = scmp.ne.s32.totalorder %s186, %s188
      %p195 = scmp.eq.s32.totalorder %s31, 1
      %p196 = por %p194, %p195
      %p197 = scmp.ne.s32.totalorder %s188, %s189
      %p198 = scmp.eq.s32.totalorder %s31, 0
      %p199 = por %p197, %p198
      %p200 = scmp.ne.s32.totalorder %s188, %s189
      %p201 = scmp.eq.s32.totalorder %s32, 1
      %p202 = por %p200, %p201
      %p204 = scmp.ne.s32.totalorder %s189, %s203
      %p205 = scmp.eq.s32.totalorder %s32, 0
      %p206 = por %p204, %p205
      %s208 = sadd.s32 %s207, 1
      %p211 = scmp.eq.s32.totalorder %s26, 1
      %p212 = scmp.ne.s32.totalorder %s207, %s209
      %p213 = scmp.eq.s32.totalorder %s26, 0
      %p214 = por %p212, %p213
      %p215 = scmp.ne.s32.totalorder %s207, %s209
      %p216 = scmp.eq.s32.totalorder %s31, 1
      %p217 = por %p215, %p216
      %p218 = scmp.ne.s32.totalorder %s209, %s210
      %p219 = scmp.eq.s32.totalorder %s31, 0
      %p220 = por %p218, %p219
      %p221 = scmp.ne.s32.totalorder %s209, %s210
      %p222 = scmp.eq.s32.totalorder %s32, 1
      %p223 = por %p221, %p222
      %p225 = scmp.ne.s32.totalorder %s210, %s224
      %p226 = scmp.eq.s32.totalorder %s32, 0
      %p227 = por %p225, %p226
      %s229 = sadd.s32 %s228, 1
      %p232 = scmp.eq.s32.totalorder %s26, 1
      %p233 = scmp.ne.s32.totalorder %s228, %s230
      %p234 = scmp.eq.s32.totalorder %s26, 0
      %p235 = por %p233, %p234
      %p236 = scmp.ne.s32.totalorder %s228, %s230
      %p237 = scmp.eq.s32.totalorder %s31, 1
      %p238 = por %p236, %p237
      %p239 = scmp.ne.s32.totalorder %s230, %s231
      %p240 = scmp.eq.s32.totalorder %s31, 0
      %p241 = por %p239, %p240
      %p242 = scmp.ne.s32.totalorder %s230, %s231
      %p243 = scmp.eq.s32.totalorder %s32, 1
      %p244 = por %p242, %p243
      %p246 = scmp.ne.s32.totalorder %s231, %s245
      %p247 = scmp.eq.s32.totalorder %s32, 0
      %p248 = por %p246, %p247
      %s250 = sadd.s32 %s249, 1
      %p253 = scmp.eq.s32.totalorder %s26, 1
      %p254 = scmp.ne.s32.totalorder %s249, %s251
      %p255 = scmp.eq.s32.totalorder %s26, 0
      %p256 = por %p254, %p255
      %p257 = scmp.ne.s32.totalorder %s249, %s251
      %p258 = scmp.eq.s32.totalorder %s31, 1
      %p259 = por %p257, %p258
      %p260 = scmp.ne.s32.totalorder %s251, %s252
      %p261 = scmp.eq.s32.totalorder %s31, 0
      %p262 = por %p260, %p261
      %p263 = scmp.ne.s32.totalorder %s251, %s252
      %p264 = scmp.eq.s32.totalorder %s32, 1
      %p265 = por %p263, %p264
      %p267 = scmp.ne.s32.totalorder %s252, %s266
      %p268 = scmp.eq.s32.totalorder %s32, 0
      %p269 = por %p267, %p268
      %s270 = ssub.s32 %s26, %s33
      %p271 = scmp.eq.s32.totalorder %s270, 0
      %s273 = sadd.s32 %s272, 1
      %s274 = scalar_select %p271, %s272, %s273
      %p277 = pneg %p271
      %p278 = scmp.eq.s32.totalorder %s26, 1
      %p279 = por %p277, %p278
      %p280 = scmp.ne.s32.totalorder %s272, %s275
      %p281 = scmp.eq.s32.totalorder %s26, 0
      %p282 = por %p280, %p281
      %p283 = scmp.ne.s32.totalorder %s272, %s275
      %p284 = scmp.eq.s32.totalorder %s31, 1
      %p285 = por %p283, %p284
      %p286 = scmp.ne.s32.totalorder %s275, %s276
      %p287 = scmp.eq.s32.totalorder %s31, 0
      %p288 = por %p286, %p287
      %p289 = scmp.ne.s32.totalorder %s275, %s276
      %p290 = scmp.eq.s32.totalorder %s32, 1
      %p291 = por %p289, %p290
      %p293 = scmp.ne.s32.totalorder %s276, %s292
      %p294 = scmp.eq.s32.totalorder %s32, 0
      %p295 = por %p293, %p294
      %p296 = scmp.le.s32.totalorder 1, %s26
      %p297 = scmp.lt.s32.totalorder %s26, 3
      %p298 = pnand %p296, %p297
      %p299 = pneg %p298
      // Predicated region
      $region9: #{tpu_custom_call.1} parent=5 // pred_check
        _
      $region10: #{tpu_custom_call.1} parent=5 // pred_check_branch
        %301 = sbr.rel (%p298) target = $region12
      $region11: #{tpu_custom_call.1} parent=5 // pred_region
        %s302 = ssub.s32 %s26, 1
        // Predicated region
        $region13: #{tpu_custom_call.1} parent=11 // pred_check
          %p303 = pneg %p73
        $region14: #{tpu_custom_call.1} parent=11 // pred_check_branch
          %305 = sbr.rel (%p303) target = $region16
        $region15: #{tpu_custom_call.1} parent=11 // pred_region
          _
        $region16: #{tpu_custom_call.1} parent=11 // pred_fallthru
          _
        // Predicated region
        $region17: #{tpu_custom_call.1} parent=11 // pred_check
          %p306 = pneg %p94
        $region18: #{tpu_custom_call.1} parent=11 // pred_check_branch
          %308 = sbr.rel (%p306) target = $region20
        $region19: #{tpu_custom_call.1} parent=11 // pred_region
          _
        $region20: #{tpu_custom_call.1} parent=11 // pred_fallthru
          _
        // Predicated region
        $region21: #{tpu_custom_call.1} parent=11 // pred_check
          %p309 = pneg %p115
        $region22: #{tpu_custom_call.1} parent=11 // pred_check_branch
          %311 = sbr.rel (%p309) target = $region24
        $region23: #{tpu_custom_call.1} parent=11 // pred_region
          _
        $region24: #{tpu_custom_call.1} parent=11 // pred_fallthru
          _
        // Predicated region
        $region25: #{tpu_custom_call.1} parent=11 // pred_check
          %p312 = pneg %p136
        $region26: #{tpu_custom_call.1} parent=11 // pred_check_branch
          %314 = sbr.rel (%p312) target = $region28
        $region27: #{tpu_custom_call.1} parent=11 // pred_region
          _
        $region28: #{tpu_custom_call.1} parent=11 // pred_fallthru
          _
        // Predicated region
        $region29: #{tpu_custom_call.1} parent=11 // pred_check
          %p315 = pneg %p157
        $region30: #{tpu_custom_call.1} parent=11 // pred_check_branch
          %317 = sbr.rel (%p315) target = $region32
        $region31: #{tpu_custom_call.1} parent=11 // pred_region
          %319 = vsyncadd [#allocation6], 0
          %s321 = sshll.u32 %s5, 4
          %s322 = int_to_ptr.vmem [resolvable:$true] %s321
          %324 = dma.vmem_to_smem %s322, 16, [#allocation7], [#allocation6]
        $region32: #{tpu_custom_call.1} parent=11 // pred_fallthru
          _
        // Predicated region
        $region33: #{tpu_custom_call.1} parent=11 // pred_check
          %p325 = pneg %p178
        $region34: #{tpu_custom_call.1} parent=11 // pred_check_branch
          %327 = sbr.rel (%p325) target = $region36
        $region35: #{tpu_custom_call.1} parent=11 // pred_region
          _
        $region36: #{tpu_custom_call.1} parent=11 // pred_fallthru
          _
        // Predicated region
        $region37: #{tpu_custom_call.1} parent=11 // pred_check
          %p328 = pneg %p199
        $region38: #{tpu_custom_call.1} parent=11 // pred_check_branch
          %330 = sbr.rel (%p328) target = $region40
        $region39: #{tpu_custom_call.1} parent=11 // pred_region
          %332 = vsyncadd [#allocation9], 0
          %s333 = sshll.u32 %s7, 4
          %s334 = int_to_ptr.hbm [resolvable:$true] %s333
          %s335 = sshll.u32 [#allocation8], 4
          %s336 = int_to_ptr.vmem [resolvable:$true] %s335
          %341 = dma.hbm_to_vmem [thread:$0]  %s334, 1792, %s336, [#allocation9], 256, 256, 16
        $region40: #{tpu_custom_call.1} parent=11 // pred_fallthru
          _
        // Predicated region
        $region41: #{tpu_custom_call.1} parent=11 // pred_check
          %p342 = pneg %p220
        $region42: #{tpu_custom_call.1} parent=11 // pred_check_branch
          %344 = sbr.rel (%p342) target = $region44
        $region43: #{tpu_custom_call.1} parent=11 // pred_region
          _
        $region44: #{tpu_custom_call.1} parent=11 // pred_fallthru
          _
        // Predicated region
        $region45: #{tpu_custom_call.1} parent=11 // pred_check
          %p345 = pneg %p241
        $region46: #{tpu_custom_call.1} parent=11 // pred_check_branch
          %347 = sbr.rel (%p345) target = $region48
        $region47: #{tpu_custom_call.1} parent=11 // pred_region
          _
        $region48: #{tpu_custom_call.1} parent=11 // pred_fallthru
          _
        // Predicated region
        $region49: #{tpu_custom_call.1} parent=11 // pred_check
          %p348 = pneg %p262
        $region50: #{tpu_custom_call.1} parent=11 // pred_check_branch
          %350 = sbr.rel (%p348) target = $region52
        $region51: #{tpu_custom_call.1} parent=11 // pred_region
          _
        $region52: #{tpu_custom_call.1} parent=11 // pred_fallthru
          _
      $region12: #{tpu_custom_call.1} parent=5 // pred_fallthru
        _
      %p351 = scmp.lt.s32.totalorder %s26, 2
      // Predicated region
      $region53: #{tpu_custom_call.1} parent=5 // pred_check
        %p352 = pneg %p351
      $region54: #{tpu_custom_call.1} parent=5 // pred_check_branch
        %354 = sbr.rel (%p352) target = $region56
      $region55: #{tpu_custom_call.1} parent=5 // pred_region
        // Predicated region
        $region57: #{tpu_custom_call.1} parent=55 // pred_check
          %p355 = pneg %p46
        $region58: #{tpu_custom_call.1} parent=55 // pred_check_branch
          %357 = sbr.rel (%p355) target = $region60
        $region59: #{tpu_custom_call.1} parent=55 // pred_region
          %s358 = sand.u32 %s36, 1
          %s359 = scalar_lea.sflag [#allocation4], %s358
          %s360 = sand.u32 %s36, 1
          %s361 = smul.addr %s360, 8
          %s362 = scalar_lea.vmem [#allocation3], %s361
          %364 = vsyncadd %s359, 0
          %s365 = smul.addr %s26, 2
          %s366 = smul.addr %s365, 4
          %s367 = scalar_lea.hbm %s0, %s366
          %s369 = sshll.u32 %s367, 4
          %s370 = int_to_ptr.hbm [resolvable:$true] %s369
          %s371 = sshll.u32 %s362, 4
          %s372 = int_to_ptr.vmem [resolvable:$true] %s371
          %374 = dma.hbm_to_vmem [thread:$0]  %s370, 128, %s372, %s359
        $region60: #{tpu_custom_call.1} parent=55 // pred_fallthru
          _
      $region56: #{tpu_custom_call.1} parent=5 // pred_fallthru
        _
      %p375 = scmp.le.s32.totalorder 1, %s26
      %p376 = scmp.lt.s32.totalorder %s26, 3
      %p377 = pnand %p375, %p376
      %p378 = pneg %p377
      // Predicated region
      $region61: #{tpu_custom_call.1} parent=5 // pred_check
        _
      $region62: #{tpu_custom_call.1} parent=5 // pred_check_branch
        %380 = sbr.rel (%p377) target = $region64
      $region63: #{tpu_custom_call.1} parent=5 // pred_region
        %s381 = ssub.s32 %s26, 1
        %s382 = sand.u32 %s39, 1
        %s383 = scalar_lea.sflag [#allocation4], %s382
        %s384 = sand.u32 %s39, 1
        %s385 = smul.addr %s384, 8
        %s386 = scalar_lea.vmem [#allocation3], %s385
        // Predicated region
        $region65: #{tpu_custom_call.1} parent=63 // pred_check
          %p387 = pneg %p52
        $region66: #{tpu_custom_call.1} parent=63 // pred_check_branch
          %389 = sbr.rel (%p387) target = $region68
        $region67: #{tpu_custom_call.1} parent=63 // pred_region
          %391 = dma.done %s383, 128
        $region68: #{tpu_custom_call.1} parent=63 // pred_fallthru
          _
        // Predicated region
        $region69: #{tpu_custom_call.1} parent=63 // pred_check
          %p392 = pneg %p157
        $region70: #{tpu_custom_call.1} parent=63 // pred_check_branch
          %394 = sbr.rel (%p392) target = $region72
        $region71: #{tpu_custom_call.1} parent=63 // pred_region
          %396 = dma.done [#allocation6], 16
        $region72: #{tpu_custom_call.1} parent=63 // pred_fallthru
          _
        // Predicated region
        $region73: #{tpu_custom_call.1} parent=63 // pred_check
          %p397 = pneg %p199
        $region74: #{tpu_custom_call.1} parent=63 // pred_check_branch
          %399 = sbr.rel (%p397) target = $region76
        $region75: #{tpu_custom_call.1} parent=63 // pred_region
          %401 = dma.done [#allocation9], 1792
        $region76: #{tpu_custom_call.1} parent=63 // pred_fallthru
          _
        %402 = sfence
        %s403 = sand.u32 %s39, 1
        %s404 = scalar_lea.sflag [#allocation4], %s403
        %s405 = sand.u32 %s39, 1
        %s406 = smul.addr %s405, 8
        %s407 = scalar_lea.vmem [#allocation3], %s406
        %p408 = pneg %p52
        %p409 = pneg %p49
        %p410 = pneg %p73
        %p411 = pneg %p70
        %p412 = pneg %p94
        %p413 = pneg %p91
        %p414 = pneg %p115
        %p415 = pneg %p112
        %p416 = pneg %p136
        %p417 = pneg %p133
        %p418 = pneg %p157
        %p419 = pneg %p154
        %p420 = pneg %p178
        %p421 = pneg %p175
        %p422 = pneg %p199
        %p423 = pneg %p196
        %p424 = pneg %p220
        %p425 = pneg %p217
        %p426 = pneg %p241
        %p427 = pneg %p238
        %p428 = pneg %p262
        %p429 = pneg %p259
        %p430 = pneg %p288
        %p431 = pneg %p285
        %s432 = sand.u32 %s275, 1
        %s433 = scalar_lea.sflag [#allocation5], %s432
        %s434 = sand.u32 %s275, 1
        %s435 = smul.addr %s434, 8
        %s436 = scalar_lea.vmem [#allocation10], %s435
        %v437 = vld [vmem:[%s386] sm:$0xff]
        %439 = vst [vmem:[#allocation1] ss:$2 sm:$0xff] %v437
        %v440 = vld.sshfl [vmem:[#allocation1] sm:$0xff pattern:$0x75316420]
        %v441 = vld.sshfl [vmem:[#allocation1 + $0x8] sm:$0xff pattern:$0x75316420]
        %vm444 = vcmask 1043456
        %v445 = vsel %vm444, %v440, 0.0
        %v446 = vsel %vm444, %v441, 0.0
        %v447 = vadd.f32 %v445, %v446
        %448 = vadd.xlane.f32.xlu0 %v447
        %v449 = vpop.xlane.xlu0 %448
        %v450 = vmul.f32 %v449, 0.00390625
        %451 = vst [vmem:[#allocation1] ss:$2 sm:$0xff] %v437
        %v452 = vld.sshfl [vmem:[#allocation1] sm:$0xff pattern:$0x75316420]
        %v453 = vld.sshfl [vmem:[#allocation1 + $0x8] sm:$0xff pattern:$0x75316420]
        %v456 = vsel %vm444, %v452, -inf
        %v457 = vsel %vm444, %v453, -inf
        %v458 = vmax.f32 %v456, %v457
        %459 = vmax.xlane.f32.xlu0 %v458
        %v460 = vpop.xlane.xlu0 %459
        %v461 = vadd.f32 %v450, %v460
        %v462 = vld [vmem:[%s1] sm:$0xf]
        %v463 = vld [vmem:[%s2] sm:$0x1]
        %v465 = vlaneseq
        %v466 = vand.u32 %v465, 127
        %v467 = vperm.slane %v461, %v466
        %vm468 = vcmask 31744
        %v469 = vsel %vm468, %v467, 0
        %v472 = vsel %vm444, %v462, 0
        %474 = vmatpush.msra.mxu0 0.0
        %475 = vmatpush.msra.mxu0 0.0
        %476 = vmatpush.msra.mxu0 0.0
        %477 = vmatpush.msra.mxu0 0.0
        %478 = vmatpush.msra.mxu0 0.0
        %479 = vmatpush.msra.mxu0 0.0
        %480 = vmatpush.msra.mxu0 0.0
        %481 = vmatpush.msra.mxu0 0.0
        %482 = vmatpush.msra.mxu0 0.0
        %483 = vmatpush.msra.mxu0 0.0
        %484 = vmatpush.msra.mxu0 0.0
        %485 = vmatpush.msra.mxu0 0.0
        %486 = vmatpush.msra.mxu0 0.0
        %487 = vmatpush.msra.mxu0 0.0
        %488 = vmatpush.msra.mxu0 0.0
        %489 = vmatpush.msra.mxu0 %v472
        %490 = vmatmul.f32.gmra.mxu0 %v469
        %v491 = vpop.f32.mrf.mxu0
        %v492 = vadd.f32 %v463, %v491
        %493 = vdwg.mxu0
        %v494 = vld [vmem:[%s3] sm:$0x3]
        %v495 = vld [vmem:[%s4] sm:$0x1]
        %vm496 = vcmask 15360
        %v498 = vsel %vm496, %v492, 0
        %vm500 = vcmask 1041408
        %v502 = vsel %vm500, %v494, 0
        %504 = vmatpush.msra.mxu0 0.0
        %505 = vmatpush.msra.mxu0 0.0
        %506 = vmatpush.msra.mxu0 0.0
        %507 = vmatpush.msra.mxu0 0.0
        %508 = vmatpush.msra.mxu0 0.0
        %509 = vmatpush.msra.mxu0 0.0
        %510 = vmatpush.msra.mxu0 0.0
        %511 = vmatpush.msra.mxu0 0.0
        %512 = vmatpush.msra.mxu0 0.0
        %513 = vmatpush.msra.mxu0 0.0
        %514 = vmatpush.msra.mxu0 0.0
        %515 = vmatpush.msra.mxu0 0.0
        %516 = vmatpush.msra.mxu0 0.0
        %517 = vmatpush.msra.mxu0 0.0
        %518 = vmatpush.msra.mxu0 0.0
        %519 = vmatpush.msra.mxu0 %v502
        %520 = vmatmul.f32.gmra.mxu0 %v498
        %v521 = vpop.f32.mrf.mxu0
        %v522 = vadd.f32 %v495, %v521
        %523 = vdwg.mxu0
        %v524 = vxor.u32 %v522, 2147483648
        %v525 = vmul.f32 %v524, 1.442695
        %v526 = vpow.pop %v525
        %v527 = vadd.f32 %v526, 1.0
        %v528 = vrcp.pop %v527
        %v529 = vmul.f32 %v527, %v528
        %v530 = vsub.f32 1.0, %v529
        %v531 = vmul.f32 %v528, %v530
        %v532 = vadd.f32 %v528, %v531
        %vm533 = vweird.f32 %v527
        %vm534 = vweird.f32 %v528
        %vm535 = vmor %vm533, %vm534
        %v536 = vsel %vm535, %v528, %v532
        %v537 = vand.u32 2147483647, %v527
        %vm538 = vcmp.eq.f32.partialorder %v537, 8.507059e+37
        %v539 = vand.u32 %v527, 2147483648
        %v540 = vor.u32 1.1754944e-38, %v539
        %v541 = vsel %vm538, %v540, %v536
        %v542 = vmul.f32 1.0, %v541
        %543 = vst [vmem:[#allocation1] ss:$2 sm:$0xff] %v437
        %v544 = vld.sshfl [vmem:[#allocation1] sm:$0xff pattern:$0x75316420]
        %v545 = vld.sshfl [vmem:[#allocation1 + $0x8] sm:$0xff pattern:$0x75316420]
        %v548 = vsel %vm444, %v544, 0.0
        %v549 = vrot.slane %v548, 4
        %v550 = vadd.f32 %v548, %v549
        %v551 = vrot.slane %v550, 2
        %v552 = vadd.f32 %v550, %v551
        %v553 = vrot.slane %v552, 1
        %v554 = vadd.f32 %v552, %v553
        %v555 = vsel %vm444, %v545, 0.0
        %v556 = vrot.slane %v555, 4
        %v557 = vadd.f32 %v555, %v556
        %v558 = vrot.slane %v557, 2
        %v559 = vadd.f32 %v557, %v558
        %v560 = vrot.slane %v559, 1
        %v561 = vadd.f32 %v559, %v560
        %v562 = vmul.f32 %v554, 0.25
        %v563 = vmul.f32 %v561, 0.25
        %564 = vst [vmem:[#allocation1] ss:$2 sm:$0xff] %v437
        %v565 = vld.sshfl [vmem:[#allocation1] sm:$0xff pattern:$0x75316420]
        %v566 = vld.sshfl [vmem:[#allocation1 + $0x8] sm:$0xff pattern:$0x75316420]
        %v569 = vsel %vm444, %v565, -inf
        %v570 = vrot.slane %v569, 4
        %v571 = vmax.f32 %v569, %v570
        %v572 = vrot.slane %v571, 2
        %v573 = vmax.f32 %v571, %v572
        %v574 = vrot.slane %v573, 1
        %v575 = vmax.f32 %v573, %v574
        %v576 = vsel %vm444, %v566, -inf
        %v577 = vrot.slane %v576, 4
        %v578 = vmax.f32 %v576, %v577
        %v579 = vrot.slane %v578, 2
        %v580 = vmax.f32 %v578, %v579
        %v581 = vrot.slane %v580, 1
        %v582 = vmax.f32 %v580, %v581
        %s583 = sld [smem:[#allocation7]]
        %v584 = vstv %s583
        %v585 = vmul.f32 %v584, %v562
        %v586 = vmul.f32 %v584, %v563
        %s587 = sld [smem:[#allocation7 + $0x31]]
        %v588 = vstv %s587
        %v589 = vmul.f32 %v588, %v575
        %v590 = vmul.f32 %v588, %v582
        %v591 = vadd.f32 %v585, %v589
        %v592 = vadd.f32 %v586, %v590
        %593 = vrot.lane.b32.xlu0 %v591, 51
        %v594 = vpop.permute.xlu0 %593
        %595 = vrot.lane.b32.xlu0 %v592, 51
        %v596 = vpop.permute.xlu0 %595
        %vm597 = vcmp.lt.s32.totalorder %v466, 51
        %v598 = vsel %vm597, %v594, %v596
        %v599 = vsel %vm597, %v596, %v594
        %v600 = vld [vmem:[#allocation8] ss:$8 sm:$0x3]
        %v602 = vperm.slane %v600, 0
        %v603 = vperm.slane %v600, 1
        %v606 = vmul.f32 %v599, %v602
        %v607 = vmul.f32 %v598, %v603
        %v608 = vadd.f32 %v606, 0.0
        %v609 = vadd.f32 %v607, 0.0
        %s610 = sld [smem:[#allocation7 + $0x1]]
        %v611 = vstv %s610
        %v612 = vmul.f32 %v611, %v562
        %v613 = vmul.f32 %v611, %v563
        %s614 = sld [smem:[#allocation7 + $0x32]]
        %v615 = vstv %s614
        %v616 = vmul.f32 %v615, %v575
        %v617 = vmul.f32 %v615, %v582
        %v618 = vadd.f32 %v612, %v616
        %v619 = vadd.f32 %v613, %v617
        %620 = vrot.lane.b32.xlu0 %v618, 50
        %v621 = vpop.permute.xlu0 %620
        %622 = vrot.lane.b32.xlu0 %v619, 50
        %v623 = vpop.permute.xlu0 %622
        %vm624 = vcmp.lt.s32.totalorder %v466, 50
        %v625 = vsel %vm624, %v621, %v623
        %v626 = vsel %vm624, %v623, %v621
        %s627 = scalar_lea.vmem [#allocation8], 1
        %v628 = vld [vmem:[%s627] ss:$8 sm:$0x3]
        %v630 = vperm.slane %v628, 0
        %v631 = vperm.slane %v628, 1
        %v634 = vmul.f32 %v626, %v630
        %v635 = vmul.f32 %v625, %v631
        %v636 = vadd.f32 %v608, %v634
        %v637 = vadd.f32 %v609, %v635
        %s638 = sld [smem:[#allocation7 + $0x2]]
        %v639 = vstv %s638
        %v640 = vmul.f32 %v639, %v562
        %v641 = vmul.f32 %v639, %v563
        %s642 = sld [smem:[#allocation7 + $0x33]]
        %v643 = vstv %s642
        %v644 = vmul.f32 %v643, %v575
        %v645 = vmul.f32 %v643, %v582
        %v646 = vadd.f32 %v640, %v644
        %v647 = vadd.f32 %v641, %v645
        %648 = vrot.lane.b32.xlu0 %v646, 49
        %v649 = vpop.permute.xlu0 %648
        %650 = vrot.lane.b32.xlu0 %v647, 49
        %v651 = vpop.permute.xlu0 %650
        %vm652 = vcmp.lt.s32.totalorder %v466, 49
        %v653 = vsel %vm652, %v649, %v651
        %v654 = vsel %vm652, %v651, %v649
        %s655 = scalar_lea.vmem [#allocation8], 2
        %v656 = vld [vmem:[%s655] ss:$8 sm:$0x3]
        %v658 = vperm.slane %v656, 0
        %v659 = vperm.slane %v656, 1
        %v662 = vmul.f32 %v654, %v658
        %v663 = vmul.f32 %v653, %v659
        %v664 = vadd.f32 %v636, %v662
        %v665 = vadd.f32 %v637, %v663
        %s666 = sld [smem:[#allocation7 + $0x3]]
        %v667 = vstv %s666
        %v668 = vmul.f32 %v667, %v562
        %v669 = vmul.f32 %v667, %v563
        %s670 = sld [smem:[#allocation7 + $0x34]]
        %v671 = vstv %s670
        %v672 = vmul.f32 %v671, %v575
        %v673 = vmul.f32 %v671, %v582
        %v674 = vadd.f32 %v668, %v672
        %v675 = vadd.f32 %v669, %v673
        %676 = vrot.lane.b32.xlu0 %v674, 48
        %v677 = vpop.permute.xlu0 %676
        %678 = vrot.lane.b32.xlu0 %v675, 48
        %v679 = vpop.permute.xlu0 %678
        %vm680 = vcmp.lt.s32.totalorder %v466, 48
        %v681 = vsel %vm680, %v677, %v679
        %v682 = vsel %vm680, %v679, %v677
        %s683 = scalar_lea.vmem [#allocation8], 3
        %v684 = vld [vmem:[%s683] ss:$8 sm:$0x3]
        %v686 = vperm.slane %v684, 0
        %v687 = vperm.slane %v684, 1
        %v690 = vmul.f32 %v682, %v686
        %v691 = vmul.f32 %v681, %v687
        %v692 = vadd.f32 %v664, %v690
        %v693 = vadd.f32 %v665, %v691
        %s694 = sld [smem:[#allocation7 + $0x4]]
        %v695 = vstv %s694
        %v696 = vmul.f32 %v695, %v562
        %v697 = vmul.f32 %v695, %v563
        %s698 = sld [smem:[#allocation7 + $0x35]]
        %v699 = vstv %s698
        %v700 = vmul.f32 %v699, %v575
        %v701 = vmul.f32 %v699, %v582
        %v702 = vadd.f32 %v696, %v700
        %v703 = vadd.f32 %v697, %v701
        %704 = vrot.lane.b32.xlu0 %v702, 47
        %v705 = vpop.permute.xlu0 %704
        %706 = vrot.lane.b32.xlu0 %v703, 47
        %v707 = vpop.permute.xlu0 %706
        %vm708 = vcmp.lt.s32.totalorder %v466, 47
        %v709 = vsel %vm708, %v705, %v707
        %v710 = vsel %vm708, %v707, %v705
        %s711 = scalar_lea.vmem [#allocation8], 4
        %v712 = vld [vmem:[%s711] ss:$8 sm:$0x3]
        %v714 = vperm.slane %v712, 0
        %v715 = vperm.slane %v712, 1
        %v718 = vmul.f32 %v710, %v714
        %v719 = vmul.f32 %v709, %v715
        %v720 = vadd.f32 %v692, %v718
        %v721 = vadd.f32 %v693, %v719
        %s722 = sld [smem:[#allocation7 + $0x5]]
        %v723 = vstv %s722
        %v724 = vmul.f32 %v723, %v562
        %v725 = vmul.f32 %v723, %v563
        %s726 = sld [smem:[#allocation7 + $0x36]]
        %v727 = vstv %s726
        %v728 = vmul.f32 %v727, %v575
        %v729 = vmul.f32 %v727, %v582
        %v730 = vadd.f32 %v724, %v728
        %v731 = vadd.f32 %v725, %v729
        %732 = vrot.lane.b32.xlu0 %v730, 46
        %v733 = vpop.permute.xlu0 %732
        %734 = vrot.lane.b32.xlu0 %v731, 46
        %v735 = vpop.permute.xlu0 %734
        %vm736 = vcmp.lt.s32.totalorder %v466, 46
        %v737 = vsel %vm736, %v733, %v735
        %v738 = vsel %vm736, %v735, %v733
        %s739 = scalar_lea.vmem [#allocation8], 5
        %v740 = vld [vmem:[%s739] ss:$8 sm:$0x3]
        %v742 = vperm.slane %v740, 0
        %v743 = vperm.slane %v740, 1
        %v746 = vmul.f32 %v738, %v742
        %v747 = vmul.f32 %v737, %v743
        %v748 = vadd.f32 %v720, %v746
        %v749 = vadd.f32 %v721, %v747
        %s750 = sld [smem:[#allocation7 + $0x6]]
        %v751 = vstv %s750
        %v752 = vmul.f32 %v751, %v562
        %v753 = vmul.f32 %v751, %v563
        %s754 = sld [smem:[#allocation7 + $0x37]]
        %v755 = vstv %s754
        %v756 = vmul.f32 %v755, %v575
        %v757 = vmul.f32 %v755, %v582
        %v758 = vadd.f32 %v752, %v756
        %v759 = vadd.f32 %v753, %v757
        %760 = vrot.lane.b32.xlu0 %v758, 45
        %v761 = vpop.permute.xlu0 %760
        %762 = vrot.lane.b32.xlu0 %v759, 45
        %v763 = vpop.permute.xlu0 %762
        %vm764 = vcmp.lt.s32.totalorder %v466, 45
        %v765 = vsel %vm764, %v761, %v763
        %v766 = vsel %vm764, %v763, %v761
        %s767 = scalar_lea.vmem [#allocation8], 6
        %v768 = vld [vmem:[%s767] ss:$8 sm:$0x3]
        %v770 = vperm.slane %v768, 0
        %v771 = vperm.slane %v768, 1
        %v774 = vmul.f32 %v766, %v770
        %v775 = vmul.f32 %v765, %v771
        %v776 = vadd.f32 %v748, %v774
        %v777 = vadd.f32 %v749, %v775
        %s778 = sld [smem:[#allocation7 + $0x7]]
        %v779 = vstv %s778
        %v780 = vmul.f32 %v779, %v562
        %v781 = vmul.f32 %v779, %v563
        %s782 = sld [smem:[#allocation7 + $0x38]]
        %v783 = vstv %s782
        %v784 = vmul.f32 %v783, %v575
        %v785 = vmul.f32 %v783, %v582
        %v786 = vadd.f32 %v780, %v784
        %v787 = vadd.f32 %v781, %v785
        %788 = vrot.lane.b32.xlu0 %v786, 35
        %v789 = vpop.permute.xlu0 %788
        %790 = vrot.lane.b32.xlu0 %v787, 35
        %v791 = vpop.permute.xlu0 %790
        %vm792 = vcmp.lt.s32.totalorder %v466, 35
        %v793 = vsel %vm792, %v789, %v791
        %v794 = vsel %vm792, %v791, %v789
        %s795 = scalar_lea.vmem [#allocation8], 7
        %v796 = vld [vmem:[%s795] ss:$8 sm:$0x3]
        %v798 = vperm.slane %v796, 0
        %v799 = vperm.slane %v796, 1
        %v802 = vmul.f32 %v794, %v798
        %v803 = vmul.f32 %v793, %v799
        %v804 = vadd.f32 %v776, %v802
        %v805 = vadd.f32 %v777, %v803
        %s806 = sld [smem:[#allocation7 + $0x8]]
        %v807 = vstv %s806
        %v808 = vmul.f32 %v807, %v562
        %v809 = vmul.f32 %v807, %v563
        %s810 = sld [smem:[#allocation7 + $0x39]]
        %v811 = vstv %s810
        %v812 = vmul.f32 %v811, %v575
        %v813 = vmul.f32 %v811, %v582
        %v814 = vadd.f32 %v808, %v812
        %v815 = vadd.f32 %v809, %v813
        %816 = vrot.lane.b32.xlu0 %v814, 34
        %v817 = vpop.permute.xlu0 %816
        %818 = vrot.lane.b32.xlu0 %v815, 34
        %v819 = vpop.permute.xlu0 %818
        %vm820 = vcmp.lt.s32.totalorder %v466, 34
        %v821 = vsel %vm820, %v817, %v819
        %v822 = vsel %vm820, %v819, %v817
        %s823 = scalar_lea.vmem [#allocation8], 16
        %v824 = vld [vmem:[%s823] ss:$8 sm:$0x3]
        %v826 = vperm.slane %v824, 0
        %v827 = vperm.slane %v824, 1
        %v830 = vmul.f32 %v822, %v826
        %v831 = vmul.f32 %v821, %v827
        %v832 = vadd.f32 %v804, %v830
        %v833 = vadd.f32 %v805, %v831
        %s834 = sld [smem:[#allocation7 + $0x9]]
        %v835 = vstv %s834
        %v836 = vmul.f32 %v835, %v562
        %v837 = vmul.f32 %v835, %v563
        %s838 = sld [smem:[#allocation7 + $0x3a]]
        %v839 = vstv %s838
        %v840 = vmul.f32 %v839, %v575
        %v841 = vmul.f32 %v839, %v582
        %v842 = vadd.f32 %v836, %v840
        %v843 = vadd.f32 %v837, %v841
        %844 = vrot.lane.b32.xlu0 %v842, 33
        %v845 = vpop.permute.xlu0 %844
        %846 = vrot.lane.b32.xlu0 %v843, 33
        %v847 = vpop.permute.xlu0 %846
        %vm848 = vcmp.lt.s32.totalorder %v466, 33
        %v849 = vsel %vm848, %v845, %v847
        %v850 = vsel %vm848, %v847, %v845
        %s851 = scalar_lea.vmem [#allocation8], 17
        %v852 = vld [vmem:[%s851] ss:$8 sm:$0x3]
        %v854 = vperm.slane %v852, 0
        %v855 = vperm.slane %v852, 1
        %v858 = vmul.f32 %v850, %v854
        %v859 = vmul.f32 %v849, %v855
        %v860 = vadd.f32 %v832, %v858
        %v861 = vadd.f32 %v833, %v859
        %s862 = sld [smem:[#allocation7 + $0xa]]
        %v863 = vstv %s862
        %v864 = vmul.f32 %v863, %v562
        %v865 = vmul.f32 %v863, %v563
        %s866 = sld [smem:[#allocation7 + $0x3b]]
        %v867 = vstv %s866
        %v868 = vmul.f32 %v867, %v575
        %v869 = vmul.f32 %v867, %v582
        %v870 = vadd.f32 %v864, %v868
        %v871 = vadd.f32 %v865, %v869
        %872 = vrot.lane.b32.xlu0 %v870, 32
        %v873 = vpop.permute.xlu0 %872
        %874 = vrot.lane.b32.xlu0 %v871, 32
        %v875 = vpop.permute.xlu0 %874
        %vm876 = vcmp.lt.s32.totalorder %v466, 32
        %v877 = vsel %vm876, %v873, %v875
        %v878 = vsel %vm876, %v875, %v873
        %s879 = scalar_lea.vmem [#allocation8], 18
        %v880 = vld [vmem:[%s879] ss:$8 sm:$0x3]
        %v882 = vperm.slane %v880, 0
        %v883 = vperm.slane %v880, 1
        %v886 = vmul.f32 %v878, %v882
        %v887 = vmul.f32 %v877, %v883
        %v888 = vadd.f32 %v860, %v886
        %v889 = vadd.f32 %v861, %v887
        %s890 = sld [smem:[#allocation7 + $0xb]]
        %v891 = vstv %s890
        %v892 = vmul.f32 %v891, %v562
        %v893 = vmul.f32 %v891, %v563
        %s894 = sld [smem:[#allocation7 + $0x3c]]
        %v895 = vstv %s894
        %v896 = vmul.f32 %v895, %v575
        %v897 = vmul.f32 %v895, %v582
        %v898 = vadd.f32 %v892, %v896
        %v899 = vadd.f32 %v893, %v897
        %900 = vrot.lane.b32.xlu0 %v898, 31
        %v901 = vpop.permute.xlu0 %900
        %902 = vrot.lane.b32.xlu0 %v899, 31
        %v903 = vpop.permute.xlu0 %902
        %vm904 = vcmp.lt.s32.totalorder %v466, 31
        %v905 = vsel %vm904, %v901, %v903
        %v906 = vsel %vm904, %v903, %v901
        %s907 = scalar_lea.vmem [#allocation8], 19
        %v908 = vld [vmem:[%s907] ss:$8 sm:$0x3]
        %v910 = vperm.slane %v908, 0
        %v911 = vperm.slane %v908, 1
        %v914 = vmul.f32 %v906, %v910
        %v915 = vmul.f32 %v905, %v911
        %v916 = vadd.f32 %v888, %v914
        %v917 = vadd.f32 %v889, %v915
        %s918 = sld [smem:[#allocation7 + $0xc]]
        %v919 = vstv %s918
        %v920 = vmul.f32 %v919, %v562
        %v921 = vmul.f32 %v919, %v563
        %s922 = sld [smem:[#allocation7 + $0x3d]]
        %v923 = vstv %s922
        %v924 = vmul.f32 %v923, %v575
        %v925 = vmul.f32 %v923, %v582
        %v926 = vadd.f32 %v920, %v924
        %v927 = vadd.f32 %v921, %v925
        %928 = vrot.lane.b32.xlu0 %v926, 30
        %v929 = vpop.permute.xlu0 %928
        %930 = vrot.lane.b32.xlu0 %v927, 30
        %v931 = vpop.permute.xlu0 %930
        %vm932 = vcmp.lt.s32.totalorder %v466, 30
        %v933 = vsel %vm932, %v929, %v931
        %v934 = vsel %vm932, %v931, %v929
        %s935 = scalar_lea.vmem [#allocation8], 20
        %v936 = vld [vmem:[%s935] ss:$8 sm:$0x3]
        %v938 = vperm.slane %v936, 0
        %v939 = vperm.slane %v936, 1
        %v942 = vmul.f32 %v934, %v938
        %v943 = vmul.f32 %v933, %v939
        %v944 = vadd.f32 %v916, %v942
        %v945 = vadd.f32 %v917, %v943
        %s946 = sld [smem:[#allocation7 + $0xd]]
        %v947 = vstv %s946
        %v948 = vmul.f32 %v947, %v562
        %v949 = vmul.f32 %v947, %v563
        %s950 = sld [smem:[#allocation7 + $0x3e]]
        %v951 = vstv %s950
        %v952 = vmul.f32 %v951, %v575
        %v953 = vmul.f32 %v951, %v582
        %v954 = vadd.f32 %v948, %v952
        %v955 = vadd.f32 %v949, %v953
        %956 = vrot.lane.b32.xlu0 %v954, 29
        %v957 = vpop.permute.xlu0 %956
        %958 = vrot.lane.b32.xlu0 %v955, 29
        %v959 = vpop.permute.xlu0 %958
        %vm960 = vcmp.lt.s32.totalorder %v466, 29
        %v961 = vsel %vm960, %v957, %v959
        %v962 = vsel %vm960, %v959, %v957
        %s963 = scalar_lea.vmem [#allocation8], 21
        %v964 = vld [vmem:[%s963] ss:$8 sm:$0x3]
        %v966 = vperm.slane %v964, 0
        %v967 = vperm.slane %v964, 1
        %v970 = vmul.f32 %v962, %v966
        %v971 = vmul.f32 %v961, %v967
        %v972 = vadd.f32 %v944, %v970
        %v973 = vadd.f32 %v945, %v971
        %s974 = sld [smem:[#allocation7 + $0xe]]
        %v975 = vstv %s974
        %v976 = vmul.f32 %v975, %v562
        %v977 = vmul.f32 %v975, %v563
        %s978 = sld [smem:[#allocation7 + $0x3f]]
        %v979 = vstv %s978
        %v980 = vmul.f32 %v979, %v575
        %v981 = vmul.f32 %v979, %v582
        %v982 = vadd.f32 %v976, %v980
        %v983 = vadd.f32 %v977, %v981
        %984 = vrot.lane.b32.xlu0 %v982, 19
        %v985 = vpop.permute.xlu0 %984
        %986 = vrot.lane.b32.xlu0 %v983, 19
        %v987 = vpop.permute.xlu0 %986
        %vm988 = vcmp.lt.s32.totalorder %v466, 19
        %v989 = vsel %vm988, %v985, %v987
        %v990 = vsel %vm988, %v987, %v985
        %s991 = scalar_lea.vmem [#allocation8], 22
        %v992 = vld [vmem:[%s991] ss:$8 sm:$0x3]
        %v994 = vperm.slane %v992, 0
        %v995 = vperm.slane %v992, 1
        %v998 = vmul.f32 %v990, %v994
        %v999 = vmul.f32 %v989, %v995
        %v1000 = vadd.f32 %v972, %v998
        %v1001 = vadd.f32 %v973, %v999
        %s1002 = sld [smem:[#allocation7 + $0xf]]
        %v1003 = vstv %s1002
        %v1004 = vmul.f32 %v1003, %v562
        %v1005 = vmul.f32 %v1003, %v563
        %s1006 = sld [smem:[#allocation7 + $0x40]]
        %v1007 = vstv %s1006
        %v1008 = vmul.f32 %v1007, %v575
        %v1009 = vmul.f32 %v1007, %v582
        %v1010 = vadd.f32 %v1004, %v1008
        %v1011 = vadd.f32 %v1005, %v1009
        %1012 = vrot.lane.b32.xlu0 %v1010, 18
        %v1013 = vpop.permute.xlu0 %1012
        %1014 = vrot.lane.b32.xlu0 %v1011, 18
        %v1015 = vpop.permute.xlu0 %1014
        %vm1016 = vcmp.lt.s32.totalorder %v466, 18
        %v1017 = vsel %vm1016, %v1013, %v1015
        %v1018 = vsel %vm1016, %v1015, %v1013
        %s1019 = scalar_lea.vmem [#allocation8], 23
        %v1020 = vld [vmem:[%s1019] ss:$8 sm:$0x3]
        %v1022 = vperm.slane %v1020, 0
        %v1023 = vperm.slane %v1020, 1
        %v1026 = vmul.f32 %v1018, %v1022
        %v1027 = vmul.f32 %v1017, %v1023
        %v1028 = vadd.f32 %v1000, %v1026
        %v1029 = vadd.f32 %v1001, %v1027
        %s1030 = sld [smem:[#allocation7 + $0x10]]
        %v1031 = vstv %s1030
        %v1032 = vmul.f32 %v1031, %v562
        %v1033 = vmul.f32 %v1031, %v563
        %s1034 = sld [smem:[#allocation7 + $0x41]]
        %v1035 = vstv %s1034
        %v1036 = vmul.f32 %v1035, %v575
        %v1037 = vmul.f32 %v1035, %v582
        %v1038 = vadd.f32 %v1032, %v1036
        %v1039 = vadd.f32 %v1033, %v1037
        %1040 = vrot.lane.b32.xlu0 %v1038, 17
        %v1041 = vpop.permute.xlu0 %1040
        %1042 = vrot.lane.b32.xlu0 %v1039, 17
        %v1043 = vpop.permute.xlu0 %1042
        %vm1044 = vcmp.lt.s32.totalorder %v466, 17
        %v1045 = vsel %vm1044, %v1041, %v1043
        %v1046 = vsel %vm1044, %v1043, %v1041
        %s1047 = scalar_lea.vmem [#allocation8], 32
        %v1048 = vld [vmem:[%s1047] ss:$8 sm:$0x3]
        %v1050 = vperm.slane %v1048, 0
        %v1051 = vperm.slane %v1048, 1
        %v1054 = vmul.f32 %v1046, %v1050
        %v1055 = vmul.f32 %v1045, %v1051
        %v1056 = vadd.f32 %v1028, %v1054
        %v1057 = vadd.f32 %v1029, %v1055
        %s1058 = sld [smem:[#allocation7 + $0x11]]
        %v1059 = vstv %s1058
        %v1060 = vmul.f32 %v1059, %v562
        %v1061 = vmul.f32 %v1059, %v563
        %s1062 = sld [smem:[#allocation7 + $0x42]]
        %v1063 = vstv %s1062
        %v1064 = vmul.f32 %v1063, %v575
        %v1065 = vmul.f32 %v1063, %v582
        %v1066 = vadd.f32 %v1060, %v1064
        %v1067 = vadd.f32 %v1061, %v1065
        %1068 = vrot.lane.b32.xlu0 %v1066, 16
        %v1069 = vpop.permute.xlu0 %1068
        %1070 = vrot.lane.b32.xlu0 %v1067, 16
        %v1071 = vpop.permute.xlu0 %1070
        %vm1072 = vcmp.lt.s32.totalorder %v466, 16
        %v1073 = vsel %vm1072, %v1069, %v1071
        %v1074 = vsel %vm1072, %v1071, %v1069
        %s1075 = scalar_lea.vmem [#allocation8], 33
        %v1076 = vld [vmem:[%s1075] ss:$8 sm:$0x3]
        %v1078 = vperm.slane %v1076, 0
        %v1079 = vperm.slane %v1076, 1
        %v1082 = vmul.f32 %v1074, %v1078
        %v1083 = vmul.f32 %v1073, %v1079
        %v1084 = vadd.f32 %v1056, %v1082
        %v1085 = vadd.f32 %v1057, %v1083
        %s1086 = sld [smem:[#allocation7 + $0x12]]
        %v1087 = vstv %s1086
        %v1088 = vmul.f32 %v1087, %v562
        %v1089 = vmul.f32 %v1087, %v563
        %s1090 = sld [smem:[#allocation7 + $0x43]]
        %v1091 = vstv %s1090
        %v1092 = vmul.f32 %v1091, %v575
        %v1093 = vmul.f32 %v1091, %v582
        %v1094 = vadd.f32 %v1088, %v1092
        %v1095 = vadd.f32 %v1089, %v1093
        %1096 = vrot.lane.b32.xlu0 %v1094, 15
        %v1097 = vpop.permute.xlu0 %1096
        %1098 = vrot.lane.b32.xlu0 %v1095, 15
        %v1099 = vpop.permute.xlu0 %1098
        %vm1100 = vcmp.lt.s32.totalorder %v466, 15
        %v1101 = vsel %vm1100, %v1097, %v1099
        %v1102 = vsel %vm1100, %v1099, %v1097
        %s1103 = scalar_lea.vmem [#allocation8], 34
        %v1104 = vld [vmem:[%s1103] ss:$8 sm:$0x3]
        %v1106 = vperm.slane %v1104, 0
        %v1107 = vperm.slane %v1104, 1
        %v1110 = vmul.f32 %v1102, %v1106
        %v1111 = vmul.f32 %v1101, %v1107
        %v1112 = vadd.f32 %v1084, %v1110
        %v1113 = vadd.f32 %v1085, %v1111
        %s1114 = sld [smem:[#allocation7 + $0x13]]
        %v1115 = vstv %s1114
        %v1116 = vmul.f32 %v1115, %v562
        %v1117 = vmul.f32 %v1115, %v563
        %s1118 = sld [smem:[#allocation7 + $0x44]]
        %v1119 = vstv %s1118
        %v1120 = vmul.f32 %v1119, %v575
        %v1121 = vmul.f32 %v1119, %v582
        %v1122 = vadd.f32 %v1116, %v1120
        %v1123 = vadd.f32 %v1117, %v1121
        %1124 = vrot.lane.b32.xlu0 %v1122, 14
        %v1125 = vpop.permute.xlu0 %1124
        %1126 = vrot.lane.b32.xlu0 %v1123, 14
        %v1127 = vpop.permute.xlu0 %1126
        %vm1128 = vcmp.lt.s32.totalorder %v466, 14
        %v1129 = vsel %vm1128, %v1125, %v1127
        %v1130 = vsel %vm1128, %v1127, %v1125
        %s1131 = scalar_lea.vmem [#allocation8], 35
        %v1132 = vld [vmem:[%s1131] ss:$8 sm:$0x3]
        %v1134 = vperm.slane %v1132, 0
        %v1135 = vperm.slane %v1132, 1
        %v1138 = vmul.f32 %v1130, %v1134
        %v1139 = vmul.f32 %v1129, %v1135
        %v1140 = vadd.f32 %v1112, %v1138
        %v1141 = vadd.f32 %v1113, %v1139
        %s1142 = sld [smem:[#allocation7 + $0x14]]
        %v1143 = vstv %s1142
        %v1144 = vmul.f32 %v1143, %v562
        %v1145 = vmul.f32 %v1143, %v563
        %s1146 = sld [smem:[#allocation7 + $0x45]]
        %v1147 = vstv %s1146
        %v1148 = vmul.f32 %v1147, %v575
        %v1149 = vmul.f32 %v1147, %v582
        %v1150 = vadd.f32 %v1144, %v1148
        %v1151 = vadd.f32 %v1145, %v1149
        %1152 = vrot.lane.b32.xlu0 %v1150, 13
        %v1153 = vpop.permute.xlu0 %1152
        %1154 = vrot.lane.b32.xlu0 %v1151, 13
        %v1155 = vpop.permute.xlu0 %1154
        %vm1156 = vcmp.lt.s32.totalorder %v466, 13
        %v1157 = vsel %vm1156, %v1153, %v1155
        %v1158 = vsel %vm1156, %v1155, %v1153
        %s1159 = scalar_lea.vmem [#allocation8], 36
        %v1160 = vld [vmem:[%s1159] ss:$8 sm:$0x3]
        %v1162 = vperm.slane %v1160, 0
        %v1163 = vperm.slane %v1160, 1
        %v1166 = vmul.f32 %v1158, %v1162
        %v1167 = vmul.f32 %v1157, %v1163
        %v1168 = vadd.f32 %v1140, %v1166
        %v1169 = vadd.f32 %v1141, %v1167
        %s1170 = sld [smem:[#allocation7 + $0x15]]
        %v1171 = vstv %s1170
        %v1172 = vmul.f32 %v1171, %v562
        %v1173 = vmul.f32 %v1171, %v563
        %s1174 = sld [smem:[#allocation7 + $0x46]]
        %v1175 = vstv %s1174
        %v1176 = vmul.f32 %v1175, %v575
        %v1177 = vmul.f32 %v1175, %v582
        %v1178 = vadd.f32 %v1172, %v1176
        %v1179 = vadd.f32 %v1173, %v1177
        %1180 = vrot.lane.b32.xlu0 %v1178, 3
        %v1181 = vpop.permute.xlu0 %1180
        %1182 = vrot.lane.b32.xlu0 %v1179, 3
        %v1183 = vpop.permute.xlu0 %1182
        %vm1184 = vcmp.lt.s32.totalorder %v466, 3
        %v1185 = vsel %vm1184, %v1181, %v1183
        %v1186 = vsel %vm1184, %v1183, %v1181
        %s1187 = scalar_lea.vmem [#allocation8], 37
        %v1188 = vld [vmem:[%s1187] ss:$8 sm:$0x3]
        %v1190 = vperm.slane %v1188, 0
        %v1191 = vperm.slane %v1188, 1
        %v1194 = vmul.f32 %v1186, %v1190
        %v1195 = vmul.f32 %v1185, %v1191
        %v1196 = vadd.f32 %v1168, %v1194
        %v1197 = vadd.f32 %v1169, %v1195
        %s1198 = sld [smem:[#allocation7 + $0x16]]
        %v1199 = vstv %s1198
        %v1200 = vmul.f32 %v1199, %v562
        %v1201 = vmul.f32 %v1199, %v563
        %s1202 = sld [smem:[#allocation7 + $0x47]]
        %v1203 = vstv %s1202
        %v1204 = vmul.f32 %v1203, %v575
        %v1205 = vmul.f32 %v1203, %v582
        %v1206 = vadd.f32 %v1200, %v1204
        %v1207 = vadd.f32 %v1201, %v1205
        %1208 = vrot.lane.b32.xlu0 %v1206, 2
        %v1209 = vpop.permute.xlu0 %1208
        %1210 = vrot.lane.b32.xlu0 %v1207, 2
        %v1211 = vpop.permute.xlu0 %1210
        %vm1212 = vcmp.lt.s32.totalorder %v466, 2
        %v1213 = vsel %vm1212, %v1209, %v1211
        %v1214 = vsel %vm1212, %v1211, %v1209
        %s1215 = scalar_lea.vmem [#allocation8], 38
        %v1216 = vld [vmem:[%s1215] ss:$8 sm:$0x3]
        %v1218 = vperm.slane %v1216, 0
        %v1219 = vperm.slane %v1216, 1
        %v1222 = vmul.f32 %v1214, %v1218
        %v1223 = vmul.f32 %v1213, %v1219
        %v1224 = vadd.f32 %v1196, %v1222
        %v1225 = vadd.f32 %v1197, %v1223
        %s1226 = sld [smem:[#allocation7 + $0x17]]
        %v1227 = vstv %s1226
        %v1228 = vmul.f32 %v1227, %v562
        %v1229 = vmul.f32 %v1227, %v563
        %s1230 = sld [smem:[#allocation7 + $0x48]]
        %v1231 = vstv %s1230
        %v1232 = vmul.f32 %v1231, %v575
        %v1233 = vmul.f32 %v1231, %v582
        %v1234 = vadd.f32 %v1228, %v1232
        %v1235 = vadd.f32 %v1229, %v1233
        %1236 = vrot.lane.b32.xlu0 %v1234, 1
        %v1237 = vpop.permute.xlu0 %1236
        %1238 = vrot.lane.b32.xlu0 %v1235, 1
        %v1239 = vpop.permute.xlu0 %1238
        %vm1240 = vcmp.lt.s32.totalorder %v466, 1
        %v1241 = vsel %vm1240, %v1237, %v1239
        %v1242 = vsel %vm1240, %v1239, %v1237
        %s1243 = scalar_lea.vmem [#allocation8], 39
        %v1244 = vld [vmem:[%s1243] ss:$8 sm:$0x3]
        %v1246 = vperm.slane %v1244, 0
        %v1247 = vperm.slane %v1244, 1
        %v1250 = vmul.f32 %v1242, %v1246
        %v1251 = vmul.f32 %v1241, %v1247
        %v1252 = vadd.f32 %v1224, %v1250
        %v1253 = vadd.f32 %v1225, %v1251
        %s1254 = sld [smem:[#allocation7 + $0x18]]
        %v1255 = vstv %s1254
        %v1256 = vmul.f32 %v1255, %v562
        %v1257 = vmul.f32 %v1255, %v563
        %s1258 = sld [smem:[#allocation7 + $0x49]]
        %v1259 = vstv %s1258
        %v1260 = vmul.f32 %v1259, %v575
        %v1261 = vmul.f32 %v1259, %v582
        %v1262 = vadd.f32 %v1256, %v1260
        %v1263 = vadd.f32 %v1257, %v1261
        %v1264 = vadd.f32 %v1252, %v1262
        %v1265 = vadd.f32 %v1253, %v1263
        %s1266 = sld [smem:[#allocation7 + $0x19]]
        %v1267 = vstv %s1266
        %v1268 = vmul.f32 %v1267, %v562
        %v1269 = vmul.f32 %v1267, %v563
        %s1270 = sld [smem:[#allocation7 + $0x4a]]
        %v1271 = vstv %s1270
        %v1272 = vmul.f32 %v1271, %v575
        %v1273 = vmul.f32 %v1271, %v582
        %v1274 = vadd.f32 %v1268, %v1272
        %v1275 = vadd.f32 %v1269, %v1273
        %1276 = vrot.lane.b32.xlu0 %v1274, 127
        %v1277 = vpop.permute.xlu0 %1276
        %1278 = vrot.lane.b32.xlu0 %v1275, 127
        %v1279 = vpop.permute.xlu0 %1278
        %vm1280 = vcmp.lt.s32.totalorder %v466, 127
        %v1281 = vsel %vm1280, %v1277, %v1279
        %v1282 = vsel %vm1280, %v1279, %v1277
        %s1283 = scalar_lea.vmem [#allocation8], 49
        %v1284 = vld [vmem:[%s1283] ss:$8 sm:$0x3]
        %v1286 = vperm.slane %v1284, 0
        %v1287 = vperm.slane %v1284, 1
        %v1290 = vmul.f32 %v1281, %v1286
        %v1291 = vmul.f32 %v1282, %v1287
        %v1292 = vadd.f32 %v1264, %v1290
        %v1293 = vadd.f32 %v1265, %v1291
        %s1294 = sld [smem:[#allocation7 + $0x1a]]
        %v1295 = vstv %s1294
        %v1296 = vmul.f32 %v1295, %v562
        %v1297 = vmul.f32 %v1295, %v563
        %s1298 = sld [smem:[#allocation7 + $0x4b]]
        %v1299 = vstv %s1298
        %v1300 = vmul.f32 %v1299, %v575
        %v1301 = vmul.f32 %v1299, %v582
        %v1302 = vadd.f32 %v1296, %v1300
        %v1303 = vadd.f32 %v1297, %v1301
        %1304 = vrot.lane.b32.xlu0 %v1302, 126
        %v1305 = vpop.permute.xlu0 %1304
        %1306 = vrot.lane.b32.xlu0 %v1303, 126
        %v1307 = vpop.permute.xlu0 %1306
        %vm1308 = vcmp.lt.s32.totalorder %v466, 126
        %v1309 = vsel %vm1308, %v1305, %v1307
        %v1310 = vsel %vm1308, %v1307, %v1305
        %s1311 = scalar_lea.vmem [#allocation8], 50
        %v1312 = vld [vmem:[%s1311] ss:$8 sm:$0x3]
        %v1314 = vperm.slane %v1312, 0
        %v1315 = vperm.slane %v1312, 1
        %v1318 = vmul.f32 %v1309, %v1314
        %v1319 = vmul.f32 %v1310, %v1315
        %v1320 = vadd.f32 %v1292, %v1318
        %v1321 = vadd.f32 %v1293, %v1319
        %s1322 = sld [smem:[#allocation7 + $0x1b]]
        %v1323 = vstv %s1322
        %v1324 = vmul.f32 %v1323, %v562
        %v1325 = vmul.f32 %v1323, %v563
        %s1326 = sld [smem:[#allocation7 + $0x4c]]
        %v1327 = vstv %s1326
        %v1328 = vmul.f32 %v1327, %v575
        %v1329 = vmul.f32 %v1327, %v582
        %v1330 = vadd.f32 %v1324, %v1328
        %v1331 = vadd.f32 %v1325, %v1329
        %1332 = vrot.lane.b32.xlu0 %v1330, 125
        %v1333 = vpop.permute.xlu0 %1332
        %1334 = vrot.lane.b32.xlu0 %v1331, 125
        %v1335 = vpop.permute.xlu0 %1334
        %vm1336 = vcmp.lt.s32.totalorder %v466, 125
        %v1337 = vsel %vm1336, %v1333, %v1335
        %v1338 = vsel %vm1336, %v1335, %v1333
        %s1339 = scalar_lea.vmem [#allocation8], 51
        %v1340 = vld [vmem:[%s1339] ss:$8 sm:$0x3]
        %v1342 = vperm.slane %v1340, 0
        %v1343 = vperm.slane %v1340, 1
        %v1346 = vmul.f32 %v1337, %v1342
        %v1347 = vmul.f32 %v1338, %v1343
        %v1348 = vadd.f32 %v1320, %v1346
        %v1349 = vadd.f32 %v1321, %v1347
        %s1350 = sld [smem:[#allocation7 + $0x1c]]
        %v1351 = vstv %s1350
        %v1352 = vmul.f32 %v1351, %v562
        %v1353 = vmul.f32 %v1351, %v563
        %s1354 = sld [smem:[#allocation7 + $0x4d]]
        %v1355 = vstv %s1354
        %v1356 = vmul.f32 %v1355, %v575
        %v1357 = vmul.f32 %v1355, %v582
        %v1358 = vadd.f32 %v1352, %v1356
        %v1359 = vadd.f32 %v1353, %v1357
        %1360 = vrot.lane.b32.xlu0 %v1358, 115
        %v1361 = vpop.permute.xlu0 %1360
        %1362 = vrot.lane.b32.xlu0 %v1359, 115
        %v1363 = vpop.permute.xlu0 %1362
        %vm1364 = vcmp.lt.s32.totalorder %v466, 115
        %v1365 = vsel %vm1364, %v1361, %v1363
        %v1366 = vsel %vm1364, %v1363, %v1361
        %s1367 = scalar_lea.vmem [#allocation8], 52
        %v1368 = vld [vmem:[%s1367] ss:$8 sm:$0x3]
        %v1370 = vperm.slane %v1368, 0
        %v1371 = vperm.slane %v1368, 1
        %v1374 = vmul.f32 %v1365, %v1370
        %v1375 = vmul.f32 %v1366, %v1371
        %v1376 = vadd.f32 %v1348, %v1374
        %v1377 = vadd.f32 %v1349, %v1375
        %s1378 = sld [smem:[#allocation7 + $0x1d]]
        %v1379 = vstv %s1378
        %v1380 = vmul.f32 %v1379, %v562
        %v1381 = vmul.f32 %v1379, %v563
        %s1382 = sld [smem:[#allocation7 + $0x4e]]
        %v1383 = vstv %s1382
        %v1384 = vmul.f32 %v1383, %v575
        %v1385 = vmul.f32 %v1383, %v582
        %v1386 = vadd.f32 %v1380, %v1384
        %v1387 = vadd.f32 %v1381, %v1385
        %1388 = vrot.lane.b32.xlu0 %v1386, 114
        %v1389 = vpop.permute.xlu0 %1388
        %1390 = vrot.lane.b32.xlu0 %v1387, 114
        %v1391 = vpop.permute.xlu0 %1390
        %vm1392 = vcmp.lt.s32.totalorder %v466, 114
        %v1393 = vsel %vm1392, %v1389, %v1391
        %v1394 = vsel %vm1392, %v1391, %v1389
        %s1395 = scalar_lea.vmem [#allocation8], 53
        %v1396 = vld [vmem:[%s1395] ss:$8 sm:$0x3]
        %v1398 = vperm.slane %v1396, 0
        %v1399 = vperm.slane %v1396, 1
        %v1402 = vmul.f32 %v1393, %v1398
        %v1403 = vmul.f32 %v1394, %v1399
        %v1404 = vadd.f32 %v1376, %v1402
        %v1405 = vadd.f32 %v1377, %v1403
        %s1406 = sld [smem:[#allocation7 + $0x1e]]
        %v1407 = vstv %s1406
        %v1408 = vmul.f32 %v1407, %v562
        %v1409 = vmul.f32 %v1407, %v563
        %s1410 = sld [smem:[#allocation7 + $0x4f]]
        %v1411 = vstv %s1410
        %v1412 = vmul.f32 %v1411, %v575
        %v1413 = vmul.f32 %v1411, %v582
        %v1414 = vadd.f32 %v1408, %v1412
        %v1415 = vadd.f32 %v1409, %v1413
        %1416 = vrot.lane.b32.xlu0 %v1414, 113
        %v1417 = vpop.permute.xlu0 %1416
        %1418 = vrot.lane.b32.xlu0 %v1415, 113
        %v1419 = vpop.permute.xlu0 %1418
        %vm1420 = vcmp.lt.s32.totalorder %v466, 113
        %v1421 = vsel %vm1420, %v1417, %v1419
        %v1422 = vsel %vm1420, %v1419, %v1417
        %s1423 = scalar_lea.vmem [#allocation8], 54
        %v1424 = vld [vmem:[%s1423] ss:$8 sm:$0x3]
        %v1426 = vperm.slane %v1424, 0
        %v1427 = vperm.slane %v1424, 1
        %v1430 = vmul.f32 %v1421, %v1426
        %v1431 = vmul.f32 %v1422, %v1427
        %v1432 = vadd.f32 %v1404, %v1430
        %v1433 = vadd.f32 %v1405, %v1431
        %s1434 = sld [smem:[#allocation7 + $0x1f]]
        %v1435 = vstv %s1434
        %v1436 = vmul.f32 %v1435, %v562
        %v1437 = vmul.f32 %v1435, %v563
        %s1438 = sld [smem:[#allocation7 + $0x50]]
        %v1439 = vstv %s1438
        %v1440 = vmul.f32 %v1439, %v575
        %v1441 = vmul.f32 %v1439, %v582
        %v1442 = vadd.f32 %v1436, %v1440
        %v1443 = vadd.f32 %v1437, %v1441
        %1444 = vrot.lane.b32.xlu0 %v1442, 112
        %v1445 = vpop.permute.xlu0 %1444
        %1446 = vrot.lane.b32.xlu0 %v1443, 112
        %v1447 = vpop.permute.xlu0 %1446
        %vm1448 = vcmp.lt.s32.totalorder %v466, 112
        %v1449 = vsel %vm1448, %v1445, %v1447
        %v1450 = vsel %vm1448, %v1447, %v1445
        %s1451 = scalar_lea.vmem [#allocation8], 55
        %v1452 = vld [vmem:[%s1451] ss:$8 sm:$0x3]
        %v1454 = vperm.slane %v1452, 0
        %v1455 = vperm.slane %v1452, 1
        %v1458 = vmul.f32 %v1449, %v1454
        %v1459 = vmul.f32 %v1450, %v1455
        %v1460 = vadd.f32 %v1432, %v1458
        %v1461 = vadd.f32 %v1433, %v1459
        %s1462 = sld [smem:[#allocation7 + $0x20]]
        %v1463 = vstv %s1462
        %v1464 = vmul.f32 %v1463, %v562
        %v1465 = vmul.f32 %v1463, %v563
        %s1466 = sld [smem:[#allocation7 + $0x51]]
        %v1467 = vstv %s1466
        %v1468 = vmul.f32 %v1467, %v575
        %v1469 = vmul.f32 %v1467, %v582
        %v1470 = vadd.f32 %v1464, %v1468
        %v1471 = vadd.f32 %v1465, %v1469
        %1472 = vrot.lane.b32.xlu0 %v1470, 111
        %v1473 = vpop.permute.xlu0 %1472
        %1474 = vrot.lane.b32.xlu0 %v1471, 111
        %v1475 = vpop.permute.xlu0 %1474
        %vm1476 = vcmp.lt.s32.totalorder %v466, 111
        %v1477 = vsel %vm1476, %v1473, %v1475
        %v1478 = vsel %vm1476, %v1475, %v1473
        %s1479 = scalar_lea.vmem [#allocation8], 64
        %v1480 = vld [vmem:[%s1479] ss:$8 sm:$0x3]
        %v1482 = vperm.slane %v1480, 0
        %v1483 = vperm.slane %v1480, 1
        %v1486 = vmul.f32 %v1477, %v1482
        %v1487 = vmul.f32 %v1478, %v1483
        %v1488 = vadd.f32 %v1460, %v1486
        %v1489 = vadd.f32 %v1461, %v1487
        %s1490 = sld [smem:[#allocation7 + $0x21]]
        %v1491 = vstv %s1490
        %v1492 = vmul.f32 %v1491, %v562
        %v1493 = vmul.f32 %v1491, %v563
        %s1494 = sld [smem:[#allocation7 + $0x52]]
        %v1495 = vstv %s1494
        %v1496 = vmul.f32 %v1495, %v575
        %v1497 = vmul.f32 %v1495, %v582
        %v1498 = vadd.f32 %v1492, %v1496
        %v1499 = vadd.f32 %v1493, %v1497
        %1500 = vrot.lane.b32.xlu0 %v1498, 110
        %v1501 = vpop.permute.xlu0 %1500
        %1502 = vrot.lane.b32.xlu0 %v1499, 110
        %v1503 = vpop.permute.xlu0 %1502
        %vm1504 = vcmp.lt.s32.totalorder %v466, 110
        %v1505 = vsel %vm1504, %v1501, %v1503
        %v1506 = vsel %vm1504, %v1503, %v1501
        %s1507 = scalar_lea.vmem [#allocation8], 65
        %v1508 = vld [vmem:[%s1507] ss:$8 sm:$0x3]
        %v1510 = vperm.slane %v1508, 0
        %v1511 = vperm.slane %v1508, 1
        %v1514 = vmul.f32 %v1505, %v1510
        %v1515 = vmul.f32 %v1506, %v1511
        %v1516 = vadd.f32 %v1488, %v1514
        %v1517 = vadd.f32 %v1489, %v1515
        %s1518 = sld [smem:[#allocation7 + $0x22]]
        %v1519 = vstv %s1518
        %v1520 = vmul.f32 %v1519, %v562
        %v1521 = vmul.f32 %v1519, %v563
        %s1522 = sld [smem:[#allocation7 + $0x53]]
        %v1523 = vstv %s1522
        %v1524 = vmul.f32 %v1523, %v575
        %v1525 = vmul.f32 %v1523, %v582
        %v1526 = vadd.f32 %v1520, %v1524
        %v1527 = vadd.f32 %v1521, %v1525
        %1528 = vrot.lane.b32.xlu0 %v1526, 109
        %v1529 = vpop.permute.xlu0 %1528
        %1530 = vrot.lane.b32.xlu0 %v1527, 109
        %v1531 = vpop.permute.xlu0 %1530
        %vm1532 = vcmp.lt.s32.totalorder %v466, 109
        %v1533 = vsel %vm1532, %v1529, %v1531
        %v1534 = vsel %vm1532, %v1531, %v1529
        %s1535 = scalar_lea.vmem [#allocation8], 66
        %v1536 = vld [vmem:[%s1535] ss:$8 sm:$0x3]
        %v1538 = vperm.slane %v1536, 0
        %v1539 = vperm.slane %v1536, 1
        %v1542 = vmul.f32 %v1533, %v1538
        %v1543 = vmul.f32 %v1534, %v1539
        %v1544 = vadd.f32 %v1516, %v1542
        %v1545 = vadd.f32 %v1517, %v1543
        %s1546 = sld [smem:[#allocation7 + $0x23]]
        %v1547 = vstv %s1546
        %v1548 = vmul.f32 %v1547, %v562
        %v1549 = vmul.f32 %v1547, %v563
        %s1550 = sld [smem:[#allocation7 + $0x54]]
        %v1551 = vstv %s1550
        %v1552 = vmul.f32 %v1551, %v575
        %v1553 = vmul.f32 %v1551, %v582
        %v1554 = vadd.f32 %v1548, %v1552
        %v1555 = vadd.f32 %v1549, %v1553
        %1556 = vrot.lane.b32.xlu0 %v1554, 99
        %v1557 = vpop.permute.xlu0 %1556
        %1558 = vrot.lane.b32.xlu0 %v1555, 99
        %v1559 = vpop.permute.xlu0 %1558
        %vm1560 = vcmp.lt.s32.totalorder %v466, 99
        %v1561 = vsel %vm1560, %v1557, %v1559
        %v1562 = vsel %vm1560, %v1559, %v1557
        %s1563 = scalar_lea.vmem [#allocation8], 67
        %v1564 = vld [vmem:[%s1563] ss:$8 sm:$0x3]
        %v1566 = vperm.slane %v1564, 0
        %v1567 = vperm.slane %v1564, 1
        %v1570 = vmul.f32 %v1561, %v1566
        %v1571 = vmul.f32 %v1562, %v1567
        %v1572 = vadd.f32 %v1544, %v1570
        %v1573 = vadd.f32 %v1545, %v1571
        %s1574 = sld [smem:[#allocation7 + $0x24]]
        %v1575 = vstv %s1574
        %v1576 = vmul.f32 %v1575, %v562
        %v1577 = vmul.f32 %v1575, %v563
        %s1578 = sld [smem:[#allocation7 + $0x55]]
        %v1579 = vstv %s1578
        %v1580 = vmul.f32 %v1579, %v575
        %v1581 = vmul.f32 %v1579, %v582
        %v1582 = vadd.f32 %v1576, %v1580
        %v1583 = vadd.f32 %v1577, %v1581
        %1584 = vrot.lane.b32.xlu0 %v1582, 98
        %v1585 = vpop.permute.xlu0 %1584
        %1586 = vrot.lane.b32.xlu0 %v1583, 98
        %v1587 = vpop.permute.xlu0 %1586
        %vm1588 = vcmp.lt.s32.totalorder %v466, 98
        %v1589 = vsel %vm1588, %v1585, %v1587
        %v1590 = vsel %vm1588, %v1587, %v1585
        %s1591 = scalar_lea.vmem [#allocation8], 68
        %v1592 = vld [vmem:[%s1591] ss:$8 sm:$0x3]
        %v1594 = vperm.slane %v1592, 0
        %v1595 = vperm.slane %v1592, 1
        %v1598 = vmul.f32 %v1589, %v1594
        %v1599 = vmul.f32 %v1590, %v1595
        %v1600 = vadd.f32 %v1572, %v1598
        %v1601 = vadd.f32 %v1573, %v1599
        %s1602 = sld [smem:[#allocation7 + $0x25]]
        %v1603 = vstv %s1602
        %v1604 = vmul.f32 %v1603, %v562
        %v1605 = vmul.f32 %v1603, %v563
        %s1606 = sld [smem:[#allocation7 + $0x56]]
        %v1607 = vstv %s1606
        %v1608 = vmul.f32 %v1607, %v575
        %v1609 = vmul.f32 %v1607, %v582
        %v1610 = vadd.f32 %v1604, %v1608
        %v1611 = vadd.f32 %v1605, %v1609
        %1612 = vrot.lane.b32.xlu0 %v1610, 97
        %v1613 = vpop.permute.xlu0 %1612
        %1614 = vrot.lane.b32.xlu0 %v1611, 97
        %v1615 = vpop.permute.xlu0 %1614
        %vm1616 = vcmp.lt.s32.totalorder %v466, 97
        %v1617 = vsel %vm1616, %v1613, %v1615
        %v1618 = vsel %vm1616, %v1615, %v1613
        %s1619 = scalar_lea.vmem [#allocation8], 69
        %v1620 = vld [vmem:[%s1619] ss:$8 sm:$0x3]
        %v1622 = vperm.slane %v1620, 0
        %v1623 = vperm.slane %v1620, 1
        %v1626 = vmul.f32 %v1617, %v1622
        %v1627 = vmul.f32 %v1618, %v1623
        %v1628 = vadd.f32 %v1600, %v1626
        %v1629 = vadd.f32 %v1601, %v1627
        %s1630 = sld [smem:[#allocation7 + $0x26]]
        %v1631 = vstv %s1630
        %v1632 = vmul.f32 %v1631, %v562
        %v1633 = vmul.f32 %v1631, %v563
        %s1634 = sld [smem:[#allocation7 + $0x57]]
        %v1635 = vstv %s1634
        %v1636 = vmul.f32 %v1635, %v575
        %v1637 = vmul.f32 %v1635, %v582
        %v1638 = vadd.f32 %v1632, %v1636
        %v1639 = vadd.f32 %v1633, %v1637
        %1640 = vrot.lane.b32.xlu0 %v1638, 96
        %v1641 = vpop.permute.xlu0 %1640
        %1642 = vrot.lane.b32.xlu0 %v1639, 96
        %v1643 = vpop.permute.xlu0 %1642
        %vm1644 = vcmp.lt.s32.totalorder %v466, 96
        %v1645 = vsel %vm1644, %v1641, %v1643
        %v1646 = vsel %vm1644, %v1643, %v1641
        %s1647 = scalar_lea.vmem [#allocation8], 70
        %v1648 = vld [vmem:[%s1647] ss:$8 sm:$0x3]
        %v1650 = vperm.slane %v1648, 0
        %v1651 = vperm.slane %v1648, 1
        %v1654 = vmul.f32 %v1645, %v1650
        %v1655 = vmul.f32 %v1646, %v1651
        %v1656 = vadd.f32 %v1628, %v1654
        %v1657 = vadd.f32 %v1629, %v1655
        %s1658 = sld [smem:[#allocation7 + $0x27]]
        %v1659 = vstv %s1658
        %v1660 = vmul.f32 %v1659, %v562
        %v1661 = vmul.f32 %v1659, %v563
        %s1662 = sld [smem:[#allocation7 + $0x58]]
        %v1663 = vstv %s1662
        %v1664 = vmul.f32 %v1663, %v575
        %v1665 = vmul.f32 %v1663, %v582
        %v1666 = vadd.f32 %v1660, %v1664
        %v1667 = vadd.f32 %v1661, %v1665
        %1668 = vrot.lane.b32.xlu0 %v1666, 95
        %v1669 = vpop.permute.xlu0 %1668
        %1670 = vrot.lane.b32.xlu0 %v1667, 95
        %v1671 = vpop.permute.xlu0 %1670
        %vm1672 = vcmp.lt.s32.totalorder %v466, 95
        %v1673 = vsel %vm1672, %v1669, %v1671
        %v1674 = vsel %vm1672, %v1671, %v1669
        %s1675 = scalar_lea.vmem [#allocation8], 71
        %v1676 = vld [vmem:[%s1675] ss:$8 sm:$0x3]
        %v1678 = vperm.slane %v1676, 0
        %v1679 = vperm.slane %v1676, 1
        %v1682 = vmul.f32 %v1673, %v1678
        %v1683 = vmul.f32 %v1674, %v1679
        %v1684 = vadd.f32 %v1656, %v1682
        %v1685 = vadd.f32 %v1657, %v1683
        %s1686 = sld [smem:[#allocation7 + $0x28]]
        %v1687 = vstv %s1686
        %v1688 = vmul.f32 %v1687, %v562
        %v1689 = vmul.f32 %v1687, %v563
        %s1690 = sld [smem:[#allocation7 + $0x59]]
        %v1691 = vstv %s1690
        %v1692 = vmul.f32 %v1691, %v575
        %v1693 = vmul.f32 %v1691, %v582
        %v1694 = vadd.f32 %v1688, %v1692
        %v1695 = vadd.f32 %v1689, %v1693
        %1696 = vrot.lane.b32.xlu0 %v1694, 94
        %v1697 = vpop.permute.xlu0 %1696
        %1698 = vrot.lane.b32.xlu0 %v1695, 94
        %v1699 = vpop.permute.xlu0 %1698
        %vm1700 = vcmp.lt.s32.totalorder %v466, 94
        %v1701 = vsel %vm1700, %v1697, %v1699
        %v1702 = vsel %vm1700, %v1699, %v1697
        %s1703 = scalar_lea.vmem [#allocation8], 80
        %v1704 = vld [vmem:[%s1703] ss:$8 sm:$0x3]
        %v1706 = vperm.slane %v1704, 0
        %v1707 = vperm.slane %v1704, 1
        %v1710 = vmul.f32 %v1701, %v1706
        %v1711 = vmul.f32 %v1702, %v1707
        %v1712 = vadd.f32 %v1684, %v1710
        %v1713 = vadd.f32 %v1685, %v1711
        %s1714 = sld [smem:[#allocation7 + $0x29]]
        %v1715 = vstv %s1714
        %v1716 = vmul.f32 %v1715, %v562
        %v1717 = vmul.f32 %v1715, %v563
        %s1718 = sld [smem:[#allocation7 + $0x5a]]
        %v1719 = vstv %s1718
        %v1720 = vmul.f32 %v1719, %v575
        %v1721 = vmul.f32 %v1719, %v582
        %v1722 = vadd.f32 %v1716, %v1720
        %v1723 = vadd.f32 %v1717, %v1721
        %1724 = vrot.lane.b32.xlu0 %v1722, 93
        %v1725 = vpop.permute.xlu0 %1724
        %1726 = vrot.lane.b32.xlu0 %v1723, 93
        %v1727 = vpop.permute.xlu0 %1726
        %vm1728 = vcmp.lt.s32.totalorder %v466, 93
        %v1729 = vsel %vm1728, %v1725, %v1727
        %v1730 = vsel %vm1728, %v1727, %v1725
        %s1731 = scalar_lea.vmem [#allocation8], 81
        %v1732 = vld [vmem:[%s1731] ss:$8 sm:$0x3]
        %v1734 = vperm.slane %v1732, 0
        %v1735 = vperm.slane %v1732, 1
        %v1738 = vmul.f32 %v1729, %v1734
        %v1739 = vmul.f32 %v1730, %v1735
        %v1740 = vadd.f32 %v1712, %v1738
        %v1741 = vadd.f32 %v1713, %v1739
        %s1742 = sld [smem:[#allocation7 + $0x2a]]
        %v1743 = vstv %s1742
        %v1744 = vmul.f32 %v1743, %v562
        %v1745 = vmul.f32 %v1743, %v563
        %s1746 = sld [smem:[#allocation7 + $0x5b]]
        %v1747 = vstv %s1746
        %v1748 = vmul.f32 %v1747, %v575
        %v1749 = vmul.f32 %v1747, %v582
        %v1750 = vadd.f32 %v1744, %v1748
        %v1751 = vadd.f32 %v1745, %v1749
        %1752 = vrot.lane.b32.xlu0 %v1750, 83
        %v1753 = vpop.permute.xlu0 %1752
        %1754 = vrot.lane.b32.xlu0 %v1751, 83
        %v1755 = vpop.permute.xlu0 %1754
        %vm1756 = vcmp.lt.s32.totalorder %v466, 83
        %v1757 = vsel %vm1756, %v1753, %v1755
        %v1758 = vsel %vm1756, %v1755, %v1753
        %s1759 = scalar_lea.vmem [#allocation8], 82
        %v1760 = vld [vmem:[%s1759] ss:$8 sm:$0x3]
        %v1762 = vperm.slane %v1760, 0
        %v1763 = vperm.slane %v1760, 1
        %v1766 = vmul.f32 %v1757, %v1762
        %v1767 = vmul.f32 %v1758, %v1763
        %v1768 = vadd.f32 %v1740, %v1766
        %v1769 = vadd.f32 %v1741, %v1767
        %s1770 = sld [smem:[#allocation7 + $0x2b]]
        %v1771 = vstv %s1770
        %v1772 = vmul.f32 %v1771, %v562
        %v1773 = vmul.f32 %v1771, %v563
        %s1774 = sld [smem:[#allocation7 + $0x5c]]
        %v1775 = vstv %s1774
        %v1776 = vmul.f32 %v1775, %v575
        %v1777 = vmul.f32 %v1775, %v582
        %v1778 = vadd.f32 %v1772, %v1776
        %v1779 = vadd.f32 %v1773, %v1777
        %1780 = vrot.lane.b32.xlu0 %v1778, 82
        %v1781 = vpop.permute.xlu0 %1780
        %1782 = vrot.lane.b32.xlu0 %v1779, 82
        %v1783 = vpop.permute.xlu0 %1782
        %vm1784 = vcmp.lt.s32.totalorder %v466, 82
        %v1785 = vsel %vm1784, %v1781, %v1783
        %v1786 = vsel %vm1784, %v1783, %v1781
        %s1787 = scalar_lea.vmem [#allocation8], 83
        %v1788 = vld [vmem:[%s1787] ss:$8 sm:$0x3]
        %v1790 = vperm.slane %v1788, 0
        %v1791 = vperm.slane %v1788, 1
        %v1794 = vmul.f32 %v1785, %v1790
        %v1795 = vmul.f32 %v1786, %v1791
        %v1796 = vadd.f32 %v1768, %v1794
        %v1797 = vadd.f32 %v1769, %v1795
        %s1798 = sld [smem:[#allocation7 + $0x2c]]
        %v1799 = vstv %s1798
        %v1800 = vmul.f32 %v1799, %v562
        %v1801 = vmul.f32 %v1799, %v563
        %s1802 = sld [smem:[#allocation7 + $0x5d]]
        %v1803 = vstv %s1802
        %v1804 = vmul.f32 %v1803, %v575
        %v1805 = vmul.f32 %v1803, %v582
        %v1806 = vadd.f32 %v1800, %v1804
        %v1807 = vadd.f32 %v1801, %v1805
        %1808 = vrot.lane.b32.xlu0 %v1806, 81
        %v1809 = vpop.permute.xlu0 %1808
        %1810 = vrot.lane.b32.xlu0 %v1807, 81
        %v1811 = vpop.permute.xlu0 %1810
        %vm1812 = vcmp.lt.s32.totalorder %v466, 81
        %v1813 = vsel %vm1812, %v1809, %v1811
        %v1814 = vsel %vm1812, %v1811, %v1809
        %s1815 = scalar_lea.vmem [#allocation8], 84
        %v1816 = vld [vmem:[%s1815] ss:$8 sm:$0x3]
        %v1818 = vperm.slane %v1816, 0
        %v1819 = vperm.slane %v1816, 1
        %v1822 = vmul.f32 %v1813, %v1818
        %v1823 = vmul.f32 %v1814, %v1819
        %v1824 = vadd.f32 %v1796, %v1822
        %v1825 = vadd.f32 %v1797, %v1823
        %s1826 = sld [smem:[#allocation7 + $0x2d]]
        %v1827 = vstv %s1826
        %v1828 = vmul.f32 %v1827, %v562
        %v1829 = vmul.f32 %v1827, %v563
        %s1830 = sld [smem:[#allocation7 + $0x5e]]
        %v1831 = vstv %s1830
        %v1832 = vmul.f32 %v1831, %v575
        %v1833 = vmul.f32 %v1831, %v582
        %v1834 = vadd.f32 %v1828, %v1832
        %v1835 = vadd.f32 %v1829, %v1833
        %1836 = vrot.lane.b32.xlu0 %v1834, 80
        %v1837 = vpop.permute.xlu0 %1836
        %1838 = vrot.lane.b32.xlu0 %v1835, 80
        %v1839 = vpop.permute.xlu0 %1838
        %vm1840 = vcmp.lt.s32.totalorder %v466, 80
        %v1841 = vsel %vm1840, %v1837, %v1839
        %v1842 = vsel %vm1840, %v1839, %v1837
        %s1843 = scalar_lea.vmem [#allocation8], 85
        %v1844 = vld [vmem:[%s1843] ss:$8 sm:$0x3]
        %v1846 = vperm.slane %v1844, 0
        %v1847 = vperm.slane %v1844, 1
        %v1850 = vmul.f32 %v1841, %v1846
        %v1851 = vmul.f32 %v1842, %v1847
        %v1852 = vadd.f32 %v1824, %v1850
        %v1853 = vadd.f32 %v1825, %v1851
        %s1854 = sld [smem:[#allocation7 + $0x2e]]
        %v1855 = vstv %s1854
        %v1856 = vmul.f32 %v1855, %v562
        %v1857 = vmul.f32 %v1855, %v563
        %s1858 = sld [smem:[#allocation7 + $0x5f]]
        %v1859 = vstv %s1858
        %v1860 = vmul.f32 %v1859, %v575
        %v1861 = vmul.f32 %v1859, %v582
        %v1862 = vadd.f32 %v1856, %v1860
        %v1863 = vadd.f32 %v1857, %v1861
        %1864 = vrot.lane.b32.xlu0 %v1862, 79
        %v1865 = vpop.permute.xlu0 %1864
        %1866 = vrot.lane.b32.xlu0 %v1863, 79
        %v1867 = vpop.permute.xlu0 %1866
        %vm1868 = vcmp.lt.s32.totalorder %v466, 79
        %v1869 = vsel %vm1868, %v1865, %v1867
        %v1870 = vsel %vm1868, %v1867, %v1865
        %s1871 = scalar_lea.vmem [#allocation8], 86
        %v1872 = vld [vmem:[%s1871] ss:$8 sm:$0x3]
        %v1874 = vperm.slane %v1872, 0
        %v1875 = vperm.slane %v1872, 1
        %v1878 = vmul.f32 %v1869, %v1874
        %v1879 = vmul.f32 %v1870, %v1875
        %v1880 = vadd.f32 %v1852, %v1878
        %v1881 = vadd.f32 %v1853, %v1879
        %s1882 = sld [smem:[#allocation7 + $0x2f]]
        %v1883 = vstv %s1882
        %v1884 = vmul.f32 %v1883, %v562
        %v1885 = vmul.f32 %v1883, %v563
        %s1886 = sld [smem:[#allocation7 + $0x60]]
        %v1887 = vstv %s1886
        %v1888 = vmul.f32 %v1887, %v575
        %v1889 = vmul.f32 %v1887, %v582
        %v1890 = vadd.f32 %v1884, %v1888
        %v1891 = vadd.f32 %v1885, %v1889
        %1892 = vrot.lane.b32.xlu0 %v1890, 78
        %v1893 = vpop.permute.xlu0 %1892
        %1894 = vrot.lane.b32.xlu0 %v1891, 78
        %v1895 = vpop.permute.xlu0 %1894
        %vm1896 = vcmp.lt.s32.totalorder %v466, 78
        %v1897 = vsel %vm1896, %v1893, %v1895
        %v1898 = vsel %vm1896, %v1895, %v1893
        %s1899 = scalar_lea.vmem [#allocation8], 87
        %v1900 = vld [vmem:[%s1899] ss:$8 sm:$0x3]
        %v1902 = vperm.slane %v1900, 0
        %v1903 = vperm.slane %v1900, 1
        %v1906 = vmul.f32 %v1897, %v1902
        %v1907 = vmul.f32 %v1898, %v1903
        %v1908 = vadd.f32 %v1880, %v1906
        %v1909 = vadd.f32 %v1881, %v1907
        %s1910 = sld [smem:[#allocation7 + $0x30]]
        %v1911 = vstv %s1910
        %v1912 = vmul.f32 %v1911, %v562
        %v1913 = vmul.f32 %v1911, %v563
        %s1914 = sld [smem:[#allocation7 + $0x61]]
        %v1915 = vstv %s1914
        %v1916 = vmul.f32 %v1915, %v575
        %v1917 = vmul.f32 %v1915, %v582
        %v1918 = vadd.f32 %v1912, %v1916
        %v1919 = vadd.f32 %v1913, %v1917
        %1920 = vrot.lane.b32.xlu0 %v1918, 77
        %v1921 = vpop.permute.xlu0 %1920
        %1922 = vrot.lane.b32.xlu0 %v1919, 77
        %v1923 = vpop.permute.xlu0 %1922
        %vm1924 = vcmp.lt.s32.totalorder %v466, 77
        %v1925 = vsel %vm1924, %v1921, %v1923
        %v1926 = vsel %vm1924, %v1923, %v1921
        %s1927 = scalar_lea.vmem [#allocation8], 96
        %v1928 = vld [vmem:[%s1927] ss:$8 sm:$0x3]
        %v1930 = vperm.slane %v1928, 0
        %v1931 = vperm.slane %v1928, 1
        %v1934 = vmul.f32 %v1925, %v1930
        %v1935 = vmul.f32 %v1926, %v1931
        %v1936 = vadd.f32 %v1908, %v1934
        %v1937 = vadd.f32 %v1909, %v1935
        %s1938 = sld [smem:[#allocation2]]
        %v1939 = vstv %s1938
        %v1940 = vadd.f32 %v1936, %v1939
        %v1941 = vadd.f32 %v1937, %v1939
        %v1942 = vxor.u32 %v1940, 2147483648
        %v1943 = vxor.u32 %v1941, 2147483648
        %v1944 = vmul.f32 %v1942, 1.442695
        %v1945 = vpow.pop %v1944
        %v1946 = vmul.f32 %v1943, 1.442695
        %v1947 = vpow.pop %v1946
        %v1948 = vadd.f32 %v1945, 1.0
        %v1949 = vadd.f32 %v1947, 1.0
        %v1950 = vrcp.pop %v1948
        %v1951 = vmul.f32 %v1948, %v1950
        %v1952 = vsub.f32 1.0, %v1951
        %v1953 = vmul.f32 %v1950, %v1952
        %v1954 = vadd.f32 %v1950, %v1953
        %vm1955 = vweird.f32 %v1948
        %vm1956 = vweird.f32 %v1950
        %vm1957 = vmor %vm1955, %vm1956
        %v1958 = vsel %vm1957, %v1950, %v1954
        %v1959 = vand.u32 2147483647, %v1948
        %vm1960 = vcmp.eq.f32.partialorder %v1959, 8.507059e+37
        %v1961 = vand.u32 %v1948, 2147483648
        %v1962 = vor.u32 1.1754944e-38, %v1961
        %v1963 = vsel %vm1960, %v1962, %v1958
        %v1964 = vmul.f32 1.0, %v1963
        %v1965 = vrcp.pop %v1949
        %v1966 = vmul.f32 %v1949, %v1965
        %v1967 = vsub.f32 1.0, %v1966
        %v1968 = vmul.f32 %v1965, %v1967
        %v1969 = vadd.f32 %v1965, %v1968
        %vm1970 = vweird.f32 %v1949
        %vm1971 = vweird.f32 %v1965
        %vm1972 = vmor %vm1970, %vm1971
        %v1973 = vsel %vm1972, %v1965, %v1969
        %v1974 = vand.u32 2147483647, %v1949
        %vm1975 = vcmp.eq.f32.partialorder %v1974, 8.507059e+37
        %v1976 = vand.u32 %v1949, 2147483648
        %v1977 = vor.u32 1.1754944e-38, %v1976
        %v1978 = vsel %vm1975, %v1977, %v1973
        %v1979 = vmul.f32 1.0, %v1978
        %v1980 = vmul.f32 %v437, %v437
        %v1981 = vperm.slane %v542, 0
        %v1982 = vlaneseq
        %v1983 = vshrl.u32 %v1982, 7
        %1985 = vset.pattern.permute.xlu0 %v1983
        %1986 = vperm.xlu0 %1985, %v1981
        %v1987 = vpop.permute.xlu0 %1986
        %v1990 = vunpack.c.l.s4 839922192
        %v1991 = vunpack.c.0.s8 %v1990
        %v1992 = vperm.slane %v1987, %v1991
        %v1994 = vmul.f32 %v1980, %v1992
        %v1995 = vperm.slane %v1964, 0
        %v1996 = vperm.slane %v1979, 0
        %v1999 = vrot.slane %v1996, 4
        %v2000 = vsel %vm444, %v1995, %v1999
        %v2002 = vmul.f32 %v1980, %v2000
        %v2003 = vld [vmem:[%s8] sm:$0xf]
        %v2004 = vld [vmem:[%s9] sm:$0xf]
        %v2005 = vld [vmem:[%s10] sm:$0xf]
        %2007 = vst [vmem:[#allocation1] ss:$2 sm:$0xff] %v2002
        %v2008 = vld.sshfl [vmem:[#allocation1] sm:$0xff pattern:$0x75316420]
        %v2009 = vld.sshfl [vmem:[#allocation1 + $0x8] sm:$0xff pattern:$0x75316420]
        %v2011 = vsel %vm468, %v2004, 0
        %v2013 = vsel %vm444, %v2008, 0
        %v2015 = vsel %vm444, %v2009, 0
        %2017 = vmatpush.msra.mxu0 0.0
        %2018 = vmatpush.msra.mxu0 0.0
        %2019 = vmatpush.msra.mxu0 0.0
        %2020 = vmatpush.msra.mxu0 0.0
        %2021 = vmatpush.msra.mxu0 0.0
        %2022 = vmatpush.msra.mxu0 0.0
        %2023 = vmatpush.msra.mxu0 0.0
        %2024 = vmatpush.msra.mxu0 0.0
        %2025 = vmatpush.msra.mxu0 0.0
        %2026 = vmatpush.msra.mxu0 0.0
        %2027 = vmatpush.msra.mxu0 0.0
        %2028 = vmatpush.msra.mxu0 0.0
        %2029 = vmatpush.msra.mxu0 0.0
        %2030 = vmatpush.msra.mxu0 0.0
        %2031 = vmatpush.msra.mxu0 0.0
        %2032 = vmatpush.msra.mxu0 %v2013
        %2033 = vmatmul.f32.gmra.mxu0 %v2011
        %v2034 = vpop.f32.mrf.mxu0
        %v2035 = vadd.f32 0.0, %v2034
        %2036 = vdwg.mxu0
        %2037 = vmatpush.msra.mxu0 0.0
        %2038 = vmatpush.msra.mxu0 0.0
        %2039 = vmatpush.msra.mxu0 0.0
        %2040 = vmatpush.msra.mxu0 0.0
        %2041 = vmatpush.msra.mxu0 0.0
        %2042 = vmatpush.msra.mxu0 0.0
        %2043 = vmatpush.msra.mxu0 0.0
        %2044 = vmatpush.msra.mxu0 0.0
        %2045 = vmatpush.msra.mxu0 0.0
        %2046 = vmatpush.msra.mxu0 0.0
        %2047 = vmatpush.msra.mxu0 0.0
        %2048 = vmatpush.msra.mxu0 0.0
        %2049 = vmatpush.msra.mxu0 0.0
        %2050 = vmatpush.msra.mxu0 0.0
        %2051 = vmatpush.msra.mxu0 0.0
        %2052 = vmatpush.msra.mxu0 %v2015
        %2053 = vmatmul.f32.gmra.mxu0 %v2011
        %v2054 = vpop.f32.mrf.mxu0
        %v2055 = vadd.f32 0.0, %v2054
        %2056 = vdwg.mxu0
        %2058 = vst [vmem:[#allocation1] ss:$2 sm:$0xff] %v1994
        %v2059 = vld.sshfl [vmem:[#allocation1] sm:$0xff pattern:$0x75316420]
        %v2060 = vld.sshfl [vmem:[#allocation1 + $0x8] sm:$0xff pattern:$0x75316420]
        %v2062 = vsel %vm468, %v2003, 0
        %v2064 = vsel %vm444, %v2059, 0
        %v2066 = vsel %vm444, %v2060, 0
        %2068 = vmatpush.msra.mxu0 0.0
        %2069 = vmatpush.msra.mxu0 0.0
        %2070 = vmatpush.msra.mxu0 0.0
        %2071 = vmatpush.msra.mxu0 0.0
        %2072 = vmatpush.msra.mxu0 0.0
        %2073 = vmatpush.msra.mxu0 0.0
        %2074 = vmatpush.msra.mxu0 0.0
        %2075 = vmatpush.msra.mxu0 0.0
        %2076 = vmatpush.msra.mxu0 0.0
        %2077 = vmatpush.msra.mxu0 0.0
        %2078 = vmatpush.msra.mxu0 0.0
        %2079 = vmatpush.msra.mxu0 0.0
        %2080 = vmatpush.msra.mxu0 0.0
        %2081 = vmatpush.msra.mxu0 0.0
        %2082 = vmatpush.msra.mxu0 0.0
        %2083 = vmatpush.msra.mxu0 %v2064
        %2084 = vmatmul.f32.gmra.mxu0 %v2062
        %v2085 = vpop.f32.mrf.mxu0
        %v2086 = vadd.f32 %v2035, %v2085
        %2087 = vdwg.mxu0
        %2088 = vmatpush.msra.mxu0 0.0
        %2089 = vmatpush.msra.mxu0 0.0
        %2090 = vmatpush.msra.mxu0 0.0
        %2091 = vmatpush.msra.mxu0 0.0
        %2092 = vmatpush.msra.mxu0 0.0
        %2093 = vmatpush.msra.mxu0 0.0
        %2094 = vmatpush.msra.mxu0 0.0
        %2095 = vmatpush.msra.mxu0 0.0
        %2096 = vmatpush.msra.mxu0 0.0
        %2097 = vmatpush.msra.mxu0 0.0
        %2098 = vmatpush.msra.mxu0 0.0
        %2099 = vmatpush.msra.mxu0 0.0
        %2100 = vmatpush.msra.mxu0 0.0
        %2101 = vmatpush.msra.mxu0 0.0
        %2102 = vmatpush.msra.mxu0 0.0
        %2103 = vmatpush.msra.mxu0 %v2066
        %2104 = vmatmul.f32.gmra.mxu0 %v2062
        %v2105 = vpop.f32.mrf.mxu0
        %v2106 = vadd.f32 %v2055, %v2105
        %2107 = vdwg.mxu0
        %2109 = vset.pattern.permute.xlu0 0
        %2110 = vperm.xlu0 %2109, %v2005
        %v2111 = vpop.permute.xlu0 %2110
        %v2113 = vadd.f32 %v2086, %v2111
        %v2114 = vadd.f32 %v2106, %v2111
        %2115 = vst [vmem:[#allocation1] ss:$2 sm:$0xff] %v437
        %v2116 = vld.sshfl [vmem:[#allocation1] sm:$0xff pattern:$0x75316420]
        %v2117 = vld.sshfl [vmem:[#allocation1 + $0x8] sm:$0xff pattern:$0x75316420]
        %v2120 = vadd.f32 %v2113, %v2116
        %v2121 = vadd.f32 %v2114, %v2117
        %v2124 = vrot.slane %v2121, 4
        %v2125 = vsel %vm444, %v2120, %v2124
        %2127 = vst [vmem:[%s436] sm:$0xff] %v2125
        %s2128 = sand.u32 %s275, 1
        %s2129 = scalar_lea.sflag [#allocation5], %s2128
        %s2130 = sand.u32 %s275, 1
        %s2131 = smul.addr %s2130, 8
        %s2132 = scalar_lea.vmem [#allocation10], %s2131
        // Predicated region
        $region77: #{tpu_custom_call.1} parent=63 // pred_check
          %p2133 = pneg %p285
        $region78: #{tpu_custom_call.1} parent=63 // pred_check_branch
          %2135 = sbr.rel (%p2133) target = $region80
        $region79: #{tpu_custom_call.1} parent=63 // pred_region
          %2137 = vsyncadd %s2129, 0
          %s2138 = smul.addr %s31, 2
          %s2139 = smul.addr %s2138, 4
          %s2140 = scalar_lea.hbm %s11, %s2139
          %s2142 = sshll.u32 %s2132, 4
          %s2143 = int_to_ptr.vmem [resolvable:$true] %s2142
          %s2144 = sshll.u32 %s2140, 4
          %s2145 = int_to_ptr.hbm [resolvable:$true] %s2144
          %2147 = dma.vmem_to_hbm [thread:$0]  %s2143, 128, %s2145, %s2129
        $region80: #{tpu_custom_call.1} parent=63 // pred_fallthru
          _
      $region64: #{tpu_custom_call.1} parent=5 // pred_fallthru
        _
      %p2148 = scmp.le.s32.totalorder 2, %s26
      // Predicated region
      $region81: #{tpu_custom_call.1} parent=5 // pred_check
        %p2149 = pneg %p2148
      $region82: #{tpu_custom_call.1} parent=5 // pred_check_branch
        %2151 = sbr.rel (%p2149) target = $region84
      $region83: #{tpu_custom_call.1} parent=5 // pred_region
        %s2152 = ssub.s32 %s26, 2
        // Predicated region
        $region85: #{tpu_custom_call.1} parent=83 // pred_check
          %p2153 = pneg %p291
        $region86: #{tpu_custom_call.1} parent=83 // pred_check_branch
          %2155 = sbr.rel (%p2153) target = $region88
        $region87: #{tpu_custom_call.1} parent=83 // pred_region
          %s2156 = sand.u32 %s276, 1
          %s2157 = scalar_lea.sflag [#allocation5], %s2156
          %s2158 = sand.u32 %s276, 1
          %s2159 = smul.addr %s2158, 8
          %s2160 = scalar_lea.vmem [#allocation10], %s2159
          %2162 = dma.done %s2157, 128
        $region88: #{tpu_custom_call.1} parent=83 // pred_fallthru
          _
      $region84: #{tpu_custom_call.1} parent=5 // pred_fallthru
        _
    $region6: #{tpu_custom_call.1} parent=1 // loop_footer
      %s30 = sadd.s32 1, %s26
    $region7: #{tpu_custom_call.1} parent=1 // loop_footer_branch
      %25 = sbr.rel target = $region3
    $region8: #{tpu_custom_call.1} parent=1 // loop_exit
      _
    %2163 = vsyncpa [#allocation4], 1
    %s2164 = scalar_lea.sflag [#allocation4], 1
    %2165 = vsyncpa %s2164, 1
    %2166 = vsyncpa [#allocation9], 1
    %2167 = vsyncpa [#allocation5], 1
    %s2168 = scalar_lea.sflag [#allocation5], 1
    %2169 = vsyncpa %s2168, 1
    %2170 = vsyncpa [#allocation6], 1
    %s2171 = scalar_lea.sflag [#allocation6], 1
    %2172 = vsyncpa %s2171, 1

</llo_original>
